<compile_context>
chip_gen: v7x
topology: tpu7x:2x2x1
jax: 0.10.0
libtpu: 0.0.40
codegen_flags: <defaults>
</compile_context>

<pallas_src>
import functools
import math

import jax
import jax.numpy as jnp
from jax.experimental import pallas as pl
from jax.experimental.pallas import tpu as pltpu

# Module constants from the PyTorch spec.
_KH1, _KW1, _S1 = 5, 5, 2      # conv1: Conv2d(C, 32, kernel_size=5, stride=2)
_KH2, _KW2 = 3, 3              # conv2: Conv2d(32, 64, kernel_size=3, stride=1)


def _round_up(x, m):
    return (x + m - 1) // m * m


def _vmem():
    return pl.BlockSpec(memory_space=pltpu.MemorySpace.VMEM)


# ------------------------------ fused kernel -------------------------------

def fused_agent_kernel(patches_ref, w1_ref, b1_ref, w2_ref, b2_ref,
                       fc1w_ref, fc1b_ref, fc2w_ref, fc2b_ref,
                       out_ref, p1_ref, h2_ref, fcin_ref,
                       *, batch, q_rows, conv2_rows, rows_per_img, row_stride,
                       p2h, p2w, oc2p):
    f32 = jnp.float32

    # ---- conv1: ONE matmul over all four pool1 quadrants, then a slab max.
    # patches rows are grouped per quadrant in q_rows-sized (8-aligned) slabs,
    # so the quadrant max is four aligned slices of a single MXU result.
    # Bias + ReLU commute with the max (same bias per quadrant, monotone relu).
    m = jnp.dot(patches_ref[...], w1_ref[...], preferred_element_type=f32)
    pooled = jnp.maximum(
        jnp.maximum(m[0 * q_rows:1 * q_rows], m[1 * q_rows:2 * q_rows]),
        jnp.maximum(m[2 * q_rows:3 * q_rows], m[3 * q_rows:4 * q_rows]))
    p1_ref[...] = jnp.maximum(pooled + b1_ref[...], 0.0)   # rows=(n,y,x*), lanes=OC1

    # ---- conv2: in-kernel im2col as 3x3 shifted-row matmuls, f32 accumulate.
    # Row r of p1 is (n, y, x) with x-stride padded to `row_stride`; the (i,j)
    # tap for output row r lives at row r + i*row_stride + j.
    # NOTE: rows that straddle images or touch the x-pad columns hold finite
    # garbage (relu(bias) taps); they are never read by pool2 below.
    acc = jnp.dot(p1_ref[pl.ds(0, conv2_rows), :], w2_ref[0],
                  preferred_element_type=f32)
    for t in range(1, _KH2 * _KW2):
        i, j = divmod(t, _KW2)
        off = i * row_stride + j
        acc = acc + jnp.dot(p1_ref[pl.ds(off, conv2_rows), :], w2_ref[t],
                            preferred_element_type=f32)
    h2_ref[...] = jnp.maximum(acc + b2_ref[...], 0.0)       # lanes = OC2 padded to 128

    # ---- pool2 (2x2, floor mode) + NHWC flatten into the FC-input scratch.
    # Per (image, pooled-row): two 8-aligned (2*p2w, 128) slab loads, a vreg
    # max, then full-128-lane stores at lane offsets q*128 (unmasked vst).
    for n in range(batch):
        for py in range(p2h):
            base = n * rows_per_img + (2 * py) * row_stride   # multiple of 8
            top = h2_ref[pl.ds(base, 2 * p2w), :]
            bot = h2_ref[pl.ds(base + row_stride, 2 * p2w), :]
            vmax = jnp.maximum(top, bot)                      # (2*p2w, 128)
            for px in range(p2w):
                q = py * p2w + px
                v = jnp.maximum(vmax[2 * px:2 * px + 1],
                                vmax[2 * px + 1:2 * px + 2])  # (1, 128)
                fcin_ref[n:n + 1, q * oc2p:(q + 1) * oc2p] = v

    # ---- MLP head: Linear -> ReLU -> Linear (Q-values padded to 128 lanes).
    xf = fcin_ref[...]
    hh = jnp.dot(xf, fc1w_ref[...], preferred_element_type=f32) + fc1b_ref[...]
    hh = jnp.maximum(hh, 0.0)
    out = jnp.dot(hh, fc2w_ref[...], preferred_element_type=f32) + fc2b_ref[...]
    out_ref[...] = out.astype(out_ref.dtype)


# --------------------------- one-time weight pack ---------------------------

def pack_params(params, input_shape):
    """One-time repack of PyTorch-layout weights into kernel-native layouts.

    Hoisted out of the per-call path (per perf review): call once, reuse."""
    c, h, w = input_shape
    conv1_w, conv1_b = params["conv1_w"], params["conv1_b"]
    conv2_w, conv2_b = params["conv2_w"], params["conv2_b"]
    fc1_w, fc1_b = params["fc1_w"], params["fc1_b"]
    fc2_w, fc2_b = params["fc2_w"], params["fc2_b"]

    oc1 = conv1_w.shape[0]
    oc2, ic2 = conv2_w.shape[0], conv2_w.shape[1]
    hidden = fc1_w.shape[1]
    n_actions = fc2_w.shape[1]

    oh1 = (h - _KH1) // _S1 + 1
    ow1 = (w - _KW1) // _S1 + 1
    p1h, p1w = oh1 // 2, ow1 // 2
    p2h, p2w = (p1h - _KH2 + 1) // 2, (p1w - _KW2 + 1) // 2
    flat = oc2 * p2h * p2w
    assert fc1_w.shape[0] == flat and ic2 == oc1

    k1 = c * _KH1 * _KW1
    k1p = _round_up(k1, 128)
    oc2p = _round_up(oc2, 128)                       # 64 -> 128 lane padding
    na_pad = _round_up(max(n_actions, 128), 128)

    # conv1: (kh, kw, in, out) flatten, K padded to 128 with zero rows.
    w1m = conv1_w.transpose(2, 3, 1, 0).reshape(k1, oc1)
    w1m = jnp.pad(w1m, ((0, k1p - k1), (0, 0)))
    b1m = conv1_b.reshape(1, oc1)

    # conv2: per-tap (in, out) matrices, output lanes zero-padded to 128.
    w2m = conv2_w.transpose(2, 3, 1, 0).reshape(_KH2 * _KW2, ic2, oc2)
    w2m = jnp.pad(w2m, ((0, 0), (0, 0), (0, oc2p - oc2)))
    b2m = jnp.pad(conv2_b, (0, oc2p - oc2)).reshape(1, oc2p)

    # fc1: PyTorch NCHW-flatten rows -> kernel (spatial q, padded channel) rows.
    fc1m = fc1_w.reshape(oc2, p2h, p2w, hidden).transpose(1, 2, 0, 3)
    fc1m = fc1m.reshape(p2h * p2w, oc2, hidden)
    fc1m = jnp.pad(fc1m, ((0, 0), (0, oc2p - oc2), (0, 0)))
    fc1m = fc1m.reshape(p2h * p2w * oc2p, hidden)
    fc1bm = fc1_b.reshape(1, hidden)

    fc2m = jnp.pad(fc2_w, ((0, 0), (0, na_pad - n_actions)))
    fc2bm = jnp.pad(fc2_b, (0, na_pad - n_actions)).reshape(1, na_pad)

    return dict(w1=w1m, b1=b1m, w2=w2m, b2=b2m,
                fc1w=fc1m, fc1b=fc1bm, fc2w=fc2m, fc2b=fc2bm)


# ------------------------------- forward ------------------------------------

@functools.partial(jax.jit, static_argnames=("n_actions",))
def agent_nn_forward(x, packed, n_actions):
    """x: (N, C, H, W) float32 (PyTorch NCHW boundary). Returns (N, n_actions)."""
    n, c, h, w = x.shape
    k1p, oc1 = packed["w1"].shape
    oc2p = packed["b2"].shape[1]
    hidden = packed["fc1b"].shape[1]
    na_pad = packed["fc2b"].shape[1]

    oh1 = (h - _KH1) // _S1 + 1
    ow1 = (w - _KW1) // _S1 + 1
    p1h, p1w = oh1 // 2, ow1 // 2
    p2h, p2w = (p1h - _KH2 + 1) // 2, (p1w - _KW2 + 1) // 2
    k1 = c * _KH1 * _KW1
    assert packed["fc1w"].shape[0] == p2h * p2w * oc2p

    # Pooled-conv1 row layout: x-stride padded to 8 so per-image bases, conv2
    # i-taps and all pool2 slab loads are 8-sublane aligned.
    row_stride = _round_up(p1w, 8)
    rows_per_img = p1h * row_stride
    qv_pad = n * rows_per_img
    shift_max = (_KH2 - 1) * row_stride + (_KW2 - 1)
    conv2_rows = _round_up((n - 1) * rows_per_img
                           + (2 * p2h - 1) * row_stride + 2 * p2w, 8)
    q_rows = _round_up(max(qv_pad, conv2_rows + shift_max), 8)
    assert conv2_rows + shift_max <= q_rows   # conv2 never reads past p1

    # ---- conv1 im2col (channels-last patch flatten), rows grouped by pool1
    # quadrant, x padded p1w->row_stride with zeros, K padded to 128.
    # TODO(synk): at larger batches this XLA-side transpose chain should move
    # in-kernel (shifted-row matmuls over raw NHWC input) or be profiled.
    xt = x.transpose(0, 2, 3, 1)                 # NHWC
    oh1e, ow1e = 2 * p1h, 2 * p1w                # even-cropped conv1 extent
    cols = []
    for i in range(_KH1):
        for j in range(_KW1):
            cols.append(xt[:, i:i + _S1 * oh1e - 1:_S1, j:j + _S1 * ow1e - 1:_S1, :])
    patches = jnp.stack(cols, axis=3).reshape(n, oh1e, ow1e, k1)
    patches = patches.reshape(n, p1h, 2, p1w, 2, k1).transpose(2, 4, 0, 1, 3, 5)
    patches = jnp.pad(patches, ((0, 0), (0, 0), (0, 0), (0, 0),
                                (0, row_stride - p1w), (0, k1p - k1)))
    patches = patches.reshape(4, qv_pad, k1p)
    patches = jnp.pad(patches, ((0, 0), (0, q_rows - qv_pad), (0, 0)))
    patches = patches.reshape(4 * q_rows, k1p)   # one long M-stream for the MXU

    kernel = functools.partial(
        fused_agent_kernel, batch=n, q_rows=q_rows, conv2_rows=conv2_rows,
        rows_per_img=rows_per_img, row_stride=row_stride,
        p2h=p2h, p2w=p2w, oc2p=oc2p)

    flops = 2 * (4 * q_rows * k1p * oc1
                 + _KH2 * _KW2 * conv2_rows * oc1 * oc2p
                 + n * (p2h * p2w * oc2p) * hidden
                 + n * hidden * na_pad)
    bytes_accessed = 4 * (patches.size
                          + sum(int(v.size) for v in packed.values())
                          + n * na_pad)

    out = pl.pallas_call(
        kernel,
        out_shape=jax.ShapeDtypeStruct((n, na_pad), jnp.float32),
        in_specs=[_vmem() for _ in range(9)],
        out_specs=_vmem(),
        scratch_shapes=[
            pltpu.VMEM((q_rows, oc1), jnp.float32),        # pooled conv1 activations
            pltpu.VMEM((conv2_rows, oc2p), jnp.float32),   # conv2 activations (128 lanes)
            pltpu.VMEM((n, p2h * p2w * oc2p), jnp.float32),# flattened FC input
        ],
        cost_estimate=pl.CostEstimate(flops=flops, transcendentals=0,
                                      bytes_accessed=bytes_accessed),
    )(patches, packed["w1"], packed["b1"], packed["w2"], packed["b2"],
      packed["fc1w"], packed["fc1b"], packed["fc2w"], packed["fc2b"])
    return out[:, :n_actions]


# ----------------------------- params / reference ---------------------------

def conv_out_size(input_shape):
    c, h, w = input_shape
    h = (h - 5) // 2 + 1; w = (w - 5) // 2 + 1      # conv1 k=5 s=2
    h //= 2; w //= 2                                 # pool 2,2
    h = h - 3 + 1; w = w - 3 + 1                     # conv2 k=3 s=1
    h //= 2; w //= 2                                 # pool 2,2
    return 64 * h * w


def init_params(key, input_shape, n_actions):
    c_in = input_shape[0]
    flat = conv_out_size(input_shape)
    ks = jax.random.split(key, 8)

    def u(k, shape, fan_in):
        bound = 1.0 / math.sqrt(fan_in)
        return jax.random.uniform(k, shape, jnp.float32, -bound, bound)

    return {
        "conv1_w": u(ks[0], (32, c_in, 5, 5), c_in * 25),
        "conv1_b": u(ks[1], (32,), c_in * 25),
        "conv2_w": u(ks[2], (64, 32, 3, 3), 32 * 9),
        "conv2_b": u(ks[3], (64,), 32 * 9),
        # Linear weights stored as (in, out) = PyTorch weight.T (NCHW flatten order)
        "fc1_w": u(ks[4], (flat, 256), flat),
        "fc1_b": u(ks[5], (256,), flat),
        "fc2_w": u(ks[6], (256, n_actions), 256),
        "fc2_b": u(ks[7], (n_actions,), 256),
    }


def reference_forward(x, params):
    """Pure-JAX reference (no Pallas) for correctness checking."""
    dn = ("NCHW", "OIHW", "NCHW")
    y = jax.lax.conv_general_dilated(x, params["conv1_w"], (2, 2), "VALID",
                                     dimension_numbers=dn)
    y = jax.nn.relu(y + params["conv1_b"][None, :, None, None])
    y = jax.lax.reduce_window(y, -jnp.inf, jax.lax.max, (1, 1, 2, 2),
                              (1, 1, 2, 2), "VALID")
    y = jax.lax.conv_general_dilated(y, params["conv2_w"], (1, 1), "VALID",
                                     dimension_numbers=dn)
    y = jax.nn.relu(y + params["conv2_b"][None, :, None, None])
    y = jax.lax.reduce_window(y, -jnp.inf, jax.lax.max, (1, 1, 2, 2),
                              (1, 1, 2, 2), "VALID")
    flat = y.reshape(y.shape[0], -1)
    h = jax.nn.relu(flat @ params["fc1_w"] + params["fc1_b"])
    return h @ params["fc2_w"] + params["fc2_b"]


if __name__ == "__main__":
    input_shape = (4, 32, 32)   # (C, H, W) stacked frames (32x32 keeps conv_out > 0)
    n_actions = 5
    batch = 2

    key = jax.random.PRNGKey(0)
    k_params, k_x = jax.random.split(key)
    params = init_params(k_params, input_shape, n_actions)
    x = jax.random.normal(k_x, (batch,) + input_shape, dtype=jnp.float32)

    # One-time weight pack, off the per-forward hot path.
    packed = pack_params(params, input_shape)
    packed = jax.tree_util.tree_map(jax.block_until_ready, packed)

    out = jax.block_until_ready(agent_nn_forward(x, packed, n_actions))
    ref = jax.block_until_ready(reference_forward(x, params))

    assert out.shape == (batch, n_actions), out.shape
    assert bool(jnp.all(jnp.isfinite(out)))
    assert bool(jnp.allclose(out, ref, rtol=1e-3, atol=1e-3)), (out, ref)
    print("KERNEL_OK")
</pallas_src>

<mosaic_0001>
module attributes {stable_mosaic.version = 11 : i64} {
  func.func @fused_agent_kernel(%arg0: memref<448x128xf32, #tpu.memory_space<vmem>>, %arg1: memref<128x32xf32, #tpu.memory_space<vmem>>, %arg2: memref<1x32xf32, #tpu.memory_space<vmem>>, %arg3: memref<9x32x128xf32, #tpu.memory_space<vmem>>, %arg4: memref<1x128xf32, #tpu.memory_space<vmem>>, %arg5: memref<512x256xf32, #tpu.memory_space<vmem>>, %arg6: memref<1x256xf32, #tpu.memory_space<vmem>>, %arg7: memref<256x128xf32, #tpu.memory_space<vmem>>, %arg8: memref<1x128xf32, #tpu.memory_space<vmem>>, %arg9: memref<2x128xf32, #tpu.memory_space<vmem>>, %arg10: memref<112x32xf32, #tpu.memory_space<vmem>>, %arg11: memref<88x128xf32, #tpu.memory_space<vmem>>, %arg12: memref<2x512xf32, #tpu.memory_space<vmem>>) attributes {dimension_semantics = [], scalar_prefetch = 0 : i64, scratch_operands = 3 : i64, tpu.core_type = #tpu.core_type<tc>} {
    %c0 = arith.constant 0 : index
    %c0_0 = arith.constant 0 : index
    %0 = vector.load %arg0[%c0, %c0_0] : memref<448x128xf32, #tpu.memory_space<vmem>>, vector<448x128xf32>
    %c0_1 = arith.constant 0 : index
    %c0_2 = arith.constant 0 : index
    %1 = vector.load %arg1[%c0_1, %c0_2] : memref<128x32xf32, #tpu.memory_space<vmem>>, vector<128x32xf32>
    %cst = arith.constant dense<0.000000e+00> : vector<448x32xf32>
    %2 = tpu.matmul %0, %1, %cst {dimension_numbers = #tpu.dot_dimension_numbers<[1], [0], [0], [1], [0, 0, 1, 1], [], []>} : vector<448x128xf32>, vector<128x32xf32>, vector<448x32xf32> -> vector<448x32xf32>
    %3 = vector.extract_strided_slice %2 {offsets = [0, 0], sizes = [112, 32], strides = [1, 1]} : vector<448x32xf32> to vector<112x32xf32>
    %4 = vector.extract_strided_slice %2 {offsets = [112, 0], sizes = [112, 32], strides = [1, 1]} : vector<448x32xf32> to vector<112x32xf32>
    %5 = arith.maximumf %3, %4 : vector<112x32xf32>
    %6 = vector.extract_strided_slice %2 {offsets = [224, 0], sizes = [112, 32], strides = [1, 1]} : vector<448x32xf32> to vector<112x32xf32>
    %7 = vector.extract_strided_slice %2 {offsets = [336, 0], sizes = [112, 32], strides = [1, 1]} : vector<448x32xf32> to vector<112x32xf32>
    %8 = arith.maximumf %6, %7 : vector<112x32xf32>
    %9 = arith.maximumf %5, %8 : vector<112x32xf32>
    %c0_3 = arith.constant 0 : index
    %c0_4 = arith.constant 0 : index
    %10 = vector.load %arg2[%c0_3, %c0_4] : memref<1x32xf32, #tpu.memory_space<vmem>>, vector<1x32xf32>
    %11 = vector.broadcast %10 : vector<1x32xf32> to vector<112x32xf32>
    %12 = arith.addf %9, %11 : vector<112x32xf32>
    %cst_5 = arith.constant 0.000000e+00 : f32
    %13 = vector.broadcast %cst_5 : f32 to vector<112x32xf32>
    %14 = arith.maximumf %12, %13 : vector<112x32xf32>
    %c0_6 = arith.constant 0 : index
    %c0_7 = arith.constant 0 : index
    %15 = vector.load %arg10[%c0_6, %c0_7] : memref<112x32xf32, #tpu.memory_space<vmem>>, vector<112x32xf32>
    tpu.vector_store %arg10[%c0_6, %c0_7], %14 {strides = array<i32>} : memref<112x32xf32, #tpu.memory_space<vmem>>, vector<112x32xf32>,
    %c0_8 = arith.constant 0 : index
    %c0_9 = arith.constant 0 : index
    %16 = vector.load %arg10[%c0_8, %c0_9] : memref<112x32xf32, #tpu.memory_space<vmem>>, vector<88x32xf32>
    %c0_10 = arith.constant 0 : index
    %c0_11 = arith.constant 0 : index
    %c0_12 = arith.constant 0 : index
    %17 = vector.load %arg3[%c0_10, %c0_11, %c0_12] : memref<9x32x128xf32, #tpu.memory_space<vmem>>, vector<1x32x128xf32>
    %18 = vector.shape_cast %17 : vector<1x32x128xf32> to vector<32x128xf32>
    %cst_13 = arith.constant dense<0.000000e+00> : vector<88x128xf32>
    %19 = tpu.matmul %16, %18, %cst_13 {dimension_numbers = #tpu.dot_dimension_numbers<[1], [0], [0], [1], [0, 0, 1, 1], [], []>} : vector<88x32xf32>, vector<32x128xf32>, vector<88x128xf32> -> vector<88x128xf32>
    %c1 = arith.constant 1 : index
    %c0_14 = arith.constant 0 : index
    %20 = vector.load %arg10[%c1, %c0_14] : memref<112x32xf32, #tpu.memory_space<vmem>>, vector<88x32xf32>
    %c1_15 = arith.constant 1 : index
    %c0_16 = arith.constant 0 : index
    %c0_17 = arith.constant 0 : index
    %21 = vector.load %arg3[%c1_15, %c0_16, %c0_17] : memref<9x32x128xf32, #tpu.memory_space<vmem>>, vector<1x32x128xf32>
    %22 = vector.shape_cast %21 : vector<1x32x128xf32> to vector<32x128xf32>
    %cst_18 = arith.constant dense<0.000000e+00> : vector<88x128xf32>
    %23 = tpu.matmul %20, %22, %cst_18 {dimension_numbers = #tpu.dot_dimension_numbers<[1], [0], [0], [1], [0, 0, 1, 1], [], []>} : vector<88x32xf32>, vector<32x128xf32>, vector<88x128xf32> -> vector<88x128xf32>
    %24 = arith.addf %19, %23 : vector<88x128xf32>
    %c2 = arith.constant 2 : index
    %c0_19 = arith.constant 0 : index
    %25 = vector.load %arg10[%c2, %c0_19] : memref<112x32xf32, #tpu.memory_space<vmem>>, vector<88x32xf32>
    %c2_20 = arith.constant 2 : index
    %c0_21 = arith.constant 0 : index
    %c0_22 = arith.constant 0 : index
    %26 = vector.load %arg3[%c2_20, %c0_21, %c0_22] : memref<9x32x128xf32, #tpu.memory_space<vmem>>, vector<1x32x128xf32>
    %27 = vector.shape_cast %26 : vector<1x32x128xf32> to vector<32x128xf32>
    %cst_23 = arith.constant dense<0.000000e+00> : vector<88x128xf32>
    %28 = tpu.matmul %25, %27, %cst_23 {dimension_numbers = #tpu.dot_dimension_numbers<[1], [0], [0], [1], [0, 0, 1, 1], [], []>} : vector<88x32xf32>, vector<32x128xf32>, vector<88x128xf32> -> vector<88x128xf32>
    %29 = arith.addf %24, %28 : vector<88x128xf32>
    %c8 = arith.constant 8 : index
    %c0_24 = arith.constant 0 : index
    %30 = vector.load %arg10[%c8, %c0_24] : memref<112x32xf32, #tpu.memory_space<vmem>>, vector<88x32xf32>
    %c3 = arith.constant 3 : index
    %c0_25 = arith.constant 0 : index
    %c0_26 = arith.constant 0 : index
    %31 = vector.load %arg3[%c3, %c0_25, %c0_26] : memref<9x32x128xf32, #tpu.memory_space<vmem>>, vector<1x32x128xf32>
    %32 = vector.shape_cast %31 : vector<1x32x128xf32> to vector<32x128xf32>
    %cst_27 = arith.constant dense<0.000000e+00> : vector<88x128xf32>
    %33 = tpu.matmul %30, %32, %cst_27 {dimension_numbers = #tpu.dot_dimension_numbers<[1], [0], [0], [1], [0, 0, 1, 1], [], []>} : vector<88x32xf32>, vector<32x128xf32>, vector<88x128xf32> -> vector<88x128xf32>
    %34 = arith.addf %29, %33 : vector<88x128xf32>
    %c9 = arith.constant 9 : index
    %c0_28 = arith.constant 0 : index
    %35 = vector.load %arg10[%c9, %c0_28] : memref<112x32xf32, #tpu.memory_space<vmem>>, vector<88x32xf32>
    %c4 = arith.constant 4 : index
    %c0_29 = arith.constant 0 : index
    %c0_30 = arith.constant 0 : index
    %36 = vector.load %arg3[%c4, %c0_29, %c0_30] : memref<9x32x128xf32, #tpu.memory_space<vmem>>, vector<1x32x128xf32>
    %37 = vector.shape_cast %36 : vector<1x32x128xf32> to vector<32x128xf32>
    %cst_31 = arith.constant dense<0.000000e+00> : vector<88x128xf32>
    %38 = tpu.matmul %35, %37, %cst_31 {dimension_numbers = #tpu.dot_dimension_numbers<[1], [0], [0], [1], [0, 0, 1, 1], [], []>} : vector<88x32xf32>, vector<32x128xf32>, vector<88x128xf32> -> vector<88x128xf32>
    %39 = arith.addf %34, %38 : vector<88x128xf32>
    %c10 = arith.constant 10 : index
    %c0_32 = arith.constant 0 : index
    %40 = vector.load %arg10[%c10, %c0_32] : memref<112x32xf32, #tpu.memory_space<vmem>>, vector<88x32xf32>
    %c5 = arith.constant 5 : index
    %c0_33 = arith.constant 0 : index
    %c0_34 = arith.constant 0 : index
    %41 = vector.load %arg3[%c5, %c0_33, %c0_34] : memref<9x32x128xf32, #tpu.memory_space<vmem>>, vector<1x32x128xf32>
    %42 = vector.shape_cast %41 : vector<1x32x128xf32> to vector<32x128xf32>
    %cst_35 = arith.constant dense<0.000000e+00> : vector<88x128xf32>
    %43 = tpu.matmul %40, %42, %cst_35 {dimension_numbers = #tpu.dot_dimension_numbers<[1], [0], [0], [1], [0, 0, 1, 1], [], []>} : vector<88x32xf32>, vector<32x128xf32>, vector<88x128xf32> -> vector<88x128xf32>
    %44 = arith.addf %39, %43 : vector<88x128xf32>
    %c16 = arith.constant 16 : index
    %c0_36 = arith.constant 0 : index
    %45 = vector.load %arg10[%c16, %c0_36] : memref<112x32xf32, #tpu.memory_space<vmem>>, vector<88x32xf32>
    %c6 = arith.constant 6 : index
    %c0_37 = arith.constant 0 : index
    %c0_38 = arith.constant 0 : index
    %46 = vector.load %arg3[%c6, %c0_37, %c0_38] : memref<9x32x128xf32, #tpu.memory_space<vmem>>, vector<1x32x128xf32>
    %47 = vector.shape_cast %46 : vector<1x32x128xf32> to vector<32x128xf32>
    %cst_39 = arith.constant dense<0.000000e+00> : vector<88x128xf32>
    %48 = tpu.matmul %45, %47, %cst_39 {dimension_numbers = #tpu.dot_dimension_numbers<[1], [0], [0], [1], [0, 0, 1, 1], [], []>} : vector<88x32xf32>, vector<32x128xf32>, vector<88x128xf32> -> vector<88x128xf32>
    %49 = arith.addf %44, %48 : vector<88x128xf32>
    %c17 = arith.constant 17 : index
    %c0_40 = arith.constant 0 : index
    %50 = vector.load %arg10[%c17, %c0_40] : memref<112x32xf32, #tpu.memory_space<vmem>>, vector<88x32xf32>
    %c7 = arith.constant 7 : index
    %c0_41 = arith.constant 0 : index
    %c0_42 = arith.constant 0 : index
    %51 = vector.load %arg3[%c7, %c0_41, %c0_42] : memref<9x32x128xf32, #tpu.memory_space<vmem>>, vector<1x32x128xf32>
    %52 = vector.shape_cast %51 : vector<1x32x128xf32> to vector<32x128xf32>
    %cst_43 = arith.constant dense<0.000000e+00> : vector<88x128xf32>
    %53 = tpu.matmul %50, %52, %cst_43 {dimension_numbers = #tpu.dot_dimension_numbers<[1], [0], [0], [1], [0, 0, 1, 1], [], []>} : vector<88x32xf32>, vector<32x128xf32>, vector<88x128xf32> -> vector<88x128xf32>
    %54 = arith.addf %49, %53 : vector<88x128xf32>
    %c18 = arith.constant 18 : index
    %c0_44 = arith.constant 0 : index
    %55 = vector.load %arg10[%c18, %c0_44] : memref<112x32xf32, #tpu.memory_space<vmem>>, vector<88x32xf32>
    %c8_45 = arith.constant 8 : index
    %c0_46 = arith.constant 0 : index
    %c0_47 = arith.constant 0 : index
    %56 = vector.load %arg3[%c8_45, %c0_46, %c0_47] : memref<9x32x128xf32, #tpu.memory_space<vmem>>, vector<1x32x128xf32>
    %57 = vector.shape_cast %56 : vector<1x32x128xf32> to vector<32x128xf32>
    %cst_48 = arith.constant dense<0.000000e+00> : vector<88x128xf32>
    %58 = tpu.matmul %55, %57, %cst_48 {dimension_numbers = #tpu.dot_dimension_numbers<[1], [0], [0], [1], [0, 0, 1, 1], [], []>} : vector<88x32xf32>, vector<32x128xf32>, vector<88x128xf32> -> vector<88x128xf32>
    %59 = arith.addf %54, %58 : vector<88x128xf32>
    %c0_49 = arith.constant 0 : index
    %c0_50 = arith.constant 0 : index
    %60 = vector.load %arg4[%c0_49, %c0_50] : memref<1x128xf32, #tpu.memory_space<vmem>>, vector<1x128xf32>
    %61 = vector.broadcast %60 : vector<1x128xf32> to vector<88x128xf32>
    %62 = arith.addf %59, %61 : vector<88x128xf32>
    %cst_51 = arith.constant 0.000000e+00 : f32
    %63 = vector.broadcast %cst_51 : f32 to vector<88x128xf32>
    %64 = arith.maximumf %62, %63 : vector<88x128xf32>
    %c0_52 = arith.constant 0 : index
    %c0_53 = arith.constant 0 : index
    %65 = vector.load %arg11[%c0_52, %c0_53] : memref<88x128xf32, #tpu.memory_space<vmem>>, vector<88x128xf32>
    tpu.vector_store %arg11[%c0_52, %c0_53], %64 {strides = array<i32>} : memref<88x128xf32, #tpu.memory_space<vmem>>, vector<88x128xf32>,
    %c0_54 = arith.constant 0 : index
    %c0_55 = arith.constant 0 : index
    %66 = vector.load %arg11[%c0_54, %c0_55] : memref<88x128xf32, #tpu.memory_space<vmem>>, vector<4x128xf32>
    %c8_56 = arith.constant 8 : index
    %c0_57 = arith.constant 0 : index
    %67 = vector.load %arg11[%c8_56, %c0_57] : memref<88x128xf32, #tpu.memory_space<vmem>>, vector<4x128xf32>
    %68 = arith.maximumf %66, %67 : vector<4x128xf32>
    %69 = vector.extract_strided_slice %68 {offsets = [0, 0], sizes = [1, 128], strides = [1, 1]} : vector<4x128xf32> to vector<1x128xf32>
    %70 = vector.extract_strided_slice %68 {offsets = [1, 0], sizes = [1, 128], strides = [1, 1]} : vector<4x128xf32> to vector<1x128xf32>
    %71 = arith.maximumf %69, %70 : vector<1x128xf32>
    %c0_58 = arith.constant 0 : index
    %c0_59 = arith.constant 0 : index
    %72 = vector.load %arg12[%c0_58, %c0_59] : memref<2x512xf32, #tpu.memory_space<vmem>>, vector<1x128xf32>
    tpu.vector_store %arg12[%c0_58, %c0_59], %71 {strides = array<i32>} : memref<2x512xf32, #tpu.memory_space<vmem>>, vector<1x128xf32>,
    %73 = vector.extract_strided_slice %68 {offsets = [2, 0], sizes = [1, 128], strides = [1, 1]} : vector<4x128xf32> to vector<1x128xf32>
    %74 = vector.extract_strided_slice %68 {offsets = [3, 0], sizes = [1, 128], strides = [1, 1]} : vector<4x128xf32> to vector<1x128xf32>
    %75 = arith.maximumf %73, %74 : vector<1x128xf32>
    %c0_60 = arith.constant 0 : index
    %c128 = arith.constant 128 : index
    %76 = vector.load %arg12[%c0_60, %c128] : memref<2x512xf32, #tpu.memory_space<vmem>>, vector<1x128xf32>
    tpu.vector_store %arg12[%c0_60, %c128], %75 {strides = array<i32>} : memref<2x512xf32, #tpu.memory_space<vmem>>, vector<1x128xf32>,
    %c16_61 = arith.constant 16 : index
    %c0_62 = arith.constant 0 : index
    %77 = vector.load %arg11[%c16_61, %c0_62] : memref<88x128xf32, #tpu.memory_space<vmem>>, vector<4x128xf32>
    %c24 = arith.constant 24 : index
    %c0_63 = arith.constant 0 : index
    %78 = vector.load %arg11[%c24, %c0_63] : memref<88x128xf32, #tpu.memory_space<vmem>>, vector<4x128xf32>
    %79 = arith.maximumf %77, %78 : vector<4x128xf32>
    %80 = vector.extract_strided_slice %79 {offsets = [0, 0], sizes = [1, 128], strides = [1, 1]} : vector<4x128xf32> to vector<1x128xf32>
    %81 = vector.extract_strided_slice %79 {offsets = [1, 0], sizes = [1, 128], strides = [1, 1]} : vector<4x128xf32> to vector<1x128xf32>
    %82 = arith.maximumf %80, %81 : vector<1x128xf32>
    %c0_64 = arith.constant 0 : index
    %c256 = arith.constant 256 : index
    %83 = vector.load %arg12[%c0_64, %c256] : memref<2x512xf32, #tpu.memory_space<vmem>>, vector<1x128xf32>
    tpu.vector_store %arg12[%c0_64, %c256], %82 {strides = array<i32>} : memref<2x512xf32, #tpu.memory_space<vmem>>, vector<1x128xf32>,
    %84 = vector.extract_strided_slice %79 {offsets = [2, 0], sizes = [1, 128], strides = [1, 1]} : vector<4x128xf32> to vector<1x128xf32>
    %85 = vector.extract_strided_slice %79 {offsets = [3, 0], sizes = [1, 128], strides = [1, 1]} : vector<4x128xf32> to vector<1x128xf32>
    %86 = arith.maximumf %84, %85 : vector<1x128xf32>
    %c0_65 = arith.constant 0 : index
    %c384 = arith.constant 384 : index
    %87 = vector.load %arg12[%c0_65, %c384] : memref<2x512xf32, #tpu.memory_space<vmem>>, vector<1x128xf32>
    tpu.vector_store %arg12[%c0_65, %c384], %86 {strides = array<i32>} : memref<2x512xf32, #tpu.memory_space<vmem>>, vector<1x128xf32>,
    %c56 = arith.constant 56 : index
    %c0_66 = arith.constant 0 : index
    %88 = vector.load %arg11[%c56, %c0_66] : memref<88x128xf32, #tpu.memory_space<vmem>>, vector<4x128xf32>
    %c64 = arith.constant 64 : index
    %c0_67 = arith.constant 0 : index
    %89 = vector.load %arg11[%c64, %c0_67] : memref<88x128xf32, #tpu.memory_space<vmem>>, vector<4x128xf32>
    %90 = arith.maximumf %88, %89 : vector<4x128xf32>
    %91 = vector.extract_strided_slice %90 {offsets = [0, 0], sizes = [1, 128], strides = [1, 1]} : vector<4x128xf32> to vector<1x128xf32>
    %92 = vector.extract_strided_slice %90 {offsets = [1, 0], sizes = [1, 128], strides = [1, 1]} : vector<4x128xf32> to vector<1x128xf32>
    %93 = arith.maximumf %91, %92 : vector<1x128xf32>
    %c1_68 = arith.constant 1 : index
    %c0_69 = arith.constant 0 : index
    %94 = vector.load %arg12[%c1_68, %c0_69] : memref<2x512xf32, #tpu.memory_space<vmem>>, vector<1x128xf32>
    tpu.vector_store %arg12[%c1_68, %c0_69], %93 {strides = array<i32>} : memref<2x512xf32, #tpu.memory_space<vmem>>, vector<1x128xf32>,
    %95 = vector.extract_strided_slice %90 {offsets = [2, 0], sizes = [1, 128], strides = [1, 1]} : vector<4x128xf32> to vector<1x128xf32>
    %96 = vector.extract_strided_slice %90 {offsets = [3, 0], sizes = [1, 128], strides = [1, 1]} : vector<4x128xf32> to vector<1x128xf32>
    %97 = arith.maximumf %95, %96 : vector<1x128xf32>
    %c1_70 = arith.constant 1 : index
    %c128_71 = arith.constant 128 : index
    %98 = vector.load %arg12[%c1_70, %c128_71] : memref<2x512xf32, #tpu.memory_space<vmem>>, vector<1x128xf32>
    tpu.vector_store %arg12[%c1_70, %c128_71], %97 {strides = array<i32>} : memref<2x512xf32, #tpu.memory_space<vmem>>, vector<1x128xf32>,
    %c72 = arith.constant 72 : index
    %c0_72 = arith.constant 0 : index
    %99 = vector.load %arg11[%c72, %c0_72] : memref<88x128xf32, #tpu.memory_space<vmem>>, vector<4x128xf32>
    %c80 = arith.constant 80 : index
    %c0_73 = arith.constant 0 : index
    %100 = vector.load %arg11[%c80, %c0_73] : memref<88x128xf32, #tpu.memory_space<vmem>>, vector<4x128xf32>
    %101 = arith.maximumf %99, %100 : vector<4x128xf32>
    %102 = vector.extract_strided_slice %101 {offsets = [0, 0], sizes = [1, 128], strides = [1, 1]} : vector<4x128xf32> to vector<1x128xf32>
    %103 = vector.extract_strided_slice %101 {offsets = [1, 0], sizes = [1, 128], strides = [1, 1]} : vector<4x128xf32> to vector<1x128xf32>
    %104 = arith.maximumf %102, %103 : vector<1x128xf32>
    %c1_74 = arith.constant 1 : index
    %c256_75 = arith.constant 256 : index
    %105 = vector.load %arg12[%c1_74, %c256_75] : memref<2x512xf32, #tpu.memory_space<vmem>>, vector<1x128xf32>
    tpu.vector_store %arg12[%c1_74, %c256_75], %104 {strides = array<i32>} : memref<2x512xf32, #tpu.memory_space<vmem>>, vector<1x128xf32>,
    %106 = vector.extract_strided_slice %101 {offsets = [2, 0], sizes = [1, 128], strides = [1, 1]} : vector<4x128xf32> to vector<1x128xf32>
    %107 = vector.extract_strided_slice %101 {offsets = [3, 0], sizes = [1, 128], strides = [1, 1]} : vector<4x128xf32> to vector<1x128xf32>
    %108 = arith.maximumf %106, %107 : vector<1x128xf32>
    %c1_76 = arith.constant 1 : index
    %c384_77 = arith.constant 384 : index
    %109 = vector.load %arg12[%c1_76, %c384_77] : memref<2x512xf32, #tpu.memory_space<vmem>>, vector<1x128xf32>
    tpu.vector_store %arg12[%c1_76, %c384_77], %108 {strides = array<i32>} : memref<2x512xf32, #tpu.memory_space<vmem>>, vector<1x128xf32>,
    %c0_78 = arith.constant 0 : index
    %c0_79 = arith.constant 0 : index
    %110 = vector.load %arg12[%c0_78, %c0_79] : memref<2x512xf32, #tpu.memory_space<vmem>>, vector<2x512xf32>
    %c0_80 = arith.constant 0 : index
    %c0_81 = arith.constant 0 : index
    %111 = vector.load %arg5[%c0_80, %c0_81] : memref<512x256xf32, #tpu.memory_space<vmem>>, vector<512x256xf32>
    %cst_82 = arith.constant dense<0.000000e+00> : vector<2x256xf32>
    %112 = tpu.matmul %110, %111, %cst_82 {dimension_numbers = #tpu.dot_dimension_numbers<[1], [0], [0], [1], [0, 0, 1, 1], [], []>} : vector<2x512xf32>, vector<512x256xf32>, vector<2x256xf32> -> vector<2x256xf32>
    %c0_83 = arith.constant 0 : index
    %c0_84 = arith.constant 0 : index
    %113 = vector.load %arg6[%c0_83, %c0_84] : memref<1x256xf32, #tpu.memory_space<vmem>>, vector<1x256xf32>
    %114 = vector.broadcast %113 : vector<1x256xf32> to vector<2x256xf32>
    %115 = arith.addf %112, %114 : vector<2x256xf32>
    %cst_85 = arith.constant 0.000000e+00 : f32
    %116 = vector.broadcast %cst_85 : f32 to vector<2x256xf32>
    %117 = arith.maximumf %115, %116 : vector<2x256xf32>
    %c0_86 = arith.constant 0 : index
    %c0_87 = arith.constant 0 : index
    %118 = vector.load %arg7[%c0_86, %c0_87] : memref<256x128xf32, #tpu.memory_space<vmem>>, vector<256x128xf32>
    %cst_88 = arith.constant dense<0.000000e+00> : vector<2x128xf32>
    %119 = tpu.matmul %117, %118, %cst_88 {dimension_numbers = #tpu.dot_dimension_numbers<[1], [0], [0], [1], [0, 0, 1, 1], [], []>} : vector<2x256xf32>, vector<256x128xf32>, vector<2x128xf32> -> vector<2x128xf32>
    %c0_89 = arith.constant 0 : index
    %c0_90 = arith.constant 0 : index
    %120 = vector.load %arg8[%c0_89, %c0_90] : memref<1x128xf32, #tpu.memory_space<vmem>>, vector<1x128xf32>
    %121 = vector.broadcast %120 : vector<1x128xf32> to vector<2x128xf32>
    %122 = arith.addf %119, %121 : vector<2x128xf32>
    %c0_91 = arith.constant 0 : index
    %c0_92 = arith.constant 0 : index
    %123 = vector.load %arg9[%c0_91, %c0_92] : memref<2x128xf32, #tpu.memory_space<vmem>>, vector<2x128xf32>
    tpu.vector_store %arg9[%c0_91, %c0_92], %122 {strides = array<i32>} : memref<2x128xf32, #tpu.memory_space<vmem>>, vector<2x128xf32>,
    return
  }
}

</mosaic_0001>

<llo_original>
// kernel: agent_nn_forward.1
$region0: #{agent_nn_forward.1}
  #allocation0 [shape = 'u32[]', space=smem, size = 0x4, offset = 0x4, fixed_abs, tag = 'smem constant byte address 0x4 - core index']
  #allocation1 [shape = 'u32[144,128]{1,0:T(1,128)}', space=vmem, size = 0x12000, scoped, tag = 'internal scratch']
  #allocation2 [shape = 'f32[112,32]{1,0:T(8,128)}', space=vmem, size = 0xe000, scoped, tag = 'scratch operand']
  #allocation3 [shape = 'f32[88,128]{1,0:T(8,128)}', space=vmem, size = 0xb000, scoped, tag = 'scratch operand']
  #allocation4 [shape = 'f32[2,512]{1,0:T(2,128)}', space=vmem, size = 0x1000, scoped, tag = 'scratch operand']
  %s0 = inlined_call_operand.vmem [shape: f32[448,128], index: 0, kind: input, shape index: {}]
  %s1 = inlined_call_operand.vmem [shape: f32[128,32], index: 1, kind: input, shape index: {}]
  %s2 = inlined_call_operand.vmem [shape: f32[1,32], index: 2, kind: input, shape index: {}]
  %s3 = inlined_call_operand.vmem [shape: f32[9,32,128], index: 3, kind: input, shape index: {}]
  %s4 = inlined_call_operand.vmem [shape: f32[1,128], index: 4, kind: input, shape index: {}]
  %s5 = inlined_call_operand.vmem [shape: f32[512,256], index: 5, kind: input, shape index: {}]
  %s6 = inlined_call_operand.vmem [shape: f32[1,256], index: 6, kind: input, shape index: {}]
  %s7 = inlined_call_operand.vmem [shape: f32[256,128], index: 7, kind: input, shape index: {}]
  %s8 = inlined_call_operand.vmem [shape: f32[1,128], index: 8, kind: input, shape index: {}]
  %s9 = inlined_call_operand.hbm [shape: f32[2,128], index: 9, kind: output, shape index: {}]
  %s10 = sld [smem:[#allocation0]]
  $region46: #{agent_nn_forward.1} parent=0
    _
  %s12 = ssub.s32 1, %s10
  %s13 = scalar_select 0, %s12, %s10
  $region1: #{agent_nn_forward.1} parent=0
    #allocation5 [shape = 'u8[1024]{0}', space=vmem, size = 0x400, scoped, tag = 'output window, operand 0, single buffered']
    #allocation6 [shape = 's32[1]{0}', space=sflag, size = 0x4, scoped, tag = 'scoped memory for agent_nn_forward.1']
    %14 = vsyncpa [#allocation6], 0
    // Predicated region
    $region2: #{agent_nn_forward.1} parent=1 // pred_check
      _
    $region3: #{agent_nn_forward.1} parent=1 // pred_check_branch
      %16 = sbr.rel (0) target = $region5
    $region4: #{agent_nn_forward.1} parent=1 // pred_region
      _
    $region5: #{agent_nn_forward.1} parent=1 // pred_fallthru
      _
    // Predicated region
    $region6: #{agent_nn_forward.1} parent=1 // pred_check
      _
    $region7: #{agent_nn_forward.1} parent=1 // pred_check_branch
      %18 = sbr.rel (0) target = $region9
    $region8: #{agent_nn_forward.1} parent=1 // pred_region
      _
    $region9: #{agent_nn_forward.1} parent=1 // pred_fallthru
      _
    // Predicated region
    $region10: #{agent_nn_forward.1} parent=1 // pred_check
      _
    $region11: #{agent_nn_forward.1} parent=1 // pred_check_branch
      %20 = sbr.rel (0) target = $region13
    $region12: #{agent_nn_forward.1} parent=1 // pred_region
      _
    $region13: #{agent_nn_forward.1} parent=1 // pred_fallthru
      _
    // Predicated region
    $region14: #{agent_nn_forward.1} parent=1 // pred_check
      _
    $region15: #{agent_nn_forward.1} parent=1 // pred_check_branch
      %22 = sbr.rel (0) target = $region17
    $region16: #{agent_nn_forward.1} parent=1 // pred_region
      _
    $region17: #{agent_nn_forward.1} parent=1 // pred_fallthru
      _
    // Predicated region
    $region18: #{agent_nn_forward.1} parent=1 // pred_check
      _
    $region19: #{agent_nn_forward.1} parent=1 // pred_check_branch
      %24 = sbr.rel (0) target = $region21
    $region20: #{agent_nn_forward.1} parent=1 // pred_region
      _
    $region21: #{agent_nn_forward.1} parent=1 // pred_fallthru
      _
    // Predicated region
    $region22: #{agent_nn_forward.1} parent=1 // pred_check
      _
    $region23: #{agent_nn_forward.1} parent=1 // pred_check_branch
      %26 = sbr.rel (0) target = $region25
    $region24: #{agent_nn_forward.1} parent=1 // pred_region
      _
    $region25: #{agent_nn_forward.1} parent=1 // pred_fallthru
      _
    // Predicated region
    $region26: #{agent_nn_forward.1} parent=1 // pred_check
      _
    $region27: #{agent_nn_forward.1} parent=1 // pred_check_branch
      %28 = sbr.rel (0) target = $region29
    $region28: #{agent_nn_forward.1} parent=1 // pred_region
      _
    $region29: #{agent_nn_forward.1} parent=1 // pred_fallthru
      _
    // Predicated region
    $region30: #{agent_nn_forward.1} parent=1 // pred_check
      _
    $region31: #{agent_nn_forward.1} parent=1 // pred_check_branch
      %30 = sbr.rel (0) target = $region33
    $region32: #{agent_nn_forward.1} parent=1 // pred_region
      _
    $region33: #{agent_nn_forward.1} parent=1 // pred_fallthru
      _
    // Predicated region
    $region34: #{agent_nn_forward.1} parent=1 // pred_check
      _
    $region35: #{agent_nn_forward.1} parent=1 // pred_check_branch
      %32 = sbr.rel (0) target = $region37
    $region36: #{agent_nn_forward.1} parent=1 // pred_region
      _
    $region37: #{agent_nn_forward.1} parent=1 // pred_fallthru
      _
    %v33 = vld [vmem:[%s0] sm:$0xff]
    %v34 = vld [vmem:[%s0 + $0x8] sm:$0xff]
    %v35 = vld [vmem:[%s0 + $0x10] sm:$0xff]
    %v36 = vld [vmem:[%s0 + $0x18] sm:$0xff]
    %v37 = vld [vmem:[%s0 + $0x20] sm:$0xff]
    %v38 = vld [vmem:[%s0 + $0x28] sm:$0xff]
    %v39 = vld [vmem:[%s0 + $0x30] sm:$0xff]
    %v40 = vld [vmem:[%s0 + $0x38] sm:$0xff]
    %v41 = vld [vmem:[%s0 + $0x40] sm:$0xff]
    %v42 = vld [vmem:[%s0 + $0x48] sm:$0xff]
    %v43 = vld [vmem:[%s0 + $0x50] sm:$0xff]
    %v44 = vld [vmem:[%s0 + $0x58] sm:$0xff]
    %v45 = vld [vmem:[%s0 + $0x60] sm:$0xff]
    %v46 = vld [vmem:[%s0 + $0x68] sm:$0xff]
    %v47 = vld [vmem:[%s0 + $0x70] sm:$0xff]
    %v48 = vld [vmem:[%s0 + $0x78] sm:$0xff]
    %v49 = vld [vmem:[%s0 + $0x80] sm:$0xff]
    %v50 = vld [vmem:[%s0 + $0x88] sm:$0xff]
    %v51 = vld [vmem:[%s0 + $0x90] sm:$0xff]
    %v52 = vld [vmem:[%s0 + $0x98] sm:$0xff]
    %v53 = vld [vmem:[%s0 + $0xa0] sm:$0xff]
    %v54 = vld [vmem:[%s0 + $0xa8] sm:$0xff]
    %v55 = vld [vmem:[%s0 + $0xb0] sm:$0xff]
    %v56 = vld [vmem:[%s0 + $0xb8] sm:$0xff]
    %v57 = vld [vmem:[%s0 + $0xc0] sm:$0xff]
    %v58 = vld [vmem:[%s0 + $0xc8] sm:$0xff]
    %v59 = vld [vmem:[%s0 + $0xd0] sm:$0xff]
    %v60 = vld [vmem:[%s0 + $0xd8] sm:$0xff]
    %v61 = vld [vmem:[%s0 + $0xe0] sm:$0xff]
    %v62 = vld [vmem:[%s0 + $0xe8] sm:$0xff]
    %v63 = vld [vmem:[%s0 + $0xf0] sm:$0xff]
    %v64 = vld [vmem:[%s0 + $0xf8] sm:$0xff]
    %v65 = vld [vmem:[%s0 + $0x100] sm:$0xff]
    %v66 = vld [vmem:[%s0 + $0x108] sm:$0xff]
    %v67 = vld [vmem:[%s0 + $0x110] sm:$0xff]
    %v68 = vld [vmem:[%s0 + $0x118] sm:$0xff]
    %v69 = vld [vmem:[%s0 + $0x120] sm:$0xff]
    %v70 = vld [vmem:[%s0 + $0x128] sm:$0xff]
    %v71 = vld [vmem:[%s0 + $0x130] sm:$0xff]
    %v72 = vld [vmem:[%s0 + $0x138] sm:$0xff]
    %v73 = vld [vmem:[%s0 + $0x140] sm:$0xff]
    %v74 = vld [vmem:[%s0 + $0x148] sm:$0xff]
    %v75 = vld [vmem:[%s0 + $0x150] sm:$0xff]
    %v76 = vld [vmem:[%s0 + $0x158] sm:$0xff]
    %v77 = vld [vmem:[%s0 + $0x160] sm:$0xff]
    %v78 = vld [vmem:[%s0 + $0x168] sm:$0xff]
    %v79 = vld [vmem:[%s0 + $0x170] sm:$0xff]
    %v80 = vld [vmem:[%s0 + $0x178] sm:$0xff]
    %v81 = vld [vmem:[%s0 + $0x180] sm:$0xff]
    %v82 = vld [vmem:[%s0 + $0x188] sm:$0xff]
    %v83 = vld [vmem:[%s0 + $0x190] sm:$0xff]
    %v84 = vld [vmem:[%s0 + $0x198] sm:$0xff]
    %v85 = vld [vmem:[%s0 + $0x1a0] sm:$0xff]
    %v86 = vld [vmem:[%s0 + $0x1a8] sm:$0xff]
    %v87 = vld [vmem:[%s0 + $0x1b0] sm:$0xff]
    %v88 = vld [vmem:[%s0 + $0x1b8] sm:$0xff]
    %v89 = vld [vmem:[%s1] sm:$0xff]
    %v90 = vld [vmem:[%s1 + $0x8] sm:$0xff]
    %v91 = vld [vmem:[%s1 + $0x10] sm:$0xff]
    %v92 = vld [vmem:[%s1 + $0x18] sm:$0xff]
    %v93 = vld [vmem:[%s1 + $0x20] sm:$0xff]
    %v94 = vld [vmem:[%s1 + $0x28] sm:$0xff]
    %v95 = vld [vmem:[%s1 + $0x30] sm:$0xff]
    %v96 = vld [vmem:[%s1 + $0x38] sm:$0xff]
    %v97 = vld [vmem:[%s1 + $0x40] sm:$0xff]
    %v98 = vld [vmem:[%s1 + $0x48] sm:$0xff]
    %v99 = vld [vmem:[%s1 + $0x50] sm:$0xff]
    %v100 = vld [vmem:[%s1 + $0x58] sm:$0xff]
    %v101 = vld [vmem:[%s1 + $0x60] sm:$0xff]
    %v102 = vld [vmem:[%s1 + $0x68] sm:$0xff]
    %v103 = vld [vmem:[%s1 + $0x70] sm:$0xff]
    %v104 = vld [vmem:[%s1 + $0x78] sm:$0xff]
    %105 = vmatprep.subr.mxu0 0.0
    %106 = vmatpush1.msra.mxu0 %v89
    %107 = vmatprep.subr.mxu0 0.0
    %108 = vmatpush1.msra.mxu0 %v90
    %109 = vmatprep.subr.mxu0 0.0
    %110 = vmatpush1.msra.mxu0 %v91
    %111 = vmatprep.subr.mxu0 0.0
    %112 = vmatpush1.msra.mxu0 %v92
    %113 = vmatprep.subr.mxu0 0.0
    %114 = vmatpush1.msra.mxu0 %v93
    %115 = vmatprep.subr.mxu0 0.0
    %116 = vmatpush1.msra.mxu0 %v94
    %117 = vmatprep.subr.mxu0 0.0
    %118 = vmatpush1.msra.mxu0 %v95
    %119 = vmatprep.subr.mxu0 0.0
    %120 = vmatpush1.msra.mxu0 %v96
    %121 = vmatprep.subr.mxu0 0.0
    %122 = vmatpush1.msra.mxu0 %v97
    %123 = vmatprep.subr.mxu0 0.0
    %124 = vmatpush1.msra.mxu0 %v98
    %125 = vmatprep.subr.mxu0 0.0
    %126 = vmatpush1.msra.mxu0 %v99
    %127 = vmatprep.subr.mxu0 0.0
    %128 = vmatpush1.msra.mxu0 %v100
    %129 = vmatprep.subr.mxu0 0.0
    %130 = vmatpush1.msra.mxu0 %v101
    %131 = vmatprep.subr.mxu0 0.0
    %132 = vmatpush1.msra.mxu0 %v102
    %133 = vmatprep.subr.mxu0 0.0
    %134 = vmatpush1.msra.mxu0 %v103
    %135 = vmatprep.subr.mxu0 0.0
    %136 = vmatpush1.msra.mxu0 %v104
    %137 = vmatprep.subr.mxu0 0.0
    %138 = vmatpush1.msra.mxu0 0.0
    %139 = vmatprep.subr.mxu0 0.0
    %140 = vmatpush1.msra.mxu0 0.0
    %141 = vmatprep.subr.mxu0 0.0
    %142 = vmatpush1.msra.mxu0 0.0
    %143 = vmatprep.subr.mxu0 0.0
    %144 = vmatpush1.msra.mxu0 0.0
    %145 = vmatprep.subr.mxu0 0.0
    %146 = vmatpush1.msra.mxu0 0.0
    %147 = vmatprep.subr.mxu0 0.0
    %148 = vmatpush1.msra.mxu0 0.0
    %149 = vmatprep.subr.mxu0 0.0
    %150 = vmatpush1.msra.mxu0 0.0
    %151 = vmatprep.subr.mxu0 0.0
    %152 = vmatpush1.msra.mxu0 0.0
    %153 = vmatprep.subr.mxu0 0.0
    %154 = vmatpush1.msra.mxu0 0.0
    %155 = vmatprep.subr.mxu0 0.0
    %156 = vmatpush1.msra.mxu0 0.0
    %157 = vmatprep.subr.mxu0 0.0
    %158 = vmatpush1.msra.mxu0 0.0
    %159 = vmatprep.subr.mxu0 0.0
    %160 = vmatpush1.msra.mxu0 0.0
    %161 = vmatprep.subr.mxu0 0.0
    %162 = vmatpush1.msra.mxu0 0.0
    %163 = vmatprep.subr.mxu0 0.0
    %164 = vmatpush1.msra.mxu0 0.0
    %165 = vmatprep.subr.mxu0 0.0
    %166 = vmatpush1.msra.mxu0 0.0
    %167 = vmatprep.subr.mxu0 0.0
    %168 = vmatpush1.msra.mxu0 0.0
    %169 = vmatprep.mubr.f32.mxu0 0.0
    %170 = vmatmul.mubr.f32.gmra.mrb[0].mxu0 %v33
    %v171 = vpop.f32.mrb[0].mxu0
    %v172 = vadd.f32 0.0, %v171
    %v173 = vpop.f32.mrb[0].mxu0
    %174 = vmatprep.mubr.f32.mxu0 0.0
    %175 = vmatmul.mubr.f32.gmra.mrb[0].mxu0 %v34
    %v176 = vpop.f32.mrb[0].mxu0
    %v177 = vadd.f32 0.0, %v176
    %v178 = vpop.f32.mrb[0].mxu0
    %179 = vmatprep.mubr.f32.mxu0 0.0
    %180 = vmatmul.mubr.f32.gmra.mrb[0].mxu0 %v35
    %v181 = vpop.f32.mrb[0].mxu0
    %v182 = vadd.f32 0.0, %v181
    %v183 = vpop.f32.mrb[0].mxu0
    %184 = vmatprep.mubr.f32.mxu0 0.0
    %185 = vmatmul.mubr.f32.gmra.mrb[0].mxu0 %v36
    %v186 = vpop.f32.mrb[0].mxu0
    %v187 = vadd.f32 0.0, %v186
    %v188 = vpop.f32.mrb[0].mxu0
    %189 = vmatprep.mubr.f32.mxu0 0.0
    %190 = vmatmul.mubr.f32.gmra.mrb[0].mxu0 %v37
    %v191 = vpop.f32.mrb[0].mxu0
    %v192 = vadd.f32 0.0, %v191
    %v193 = vpop.f32.mrb[0].mxu0
    %194 = vmatprep.mubr.f32.mxu0 0.0
    %195 = vmatmul.mubr.f32.gmra.mrb[0].mxu0 %v38
    %v196 = vpop.f32.mrb[0].mxu0
    %v197 = vadd.f32 0.0, %v196
    %v198 = vpop.f32.mrb[0].mxu0
    %199 = vmatprep.mubr.f32.mxu0 0.0
    %200 = vmatmul.mubr.f32.gmra.mrb[0].mxu0 %v39
    %v201 = vpop.f32.mrb[0].mxu0
    %v202 = vadd.f32 0.0, %v201
    %v203 = vpop.f32.mrb[0].mxu0
    %204 = vmatprep.mubr.f32.mxu0 0.0
    %205 = vmatmul.mubr.f32.gmra.mrb[0].mxu0 %v40
    %v206 = vpop.f32.mrb[0].mxu0
    %v207 = vadd.f32 0.0, %v206
    %v208 = vpop.f32.mrb[0].mxu0
    %209 = vmatprep.mubr.f32.mxu0 0.0
    %210 = vmatmul.mubr.f32.gmra.mrb[0].mxu0 %v41
    %v211 = vpop.f32.mrb[0].mxu0
    %v212 = vadd.f32 0.0, %v211
    %v213 = vpop.f32.mrb[0].mxu0
    %214 = vmatprep.mubr.f32.mxu0 0.0
    %215 = vmatmul.mubr.f32.gmra.mrb[0].mxu0 %v42
    %v216 = vpop.f32.mrb[0].mxu0
    %v217 = vadd.f32 0.0, %v216
    %v218 = vpop.f32.mrb[0].mxu0
    %219 = vmatprep.mubr.f32.mxu0 0.0
    %220 = vmatmul.mubr.f32.gmra.mrb[0].mxu0 %v43
    %v221 = vpop.f32.mrb[0].mxu0
    %v222 = vadd.f32 0.0, %v221
    %v223 = vpop.f32.mrb[0].mxu0
    %224 = vmatprep.mubr.f32.mxu0 0.0
    %225 = vmatmul.mubr.f32.gmra.mrb[0].mxu0 %v44
    %v226 = vpop.f32.mrb[0].mxu0
    %v227 = vadd.f32 0.0, %v226
    %v228 = vpop.f32.mrb[0].mxu0
    %229 = vmatprep.mubr.f32.mxu0 0.0
    %230 = vmatmul.mubr.f32.gmra.mrb[0].mxu0 %v45
    %v231 = vpop.f32.mrb[0].mxu0
    %v232 = vadd.f32 0.0, %v231
    %v233 = vpop.f32.mrb[0].mxu0
    %234 = vmatprep.mubr.f32.mxu0 0.0
    %235 = vmatmul.mubr.f32.gmra.mrb[0].mxu0 %v46
    %v236 = vpop.f32.mrb[0].mxu0
    %v237 = vadd.f32 0.0, %v236
    %v238 = vpop.f32.mrb[0].mxu0
    %239 = vmatprep.mubr.f32.mxu0 0.0
    %240 = vmatmul.mubr.f32.gmra.mrb[0].mxu0 %v47
    %v241 = vpop.f32.mrb[0].mxu0
    %v242 = vadd.f32 0.0, %v241
    %v243 = vpop.f32.mrb[0].mxu0
    %244 = vmatprep.mubr.f32.mxu0 0.0
    %245 = vmatmul.mubr.f32.gmra.mrb[0].mxu0 %v48
    %v246 = vpop.f32.mrb[0].mxu0
    %v247 = vadd.f32 0.0, %v246
    %v248 = vpop.f32.mrb[0].mxu0
    %249 = vmatprep.mubr.f32.mxu0 0.0
    %250 = vmatmul.mubr.f32.gmra.mrb[0].mxu0 %v49
    %v251 = vpop.f32.mrb[0].mxu0
    %v252 = vadd.f32 0.0, %v251
    %v253 = vpop.f32.mrb[0].mxu0
    %254 = vmatprep.mubr.f32.mxu0 0.0
    %255 = vmatmul.mubr.f32.gmra.mrb[0].mxu0 %v50
    %v256 = vpop.f32.mrb[0].mxu0
    %v257 = vadd.f32 0.0, %v256
    %v258 = vpop.f32.mrb[0].mxu0
    %259 = vmatprep.mubr.f32.mxu0 0.0
    %260 = vmatmul.mubr.f32.gmra.mrb[0].mxu0 %v51
    %v261 = vpop.f32.mrb[0].mxu0
    %v262 = vadd.f32 0.0, %v261
    %v263 = vpop.f32.mrb[0].mxu0
    %264 = vmatprep.mubr.f32.mxu0 0.0
    %265 = vmatmul.mubr.f32.gmra.mrb[0].mxu0 %v52
    %v266 = vpop.f32.mrb[0].mxu0
    %v267 = vadd.f32 0.0, %v266
    %v268 = vpop.f32.mrb[0].mxu0
    %269 = vmatprep.mubr.f32.mxu0 0.0
    %270 = vmatmul.mubr.f32.gmra.mrb[0].mxu0 %v53
    %v271 = vpop.f32.mrb[0].mxu0
    %v272 = vadd.f32 0.0, %v271
    %v273 = vpop.f32.mrb[0].mxu0
    %274 = vmatprep.mubr.f32.mxu0 0.0
    %275 = vmatmul.mubr.f32.gmra.mrb[0].mxu0 %v54
    %v276 = vpop.f32.mrb[0].mxu0
    %v277 = vadd.f32 0.0, %v276
    %v278 = vpop.f32.mrb[0].mxu0
    %279 = vmatprep.mubr.f32.mxu0 0.0
    %280 = vmatmul.mubr.f32.gmra.mrb[0].mxu0 %v55
    %v281 = vpop.f32.mrb[0].mxu0
    %v282 = vadd.f32 0.0, %v281
    %v283 = vpop.f32.mrb[0].mxu0
    %284 = vmatprep.mubr.f32.mxu0 0.0
    %285 = vmatmul.mubr.f32.gmra.mrb[0].mxu0 %v56
    %v286 = vpop.f32.mrb[0].mxu0
    %v287 = vadd.f32 0.0, %v286
    %v288 = vpop.f32.mrb[0].mxu0
    %289 = vmatprep.mubr.f32.mxu0 0.0
    %290 = vmatmul.mubr.f32.gmra.mrb[0].mxu0 %v57
    %v291 = vpop.f32.mrb[0].mxu0
    %v292 = vadd.f32 0.0, %v291
    %v293 = vpop.f32.mrb[0].mxu0
    %294 = vmatprep.mubr.f32.mxu0 0.0
    %295 = vmatmul.mubr.f32.gmra.mrb[0].mxu0 %v58
    %v296 = vpop.f32.mrb[0].mxu0
    %v297 = vadd.f32 0.0, %v296
    %v298 = vpop.f32.mrb[0].mxu0
    %299 = vmatprep.mubr.f32.mxu0 0.0
    %300 = vmatmul.mubr.f32.gmra.mrb[0].mxu0 %v59
    %v301 = vpop.f32.mrb[0].mxu0
    %v302 = vadd.f32 0.0, %v301
    %v303 = vpop.f32.mrb[0].mxu0
    %304 = vmatprep.mubr.f32.mxu0 0.0
    %305 = vmatmul.mubr.f32.gmra.mrb[0].mxu0 %v60
    %v306 = vpop.f32.mrb[0].mxu0
    %v307 = vadd.f32 0.0, %v306
    %v308 = vpop.f32.mrb[0].mxu0
    %309 = vmatprep.mubr.f32.mxu0 0.0
    %310 = vmatmul.mubr.f32.gmra.mrb[0].mxu0 %v61
    %v311 = vpop.f32.mrb[0].mxu0
    %v312 = vadd.f32 0.0, %v311
    %v313 = vpop.f32.mrb[0].mxu0
    %314 = vmatprep.mubr.f32.mxu0 0.0
    %315 = vmatmul.mubr.f32.gmra.mrb[0].mxu0 %v62
    %v316 = vpop.f32.mrb[0].mxu0
    %v317 = vadd.f32 0.0, %v316
    %v318 = vpop.f32.mrb[0].mxu0
    %319 = vmatprep.mubr.f32.mxu0 0.0
    %320 = vmatmul.mubr.f32.gmra.mrb[0].mxu0 %v63
    %v321 = vpop.f32.mrb[0].mxu0
    %v322 = vadd.f32 0.0, %v321
    %v323 = vpop.f32.mrb[0].mxu0
    %324 = vmatprep.mubr.f32.mxu0 0.0
    %325 = vmatmul.mubr.f32.gmra.mrb[0].mxu0 %v64
    %v326 = vpop.f32.mrb[0].mxu0
    %v327 = vadd.f32 0.0, %v326
    %v328 = vpop.f32.mrb[0].mxu0
    %329 = vmatprep.mubr.f32.mxu0 0.0
    %330 = vmatmul.mubr.f32.gmra.mrb[0].mxu0 %v65
    %v331 = vpop.f32.mrb[0].mxu0
    %v332 = vadd.f32 0.0, %v331
    %v333 = vpop.f32.mrb[0].mxu0
    %334 = vmatprep.mubr.f32.mxu0 0.0
    %335 = vmatmul.mubr.f32.gmra.mrb[0].mxu0 %v66
    %v336 = vpop.f32.mrb[0].mxu0
    %v337 = vadd.f32 0.0, %v336
    %v338 = vpop.f32.mrb[0].mxu0
    %339 = vmatprep.mubr.f32.mxu0 0.0
    %340 = vmatmul.mubr.f32.gmra.mrb[0].mxu0 %v67
    %v341 = vpop.f32.mrb[0].mxu0
    %v342 = vadd.f32 0.0, %v341
    %v343 = vpop.f32.mrb[0].mxu0
    %344 = vmatprep.mubr.f32.mxu0 0.0
    %345 = vmatmul.mubr.f32.gmra.mrb[0].mxu0 %v68
    %v346 = vpop.f32.mrb[0].mxu0
    %v347 = vadd.f32 0.0, %v346
    %v348 = vpop.f32.mrb[0].mxu0
    %349 = vmatprep.mubr.f32.mxu0 0.0
    %350 = vmatmul.mubr.f32.gmra.mrb[0].mxu0 %v69
    %v351 = vpop.f32.mrb[0].mxu0
    %v352 = vadd.f32 0.0, %v351
    %v353 = vpop.f32.mrb[0].mxu0
    %354 = vmatprep.mubr.f32.mxu0 0.0
    %355 = vmatmul.mubr.f32.gmra.mrb[0].mxu0 %v70
    %v356 = vpop.f32.mrb[0].mxu0
    %v357 = vadd.f32 0.0, %v356
    %v358 = vpop.f32.mrb[0].mxu0
    %359 = vmatprep.mubr.f32.mxu0 0.0
    %360 = vmatmul.mubr.f32.gmra.mrb[0].mxu0 %v71
    %v361 = vpop.f32.mrb[0].mxu0
    %v362 = vadd.f32 0.0, %v361
    %v363 = vpop.f32.mrb[0].mxu0
    %364 = vmatprep.mubr.f32.mxu0 0.0
    %365 = vmatmul.mubr.f32.gmra.mrb[0].mxu0 %v72
    %v366 = vpop.f32.mrb[0].mxu0
    %v367 = vadd.f32 0.0, %v366
    %v368 = vpop.f32.mrb[0].mxu0
    %369 = vmatprep.mubr.f32.mxu0 0.0
    %370 = vmatmul.mubr.f32.gmra.mrb[0].mxu0 %v73
    %v371 = vpop.f32.mrb[0].mxu0
    %v372 = vadd.f32 0.0, %v371
    %v373 = vpop.f32.mrb[0].mxu0
    %374 = vmatprep.mubr.f32.mxu0 0.0
    %375 = vmatmul.mubr.f32.gmra.mrb[0].mxu0 %v74
    %v376 = vpop.f32.mrb[0].mxu0
    %v377 = vadd.f32 0.0, %v376
    %v378 = vpop.f32.mrb[0].mxu0
    %379 = vmatprep.mubr.f32.mxu0 0.0
    %380 = vmatmul.mubr.f32.gmra.mrb[0].mxu0 %v75
    %v381 = vpop.f32.mrb[0].mxu0
    %v382 = vadd.f32 0.0, %v381
    %v383 = vpop.f32.mrb[0].mxu0
    %384 = vmatprep.mubr.f32.mxu0 0.0
    %385 = vmatmul.mubr.f32.gmra.mrb[0].mxu0 %v76
    %v386 = vpop.f32.mrb[0].mxu0
    %v387 = vadd.f32 0.0, %v386
    %v388 = vpop.f32.mrb[0].mxu0
    %389 = vmatprep.mubr.f32.mxu0 0.0
    %390 = vmatmul.mubr.f32.gmra.mrb[0].mxu0 %v77
    %v391 = vpop.f32.mrb[0].mxu0
    %v392 = vadd.f32 0.0, %v391
    %v393 = vpop.f32.mrb[0].mxu0
    %394 = vmatprep.mubr.f32.mxu0 0.0
    %395 = vmatmul.mubr.f32.gmra.mrb[0].mxu0 %v78
    %v396 = vpop.f32.mrb[0].mxu0
    %v397 = vadd.f32 0.0, %v396
    %v398 = vpop.f32.mrb[0].mxu0
    %399 = vmatprep.mubr.f32.mxu0 0.0
    %400 = vmatmul.mubr.f32.gmra.mrb[0].mxu0 %v79
    %v401 = vpop.f32.mrb[0].mxu0
    %v402 = vadd.f32 0.0, %v401
    %v403 = vpop.f32.mrb[0].mxu0
    %404 = vmatprep.mubr.f32.mxu0 0.0
    %405 = vmatmul.mubr.f32.gmra.mrb[0].mxu0 %v80
    %v406 = vpop.f32.mrb[0].mxu0
    %v407 = vadd.f32 0.0, %v406
    %v408 = vpop.f32.mrb[0].mxu0
    %409 = vmatprep.mubr.f32.mxu0 0.0
    %410 = vmatmul.mubr.f32.gmra.mrb[0].mxu0 %v81
    %v411 = vpop.f32.mrb[0].mxu0
    %v412 = vadd.f32 0.0, %v411
    %v413 = vpop.f32.mrb[0].mxu0
    %414 = vmatprep.mubr.f32.mxu0 0.0
    %415 = vmatmul.mubr.f32.gmra.mrb[0].mxu0 %v82
    %v416 = vpop.f32.mrb[0].mxu0
    %v417 = vadd.f32 0.0, %v416
    %v418 = vpop.f32.mrb[0].mxu0
    %419 = vmatprep.mubr.f32.mxu0 0.0
    %420 = vmatmul.mubr.f32.gmra.mrb[0].mxu0 %v83
    %v421 = vpop.f32.mrb[0].mxu0
    %v422 = vadd.f32 0.0, %v421
    %v423 = vpop.f32.mrb[0].mxu0
    %424 = vmatprep.mubr.f32.mxu0 0.0
    %425 = vmatmul.mubr.f32.gmra.mrb[0].mxu0 %v84
    %v426 = vpop.f32.mrb[0].mxu0
    %v427 = vadd.f32 0.0, %v426
    %v428 = vpop.f32.mrb[0].mxu0
    %429 = vmatprep.mubr.f32.mxu0 0.0
    %430 = vmatmul.mubr.f32.gmra.mrb[0].mxu0 %v85
    %v431 = vpop.f32.mrb[0].mxu0
    %v432 = vadd.f32 0.0, %v431
    %v433 = vpop.f32.mrb[0].mxu0
    %434 = vmatprep.mubr.f32.mxu0 0.0
    %435 = vmatmul.mubr.f32.gmra.mrb[0].mxu0 %v86
    %v436 = vpop.f32.mrb[0].mxu0
    %v437 = vadd.f32 0.0, %v436
    %v438 = vpop.f32.mrb[0].mxu0
    %439 = vmatprep.mubr.f32.mxu0 0.0
    %440 = vmatmul.mubr.f32.gmra.mrb[0].mxu0 %v87
    %v441 = vpop.f32.mrb[0].mxu0
    %v442 = vadd.f32 0.0, %v441
    %v443 = vpop.f32.mrb[0].mxu0
    %444 = vmatprep.mubr.f32.mxu0 0.0
    %445 = vmatmul.mubr.f32.gmra.mrb[0].mxu0 %v88
    %v446 = vpop.f32.mrb[0].mxu0
    %v447 = vadd.f32 0.0, %v446
    %v448 = vpop.f32.mrb[0].mxu0
    %449 = vdwg.mxu0
    %v450 = vmax.f32 %v172, %v242
    %v451 = vmax.f32 %v177, %v247
    %v452 = vmax.f32 %v182, %v252
    %v453 = vmax.f32 %v187, %v257
    %v454 = vmax.f32 %v192, %v262
    %v455 = vmax.f32 %v197, %v267
    %v456 = vmax.f32 %v202, %v272
    %v457 = vmax.f32 %v207, %v277
    %v458 = vmax.f32 %v212, %v282
    %v459 = vmax.f32 %v217, %v287
    %v460 = vmax.f32 %v222, %v292
    %v461 = vmax.f32 %v227, %v297
    %v462 = vmax.f32 %v232, %v302
    %v463 = vmax.f32 %v237, %v307
    %v464 = vmax.f32 %v312, %v382
    %v465 = vmax.f32 %v317, %v387
    %v466 = vmax.f32 %v322, %v392
    %v467 = vmax.f32 %v327, %v397
    %v468 = vmax.f32 %v332, %v402
    %v469 = vmax.f32 %v337, %v407
    %v470 = vmax.f32 %v342, %v412
    %v471 = vmax.f32 %v347, %v417
    %v472 = vmax.f32 %v352, %v422
    %v473 = vmax.f32 %v357, %v427
    %v474 = vmax.f32 %v362, %v432
    %v475 = vmax.f32 %v367, %v437
    %v476 = vmax.f32 %v372, %v442
    %v477 = vmax.f32 %v377, %v447
    %v478 = vmax.f32 %v450, %v464
    %v479 = vmax.f32 %v451, %v465
    %v480 = vmax.f32 %v452, %v466
    %v481 = vmax.f32 %v453, %v467
    %v482 = vmax.f32 %v454, %v468
    %v483 = vmax.f32 %v455, %v469
    %v484 = vmax.f32 %v456, %v470
    %v485 = vmax.f32 %v457, %v471
    %v486 = vmax.f32 %v458, %v472
    %v487 = vmax.f32 %v459, %v473
    %v488 = vmax.f32 %v460, %v474
    %v489 = vmax.f32 %v461, %v475
    %v490 = vmax.f32 %v462, %v476
    %v491 = vmax.f32 %v463, %v477
    %v492 = vld [vmem:[%s2] sm:$0x1]
    %v494 = vlaneseq
    %v495 = vshrl.u32 %v494, 7
    %v496 = vsub.s32 0, %v495
    %v497 = vrot.slane %v492, %v496
    %v499 = vadd.f32 %v478, %v497
    %v500 = vadd.f32 %v479, %v497
    %v501 = vadd.f32 %v480, %v497
    %v502 = vadd.f32 %v481, %v497
    %v503 = vadd.f32 %v482, %v497
    %v504 = vadd.f32 %v483, %v497
    %v505 = vadd.f32 %v484, %v497
    %v506 = vadd.f32 %v485, %v497
    %v507 = vadd.f32 %v486, %v497
    %v508 = vadd.f32 %v487, %v497
    %v509 = vadd.f32 %v488, %v497
    %v510 = vadd.f32 %v489, %v497
    %v511 = vadd.f32 %v490, %v497
    %v512 = vadd.f32 %v491, %v497
    %v513 = vmax.f32 %v499, 0.0
    %v514 = vmax.f32 %v500, 0.0
    %v515 = vmax.f32 %v501, 0.0
    %v516 = vmax.f32 %v502, 0.0
    %v517 = vmax.f32 %v503, 0.0
    %v518 = vmax.f32 %v504, 0.0
    %v519 = vmax.f32 %v505, 0.0
    %v520 = vmax.f32 %v506, 0.0
    %v521 = vmax.f32 %v507, 0.0
    %v522 = vmax.f32 %v508, 0.0
    %v523 = vmax.f32 %v509, 0.0
    %v524 = vmax.f32 %v510, 0.0
    %v525 = vmax.f32 %v511, 0.0
    %v526 = vmax.f32 %v512, 0.0
    %vm527 = vcmask 261120
    %528 = vst.msk [vmem:[#allocation2] sm:$0xff] %vm527, %v513
    %529 = vst.msk [vmem:[#allocation2 + $0x8] sm:$0xff] %vm527, %v514
    %530 = vst.msk [vmem:[#allocation2 + $0x10] sm:$0xff] %vm527, %v515
    %531 = vst.msk [vmem:[#allocation2 + $0x18] sm:$0xff] %vm527, %v516
    %532 = vst.msk [vmem:[#allocation2 + $0x20] sm:$0xff] %vm527, %v517
    %533 = vst.msk [vmem:[#allocation2 + $0x28] sm:$0xff] %vm527, %v518
    %534 = vst.msk [vmem:[#allocation2 + $0x30] sm:$0xff] %vm527, %v519
    %535 = vst.msk [vmem:[#allocation2 + $0x38] sm:$0xff] %vm527, %v520
    %536 = vst.msk [vmem:[#allocation2 + $0x40] sm:$0xff] %vm527, %v521
    %537 = vst.msk [vmem:[#allocation2 + $0x48] sm:$0xff] %vm527, %v522
    %538 = vst.msk [vmem:[#allocation2 + $0x50] sm:$0xff] %vm527, %v523
    %539 = vst.msk [vmem:[#allocation2 + $0x58] sm:$0xff] %vm527, %v524
    %540 = vst.msk [vmem:[#allocation2 + $0x60] sm:$0xff] %vm527, %v525
    %541 = vst.msk [vmem:[#allocation2 + $0x68] sm:$0xff] %vm527, %v526
    %v542 = vld [vmem:[#allocation2] sm:$0xff]
    %v543 = vld [vmem:[#allocation2 + $0x8] sm:$0xff]
    %v544 = vld [vmem:[#allocation2 + $0x10] sm:$0xff]
    %v545 = vld [vmem:[#allocation2 + $0x18] sm:$0xff]
    %v546 = vld [vmem:[#allocation2 + $0x20] sm:$0xff]
    %v547 = vld [vmem:[#allocation2 + $0x28] sm:$0xff]
    %v548 = vld [vmem:[#allocation2 + $0x30] sm:$0xff]
    %v549 = vld [vmem:[#allocation2 + $0x38] sm:$0xff]
    %v550 = vld [vmem:[#allocation2 + $0x40] sm:$0xff]
    %v551 = vld [vmem:[#allocation2 + $0x48] sm:$0xff]
    %v552 = vld [vmem:[#allocation2 + $0x50] sm:$0xff]
    %v553 = vld [vmem:[%s3] sm:$0xff]
    %v554 = vld [vmem:[%s3 + $0x8] sm:$0xff]
    %v555 = vld [vmem:[%s3 + $0x10] sm:$0xff]
    %v556 = vld [vmem:[%s3 + $0x18] sm:$0xff]
    %v557 = vld [vmem:[#allocation2 + $0x1] sm:$0xff]
    %v558 = vld [vmem:[#allocation2 + $0x9] sm:$0xff]
    %v559 = vld [vmem:[#allocation2 + $0x11] sm:$0xff]
    %v560 = vld [vmem:[#allocation2 + $0x19] sm:$0xff]
    %v561 = vld [vmem:[#allocation2 + $0x21] sm:$0xff]
    %v562 = vld [vmem:[#allocation2 + $0x29] sm:$0xff]
    %v563 = vld [vmem:[#allocation2 + $0x31] sm:$0xff]
    %v564 = vld [vmem:[#allocation2 + $0x39] sm:$0xff]
    %v565 = vld [vmem:[#allocation2 + $0x41] sm:$0xff]
    %v566 = vld [vmem:[#allocation2 + $0x49] sm:$0xff]
    %v567 = vld [vmem:[#allocation2 + $0x51] sm:$0xff]
    %s568 = scalar_lea.vmem %s3, 32
    %v569 = vld [vmem:[%s568] sm:$0xff]
    %v570 = vld [vmem:[%s568 + $0x8] sm:$0xff]
    %v571 = vld [vmem:[%s568 + $0x10] sm:$0xff]
    %v572 = vld [vmem:[%s568 + $0x18] sm:$0xff]
    %v574 = vsel %vm527, %v557, 0
    %v577 = vsel %vm527, %v558, 0
    %v580 = vsel %vm527, %v559, 0
    %v583 = vsel %vm527, %v560, 0
    %v586 = vsel %vm527, %v561, 0
    %v589 = vsel %vm527, %v562, 0
    %v592 = vsel %vm527, %v563, 0
    %v595 = vsel %vm527, %v564, 0
    %v598 = vsel %vm527, %v565, 0
    %v601 = vsel %vm527, %v566, 0
    %v604 = vsel %vm527, %v567, 0
    %606 = vmatprep.subr.mxu0 0.0
    %607 = vmatpush1.msra.mxu0 %v569
    %608 = vmatprep.subr.mxu0 0.0
    %609 = vmatpush1.msra.mxu0 %v570
    %610 = vmatprep.subr.mxu0 0.0
    %611 = vmatpush1.msra.mxu0 %v571
    %612 = vmatprep.subr.mxu0 0.0
    %613 = vmatpush1.msra.mxu0 %v572
    %614 = vmatprep.subr.mxu0 0.0
    %615 = vmatpush1.msra.mxu0 0.0
    %616 = vmatprep.subr.mxu0 0.0
    %617 = vmatpush1.msra.mxu0 0.0
    %618 = vmatprep.subr.mxu0 0.0
    %619 = vmatpush1.msra.mxu0 0.0
    %620 = vmatprep.subr.mxu0 0.0
    %621 = vmatpush1.msra.mxu0 0.0
    %622 = vmatprep.subr.mxu0 0.0
    %623 = vmatpush1.msra.mxu0 0.0
    %624 = vmatprep.subr.mxu0 0.0
    %625 = vmatpush1.msra.mxu0 0.0
    %626 = vmatprep.subr.mxu0 0.0
    %627 = vmatpush1.msra.mxu0 0.0
    %628 = vmatprep.subr.mxu0 0.0
    %629 = vmatpush1.msra.mxu0 0.0
    %630 = vmatprep.subr.mxu0 0.0
    %631 = vmatpush1.msra.mxu0 0.0
    %632 = vmatprep.subr.mxu0 0.0
    %633 = vmatpush1.msra.mxu0 0.0
    %634 = vmatprep.subr.mxu0 0.0
    %635 = vmatpush1.msra.mxu0 0.0
    %636 = vmatprep.subr.mxu0 0.0
    %637 = vmatpush1.msra.mxu0 0.0
    %638 = vmatprep.subr.mxu0 0.0
    %639 = vmatpush1.msra.mxu0 0.0
    %640 = vmatprep.subr.mxu0 0.0
    %641 = vmatpush1.msra.mxu0 0.0
    %642 = vmatprep.subr.mxu0 0.0
    %643 = vmatpush1.msra.mxu0 0.0
    %644 = vmatprep.subr.mxu0 0.0
    %645 = vmatpush1.msra.mxu0 0.0
    %646 = vmatprep.subr.mxu0 0.0
    %647 = vmatpush1.msra.mxu0 0.0
    %648 = vmatprep.subr.mxu0 0.0
    %649 = vmatpush1.msra.mxu0 0.0
    %650 = vmatprep.subr.mxu0 0.0
    %651 = vmatpush1.msra.mxu0 0.0
    %652 = vmatprep.subr.mxu0 0.0
    %653 = vmatpush1.msra.mxu0 0.0
    %654 = vmatprep.subr.mxu0 0.0
    %655 = vmatpush1.msra.mxu0 0.0
    %656 = vmatprep.subr.mxu0 0.0
    %657 = vmatpush1.msra.mxu0 0.0
    %658 = vmatprep.subr.mxu0 0.0
    %659 = vmatpush1.msra.mxu0 0.0
    %660 = vmatprep.subr.mxu0 0.0
    %661 = vmatpush1.msra.mxu0 0.0
    %662 = vmatprep.subr.mxu0 0.0
    %663 = vmatpush1.msra.mxu0 0.0
    %664 = vmatprep.subr.mxu0 0.0
    %665 = vmatpush1.msra.mxu0 0.0
    %666 = vmatprep.subr.mxu0 0.0
    %667 = vmatpush1.msra.mxu0 0.0
    %668 = vmatprep.subr.mxu0 0.0
    %669 = vmatpush1.msra.mxu0 0.0
    %670 = vmatprep.mubr.f32.mxu0 0.0
    %671 = vmatmul.mubr.f32.gmra.mrb[0].mxu0 %v574
    %v672 = vpop.f32.mrb[0].mxu0
    %v673 = vadd.f32 0.0, %v672
    %v674 = vpop.f32.mrb[0].mxu0
    %675 = vmatprep.mubr.f32.mxu0 0.0
    %676 = vmatmul.mubr.f32.gmra.mrb[0].mxu0 %v577
    %v677 = vpop.f32.mrb[0].mxu0
    %v678 = vadd.f32 0.0, %v677
    %v679 = vpop.f32.mrb[0].mxu0
    %680 = vmatprep.mubr.f32.mxu0 0.0
    %681 = vmatmul.mubr.f32.gmra.mrb[0].mxu0 %v580
    %v682 = vpop.f32.mrb[0].mxu0
    %v683 = vadd.f32 0.0, %v682
    %v684 = vpop.f32.mrb[0].mxu0
    %685 = vmatprep.mubr.f32.mxu0 0.0
    %686 = vmatmul.mubr.f32.gmra.mrb[0].mxu0 %v583
    %v687 = vpop.f32.mrb[0].mxu0
    %v688 = vadd.f32 0.0, %v687
    %v689 = vpop.f32.mrb[0].mxu0
    %690 = vmatprep.mubr.f32.mxu0 0.0
    %691 = vmatmul.mubr.f32.gmra.mrb[0].mxu0 %v586
    %v692 = vpop.f32.mrb[0].mxu0
    %v693 = vadd.f32 0.0, %v692
    %v694 = vpop.f32.mrb[0].mxu0
    %695 = vmatprep.mubr.f32.mxu0 0.0
    %696 = vmatmul.mubr.f32.gmra.mrb[0].mxu0 %v589
    %v697 = vpop.f32.mrb[0].mxu0
    %v698 = vadd.f32 0.0, %v697
    %v699 = vpop.f32.mrb[0].mxu0
    %700 = vmatprep.mubr.f32.mxu0 0.0
    %701 = vmatmul.mubr.f32.gmra.mrb[0].mxu0 %v592
    %v702 = vpop.f32.mrb[0].mxu0
    %v703 = vadd.f32 0.0, %v702
    %v704 = vpop.f32.mrb[0].mxu0
    %705 = vmatprep.mubr.f32.mxu0 0.0
    %706 = vmatmul.mubr.f32.gmra.mrb[0].mxu0 %v595
    %v707 = vpop.f32.mrb[0].mxu0
    %v708 = vadd.f32 0.0, %v707
    %v709 = vpop.f32.mrb[0].mxu0
    %710 = vmatprep.mubr.f32.mxu0 0.0
    %711 = vmatmul.mubr.f32.gmra.mrb[0].mxu0 %v598
    %v712 = vpop.f32.mrb[0].mxu0
    %v713 = vadd.f32 0.0, %v712
    %v714 = vpop.f32.mrb[0].mxu0
    %715 = vmatprep.mubr.f32.mxu0 0.0
    %716 = vmatmul.mubr.f32.gmra.mrb[0].mxu0 %v601
    %v717 = vpop.f32.mrb[0].mxu0
    %v718 = vadd.f32 0.0, %v717
    %v719 = vpop.f32.mrb[0].mxu0
    %720 = vmatprep.mubr.f32.mxu0 0.0
    %721 = vmatmul.mubr.f32.gmra.mrb[0].mxu0 %v604
    %v722 = vpop.f32.mrb[0].mxu0
    %v723 = vadd.f32 0.0, %v722
    %v724 = vpop.f32.mrb[0].mxu0
    %725 = vdwg.mxu0
    %v727 = vsel %vm527, %v542, 0
    %v730 = vsel %vm527, %v543, 0
    %v733 = vsel %vm527, %v544, 0
    %v736 = vsel %vm527, %v545, 0
    %v739 = vsel %vm527, %v546, 0
    %v742 = vsel %vm527, %v547, 0
    %v745 = vsel %vm527, %v548, 0
    %v748 = vsel %vm527, %v549, 0
    %v751 = vsel %vm527, %v550, 0
    %v754 = vsel %vm527, %v551, 0
    %v757 = vsel %vm527, %v552, 0
    %759 = vmatprep.subr.mxu0 0.0
    %760 = vmatpush1.msra.mxu0 %v553
    %761 = vmatprep.subr.mxu0 0.0
    %762 = vmatpush1.msra.mxu0 %v554
    %763 = vmatprep.subr.mxu0 0.0
    %764 = vmatpush1.msra.mxu0 %v555
    %765 = vmatprep.subr.mxu0 0.0
    %766 = vmatpush1.msra.mxu0 %v556
    %767 = vmatprep.subr.mxu0 0.0
    %768 = vmatpush1.msra.mxu0 0.0
    %769 = vmatprep.subr.mxu0 0.0
    %770 = vmatpush1.msra.mxu0 0.0
    %771 = vmatprep.subr.mxu0 0.0
    %772 = vmatpush1.msra.mxu0 0.0
    %773 = vmatprep.subr.mxu0 0.0
    %774 = vmatpush1.msra.mxu0 0.0
    %775 = vmatprep.subr.mxu0 0.0
    %776 = vmatpush1.msra.mxu0 0.0
    %777 = vmatprep.subr.mxu0 0.0
    %778 = vmatpush1.msra.mxu0 0.0
    %779 = vmatprep.subr.mxu0 0.0
    %780 = vmatpush1.msra.mxu0 0.0
    %781 = vmatprep.subr.mxu0 0.0
    %782 = vmatpush1.msra.mxu0 0.0
    %783 = vmatprep.subr.mxu0 0.0
    %784 = vmatpush1.msra.mxu0 0.0
    %785 = vmatprep.subr.mxu0 0.0
    %786 = vmatpush1.msra.mxu0 0.0
    %787 = vmatprep.subr.mxu0 0.0
    %788 = vmatpush1.msra.mxu0 0.0
    %789 = vmatprep.subr.mxu0 0.0
    %790 = vmatpush1.msra.mxu0 0.0
    %791 = vmatprep.subr.mxu0 0.0
    %792 = vmatpush1.msra.mxu0 0.0
    %793 = vmatprep.subr.mxu0 0.0
    %794 = vmatpush1.msra.mxu0 0.0
    %795 = vmatprep.subr.mxu0 0.0
    %796 = vmatpush1.msra.mxu0 0.0
    %797 = vmatprep.subr.mxu0 0.0
    %798 = vmatpush1.msra.mxu0 0.0
    %799 = vmatprep.subr.mxu0 0.0
    %800 = vmatpush1.msra.mxu0 0.0
    %801 = vmatprep.subr.mxu0 0.0
    %802 = vmatpush1.msra.mxu0 0.0
    %803 = vmatprep.subr.mxu0 0.0
    %804 = vmatpush1.msra.mxu0 0.0
    %805 = vmatprep.subr.mxu0 0.0
    %806 = vmatpush1.msra.mxu0 0.0
    %807 = vmatprep.subr.mxu0 0.0
    %808 = vmatpush1.msra.mxu0 0.0
    %809 = vmatprep.subr.mxu0 0.0
    %810 = vmatpush1.msra.mxu0 0.0
    %811 = vmatprep.subr.mxu0 0.0
    %812 = vmatpush1.msra.mxu0 0.0
    %813 = vmatprep.subr.mxu0 0.0
    %814 = vmatpush1.msra.mxu0 0.0
    %815 = vmatprep.subr.mxu0 0.0
    %816 = vmatpush1.msra.mxu0 0.0
    %817 = vmatprep.subr.mxu0 0.0
    %818 = vmatpush1.msra.mxu0 0.0
    %819 = vmatprep.subr.mxu0 0.0
    %820 = vmatpush1.msra.mxu0 0.0
    %821 = vmatprep.subr.mxu0 0.0
    %822 = vmatpush1.msra.mxu0 0.0
    %823 = vmatprep.mubr.f32.mxu0 0.0
    %824 = vmatmul.mubr.f32.gmra.mrb[0].mxu0 %v727
    %v825 = vpop.f32.mrb[0].mxu0
    %v826 = vadd.f32 %v673, %v825
    %v827 = vpop.f32.mrb[0].mxu0
    %828 = vmatprep.mubr.f32.mxu0 0.0
    %829 = vmatmul.mubr.f32.gmra.mrb[0].mxu0 %v730
    %v830 = vpop.f32.mrb[0].mxu0
    %v831 = vadd.f32 %v678, %v830
    %v832 = vpop.f32.mrb[0].mxu0
    %833 = vmatprep.mubr.f32.mxu0 0.0
    %834 = vmatmul.mubr.f32.gmra.mrb[0].mxu0 %v733
    %v835 = vpop.f32.mrb[0].mxu0
    %v836 = vadd.f32 %v683, %v835
    %v837 = vpop.f32.mrb[0].mxu0
    %838 = vmatprep.mubr.f32.mxu0 0.0
    %839 = vmatmul.mubr.f32.gmra.mrb[0].mxu0 %v736
    %v840 = vpop.f32.mrb[0].mxu0
    %v841 = vadd.f32 %v688, %v840
    %v842 = vpop.f32.mrb[0].mxu0
    %843 = vmatprep.mubr.f32.mxu0 0.0
    %844 = vmatmul.mubr.f32.gmra.mrb[0].mxu0 %v739
    %v845 = vpop.f32.mrb[0].mxu0
    %v846 = vadd.f32 %v693, %v845
    %v847 = vpop.f32.mrb[0].mxu0
    %848 = vmatprep.mubr.f32.mxu0 0.0
    %849 = vmatmul.mubr.f32.gmra.mrb[0].mxu0 %v742
    %v850 = vpop.f32.mrb[0].mxu0
    %v851 = vadd.f32 %v698, %v850
    %v852 = vpop.f32.mrb[0].mxu0
    %853 = vmatprep.mubr.f32.mxu0 0.0
    %854 = vmatmul.mubr.f32.gmra.mrb[0].mxu0 %v745
    %v855 = vpop.f32.mrb[0].mxu0
    %v856 = vadd.f32 %v703, %v855
    %v857 = vpop.f32.mrb[0].mxu0
    %858 = vmatprep.mubr.f32.mxu0 0.0
    %859 = vmatmul.mubr.f32.gmra.mrb[0].mxu0 %v748
    %v860 = vpop.f32.mrb[0].mxu0
    %v861 = vadd.f32 %v708, %v860
    %v862 = vpop.f32.mrb[0].mxu0
    %863 = vmatprep.mubr.f32.mxu0 0.0
    %864 = vmatmul.mubr.f32.gmra.mrb[0].mxu0 %v751
    %v865 = vpop.f32.mrb[0].mxu0
    %v866 = vadd.f32 %v713, %v865
    %v867 = vpop.f32.mrb[0].mxu0
    %868 = vmatprep.mubr.f32.mxu0 0.0
    %869 = vmatmul.mubr.f32.gmra.mrb[0].mxu0 %v754
    %v870 = vpop.f32.mrb[0].mxu0
    %v871 = vadd.f32 %v718, %v870
    %v872 = vpop.f32.mrb[0].mxu0
    %873 = vmatprep.mubr.f32.mxu0 0.0
    %874 = vmatmul.mubr.f32.gmra.mrb[0].mxu0 %v757
    %v875 = vpop.f32.mrb[0].mxu0
    %v876 = vadd.f32 %v723, %v875
    %v877 = vpop.f32.mrb[0].mxu0
    %878 = vdwg.mxu0
    %v879 = vld [vmem:[#allocation2 + $0x2] sm:$0xff]
    %v880 = vld [vmem:[#allocation2 + $0xa] sm:$0xff]
    %v881 = vld [vmem:[#allocation2 + $0x12] sm:$0xff]
    %v882 = vld [vmem:[#allocation2 + $0x1a] sm:$0xff]
    %v883 = vld [vmem:[#allocation2 + $0x22] sm:$0xff]
    %v884 = vld [vmem:[#allocation2 + $0x2a] sm:$0xff]
    %v885 = vld [vmem:[#allocation2 + $0x32] sm:$0xff]
    %v886 = vld [vmem:[#allocation2 + $0x3a] sm:$0xff]
    %v887 = vld [vmem:[#allocation2 + $0x42] sm:$0xff]
    %v888 = vld [vmem:[#allocation2 + $0x4a] sm:$0xff]
    %v889 = vld [vmem:[#allocation2 + $0x52] sm:$0xff]
    %s890 = scalar_lea.vmem %s3, 64
    %v891 = vld [vmem:[%s890] sm:$0xff]
    %v892 = vld [vmem:[%s890 + $0x8] sm:$0xff]
    %v893 = vld [vmem:[%s890 + $0x10] sm:$0xff]
    %v894 = vld [vmem:[%s890 + $0x18] sm:$0xff]
    %v896 = vsel %vm527, %v879, 0
    %v899 = vsel %vm527, %v880, 0
    %v902 = vsel %vm527, %v881, 0
    %v905 = vsel %vm527, %v882, 0
    %v908 = vsel %vm527, %v883, 0
    %v911 = vsel %vm527, %v884, 0
    %v914 = vsel %vm527, %v885, 0
    %v917 = vsel %vm527, %v886, 0
    %v920 = vsel %vm527, %v887, 0
    %v923 = vsel %vm527, %v888, 0
    %v926 = vsel %vm527, %v889, 0
    %928 = vmatprep.subr.mxu0 0.0
    %929 = vmatpush1.msra.mxu0 %v891
    %930 = vmatprep.subr.mxu0 0.0
    %931 = vmatpush1.msra.mxu0 %v892
    %932 = vmatprep.subr.mxu0 0.0
    %933 = vmatpush1.msra.mxu0 %v893
    %934 = vmatprep.subr.mxu0 0.0
    %935 = vmatpush1.msra.mxu0 %v894
    %936 = vmatprep.subr.mxu0 0.0
    %937 = vmatpush1.msra.mxu0 0.0
    %938 = vmatprep.subr.mxu0 0.0
    %939 = vmatpush1.msra.mxu0 0.0
    %940 = vmatprep.subr.mxu0 0.0
    %941 = vmatpush1.msra.mxu0 0.0
    %942 = vmatprep.subr.mxu0 0.0
    %943 = vmatpush1.msra.mxu0 0.0
    %944 = vmatprep.subr.mxu0 0.0
    %945 = vmatpush1.msra.mxu0 0.0
    %946 = vmatprep.subr.mxu0 0.0
    %947 = vmatpush1.msra.mxu0 0.0
    %948 = vmatprep.subr.mxu0 0.0
    %949 = vmatpush1.msra.mxu0 0.0
    %950 = vmatprep.subr.mxu0 0.0
    %951 = vmatpush1.msra.mxu0 0.0
    %952 = vmatprep.subr.mxu0 0.0
    %953 = vmatpush1.msra.mxu0 0.0
    %954 = vmatprep.subr.mxu0 0.0
    %955 = vmatpush1.msra.mxu0 0.0
    %956 = vmatprep.subr.mxu0 0.0
    %957 = vmatpush1.msra.mxu0 0.0
    %958 = vmatprep.subr.mxu0 0.0
    %959 = vmatpush1.msra.mxu0 0.0
    %960 = vmatprep.subr.mxu0 0.0
    %961 = vmatpush1.msra.mxu0 0.0
    %962 = vmatprep.subr.mxu0 0.0
    %963 = vmatpush1.msra.mxu0 0.0
    %964 = vmatprep.subr.mxu0 0.0
    %965 = vmatpush1.msra.mxu0 0.0
    %966 = vmatprep.subr.mxu0 0.0
    %967 = vmatpush1.msra.mxu0 0.0
    %968 = vmatprep.subr.mxu0 0.0
    %969 = vmatpush1.msra.mxu0 0.0
    %970 = vmatprep.subr.mxu0 0.0
    %971 = vmatpush1.msra.mxu0 0.0
    %972 = vmatprep.subr.mxu0 0.0
    %973 = vmatpush1.msra.mxu0 0.0
    %974 = vmatprep.subr.mxu0 0.0
    %975 = vmatpush1.msra.mxu0 0.0
    %976 = vmatprep.subr.mxu0 0.0
    %977 = vmatpush1.msra.mxu0 0.0
    %978 = vmatprep.subr.mxu0 0.0
    %979 = vmatpush1.msra.mxu0 0.0
    %980 = vmatprep.subr.mxu0 0.0
    %981 = vmatpush1.msra.mxu0 0.0
    %982 = vmatprep.subr.mxu0 0.0
    %983 = vmatpush1.msra.mxu0 0.0
    %984 = vmatprep.subr.mxu0 0.0
    %985 = vmatpush1.msra.mxu0 0.0
    %986 = vmatprep.subr.mxu0 0.0
    %987 = vmatpush1.msra.mxu0 0.0
    %988 = vmatprep.subr.mxu0 0.0
    %989 = vmatpush1.msra.mxu0 0.0
    %990 = vmatprep.subr.mxu0 0.0
    %991 = vmatpush1.msra.mxu0 0.0
    %992 = vmatprep.mubr.f32.mxu0 0.0
    %993 = vmatmul.mubr.f32.gmra.mrb[0].mxu0 %v896
    %v994 = vpop.f32.mrb[0].mxu0
    %v995 = vadd.f32 0.0, %v994
    %v996 = vpop.f32.mrb[0].mxu0
    %997 = vmatprep.mubr.f32.mxu0 0.0
    %998 = vmatmul.mubr.f32.gmra.mrb[0].mxu0 %v899
    %v999 = vpop.f32.mrb[0].mxu0
    %v1000 = vadd.f32 0.0, %v999
    %v1001 = vpop.f32.mrb[0].mxu0
    %1002 = vmatprep.mubr.f32.mxu0 0.0
    %1003 = vmatmul.mubr.f32.gmra.mrb[0].mxu0 %v902
    %v1004 = vpop.f32.mrb[0].mxu0
    %v1005 = vadd.f32 0.0, %v1004
    %v1006 = vpop.f32.mrb[0].mxu0
    %1007 = vmatprep.mubr.f32.mxu0 0.0
    %1008 = vmatmul.mubr.f32.gmra.mrb[0].mxu0 %v905
    %v1009 = vpop.f32.mrb[0].mxu0
    %v1010 = vadd.f32 0.0, %v1009
    %v1011 = vpop.f32.mrb[0].mxu0
    %1012 = vmatprep.mubr.f32.mxu0 0.0
    %1013 = vmatmul.mubr.f32.gmra.mrb[0].mxu0 %v908
    %v1014 = vpop.f32.mrb[0].mxu0
    %v1015 = vadd.f32 0.0, %v1014
    %v1016 = vpop.f32.mrb[0].mxu0
    %1017 = vmatprep.mubr.f32.mxu0 0.0
    %1018 = vmatmul.mubr.f32.gmra.mrb[0].mxu0 %v911
    %v1019 = vpop.f32.mrb[0].mxu0
    %v1020 = vadd.f32 0.0, %v1019
    %v1021 = vpop.f32.mrb[0].mxu0
    %1022 = vmatprep.mubr.f32.mxu0 0.0
    %1023 = vmatmul.mubr.f32.gmra.mrb[0].mxu0 %v914
    %v1024 = vpop.f32.mrb[0].mxu0
    %v1025 = vadd.f32 0.0, %v1024
    %v1026 = vpop.f32.mrb[0].mxu0
    %1027 = vmatprep.mubr.f32.mxu0 0.0
    %1028 = vmatmul.mubr.f32.gmra.mrb[0].mxu0 %v917
    %v1029 = vpop.f32.mrb[0].mxu0
    %v1030 = vadd.f32 0.0, %v1029
    %v1031 = vpop.f32.mrb[0].mxu0
    %1032 = vmatprep.mubr.f32.mxu0 0.0
    %1033 = vmatmul.mubr.f32.gmra.mrb[0].mxu0 %v920
    %v1034 = vpop.f32.mrb[0].mxu0
    %v1035 = vadd.f32 0.0, %v1034
    %v1036 = vpop.f32.mrb[0].mxu0
    %1037 = vmatprep.mubr.f32.mxu0 0.0
    %1038 = vmatmul.mubr.f32.gmra.mrb[0].mxu0 %v923
    %v1039 = vpop.f32.mrb[0].mxu0
    %v1040 = vadd.f32 0.0, %v1039
    %v1041 = vpop.f32.mrb[0].mxu0
    %1042 = vmatprep.mubr.f32.mxu0 0.0
    %1043 = vmatmul.mubr.f32.gmra.mrb[0].mxu0 %v926
    %v1044 = vpop.f32.mrb[0].mxu0
    %v1045 = vadd.f32 0.0, %v1044
    %v1046 = vpop.f32.mrb[0].mxu0
    %1047 = vdwg.mxu0
    %v1048 = vadd.f32 %v826, %v995
    %v1049 = vadd.f32 %v831, %v1000
    %v1050 = vadd.f32 %v836, %v1005
    %v1051 = vadd.f32 %v841, %v1010
    %v1052 = vadd.f32 %v846, %v1015
    %v1053 = vadd.f32 %v851, %v1020
    %v1054 = vadd.f32 %v856, %v1025
    %v1055 = vadd.f32 %v861, %v1030
    %v1056 = vadd.f32 %v866, %v1035
    %v1057 = vadd.f32 %v871, %v1040
    %v1058 = vadd.f32 %v876, %v1045
    %v1059 = vld [vmem:[#allocation2 + $0x8] sm:$0xff]
    %v1060 = vld [vmem:[#allocation2 + $0x10] sm:$0xff]
    %v1061 = vld [vmem:[#allocation2 + $0x18] sm:$0xff]
    %v1062 = vld [vmem:[#allocation2 + $0x20] sm:$0xff]
    %v1063 = vld [vmem:[#allocation2 + $0x28] sm:$0xff]
    %v1064 = vld [vmem:[#allocation2 + $0x30] sm:$0xff]
    %v1065 = vld [vmem:[#allocation2 + $0x38] sm:$0xff]
    %v1066 = vld [vmem:[#allocation2 + $0x40] sm:$0xff]
    %v1067 = vld [vmem:[#allocation2 + $0x48] sm:$0xff]
    %v1068 = vld [vmem:[#allocation2 + $0x50] sm:$0xff]
    %v1069 = vld [vmem:[#allocation2 + $0x58] sm:$0xff]
    %s1070 = scalar_lea.vmem %s3, 96
    %v1071 = vld [vmem:[%s1070] sm:$0xff]
    %v1072 = vld [vmem:[%s1070 + $0x8] sm:$0xff]
    %v1073 = vld [vmem:[%s1070 + $0x10] sm:$0xff]
    %v1074 = vld [vmem:[%s1070 + $0x18] sm:$0xff]
    %v1076 = vsel %vm527, %v1059, 0
    %v1079 = vsel %vm527, %v1060, 0
    %v1082 = vsel %vm527, %v1061, 0
    %v1085 = vsel %vm527, %v1062, 0
    %v1088 = vsel %vm527, %v1063, 0
    %v1091 = vsel %vm527, %v1064, 0
    %v1094 = vsel %vm527, %v1065, 0
    %v1097 = vsel %vm527, %v1066, 0
    %v1100 = vsel %vm527, %v1067, 0
    %v1103 = vsel %vm527, %v1068, 0
    %v1106 = vsel %vm527, %v1069, 0
    %1108 = vmatprep.subr.mxu0 0.0
    %1109 = vmatpush1.msra.mxu0 %v1071
    %1110 = vmatprep.subr.mxu0 0.0
    %1111 = vmatpush1.msra.mxu0 %v1072
    %1112 = vmatprep.subr.mxu0 0.0
    %1113 = vmatpush1.msra.mxu0 %v1073
    %1114 = vmatprep.subr.mxu0 0.0
    %1115 = vmatpush1.msra.mxu0 %v1074
    %1116 = vmatprep.subr.mxu0 0.0
    %1117 = vmatpush1.msra.mxu0 0.0
    %1118 = vmatprep.subr.mxu0 0.0
    %1119 = vmatpush1.msra.mxu0 0.0
    %1120 = vmatprep.subr.mxu0 0.0
    %1121 = vmatpush1.msra.mxu0 0.0
    %1122 = vmatprep.subr.mxu0 0.0
    %1123 = vmatpush1.msra.mxu0 0.0
    %1124 = vmatprep.subr.mxu0 0.0
    %1125 = vmatpush1.msra.mxu0 0.0
    %1126 = vmatprep.subr.mxu0 0.0
    %1127 = vmatpush1.msra.mxu0 0.0
    %1128 = vmatprep.subr.mxu0 0.0
    %1129 = vmatpush1.msra.mxu0 0.0
    %1130 = vmatprep.subr.mxu0 0.0
    %1131 = vmatpush1.msra.mxu0 0.0
    %1132 = vmatprep.subr.mxu0 0.0
    %1133 = vmatpush1.msra.mxu0 0.0
    %1134 = vmatprep.subr.mxu0 0.0
    %1135 = vmatpush1.msra.mxu0 0.0
    %1136 = vmatprep.subr.mxu0 0.0
    %1137 = vmatpush1.msra.mxu0 0.0
    %1138 = vmatprep.subr.mxu0 0.0
    %1139 = vmatpush1.msra.mxu0 0.0
    %1140 = vmatprep.subr.mxu0 0.0
    %1141 = vmatpush1.msra.mxu0 0.0
    %1142 = vmatprep.subr.mxu0 0.0
    %1143 = vmatpush1.msra.mxu0 0.0
    %1144 = vmatprep.subr.mxu0 0.0
    %1145 = vmatpush1.msra.mxu0 0.0
    %1146 = vmatprep.subr.mxu0 0.0
    %1147 = vmatpush1.msra.mxu0 0.0
    %1148 = vmatprep.subr.mxu0 0.0
    %1149 = vmatpush1.msra.mxu0 0.0
    %1150 = vmatprep.subr.mxu0 0.0
    %1151 = vmatpush1.msra.mxu0 0.0
    %1152 = vmatprep.subr.mxu0 0.0
    %1153 = vmatpush1.msra.mxu0 0.0
    %1154 = vmatprep.subr.mxu0 0.0
    %1155 = vmatpush1.msra.mxu0 0.0
    %1156 = vmatprep.subr.mxu0 0.0
    %1157 = vmatpush1.msra.mxu0 0.0
    %1158 = vmatprep.subr.mxu0 0.0
    %1159 = vmatpush1.msra.mxu0 0.0
    %1160 = vmatprep.subr.mxu0 0.0
    %1161 = vmatpush1.msra.mxu0 0.0
    %1162 = vmatprep.subr.mxu0 0.0
    %1163 = vmatpush1.msra.mxu0 0.0
    %1164 = vmatprep.subr.mxu0 0.0
    %1165 = vmatpush1.msra.mxu0 0.0
    %1166 = vmatprep.subr.mxu0 0.0
    %1167 = vmatpush1.msra.mxu0 0.0
    %1168 = vmatprep.subr.mxu0 0.0
    %1169 = vmatpush1.msra.mxu0 0.0
    %1170 = vmatprep.subr.mxu0 0.0
    %1171 = vmatpush1.msra.mxu0 0.0
    %1172 = vmatprep.mubr.f32.mxu0 0.0
    %1173 = vmatmul.mubr.f32.gmra.mrb[0].mxu0 %v1076
    %v1174 = vpop.f32.mrb[0].mxu0
    %v1175 = vadd.f32 0.0, %v1174
    %v1176 = vpop.f32.mrb[0].mxu0
    %1177 = vmatprep.mubr.f32.mxu0 0.0
    %1178 = vmatmul.mubr.f32.gmra.mrb[0].mxu0 %v1079
    %v1179 = vpop.f32.mrb[0].mxu0
    %v1180 = vadd.f32 0.0, %v1179
    %v1181 = vpop.f32.mrb[0].mxu0
    %1182 = vmatprep.mubr.f32.mxu0 0.0
    %1183 = vmatmul.mubr.f32.gmra.mrb[0].mxu0 %v1082
    %v1184 = vpop.f32.mrb[0].mxu0
    %v1185 = vadd.f32 0.0, %v1184
    %v1186 = vpop.f32.mrb[0].mxu0
    %1187 = vmatprep.mubr.f32.mxu0 0.0
    %1188 = vmatmul.mubr.f32.gmra.mrb[0].mxu0 %v1085
    %v1189 = vpop.f32.mrb[0].mxu0
    %v1190 = vadd.f32 0.0, %v1189
    %v1191 = vpop.f32.mrb[0].mxu0
    %1192 = vmatprep.mubr.f32.mxu0 0.0
    %1193 = vmatmul.mubr.f32.gmra.mrb[0].mxu0 %v1088
    %v1194 = vpop.f32.mrb[0].mxu0
    %v1195 = vadd.f32 0.0, %v1194
    %v1196 = vpop.f32.mrb[0].mxu0
    %1197 = vmatprep.mubr.f32.mxu0 0.0
    %1198 = vmatmul.mubr.f32.gmra.mrb[0].mxu0 %v1091
    %v1199 = vpop.f32.mrb[0].mxu0
    %v1200 = vadd.f32 0.0, %v1199
    %v1201 = vpop.f32.mrb[0].mxu0
    %1202 = vmatprep.mubr.f32.mxu0 0.0
    %1203 = vmatmul.mubr.f32.gmra.mrb[0].mxu0 %v1094
    %v1204 = vpop.f32.mrb[0].mxu0
    %v1205 = vadd.f32 0.0, %v1204
    %v1206 = vpop.f32.mrb[0].mxu0
    %1207 = vmatprep.mubr.f32.mxu0 0.0
    %1208 = vmatmul.mubr.f32.gmra.mrb[0].mxu0 %v1097
    %v1209 = vpop.f32.mrb[0].mxu0
    %v1210 = vadd.f32 0.0, %v1209
    %v1211 = vpop.f32.mrb[0].mxu0
    %1212 = vmatprep.mubr.f32.mxu0 0.0
    %1213 = vmatmul.mubr.f32.gmra.mrb[0].mxu0 %v1100
    %v1214 = vpop.f32.mrb[0].mxu0
    %v1215 = vadd.f32 0.0, %v1214
    %v1216 = vpop.f32.mrb[0].mxu0
    %1217 = vmatprep.mubr.f32.mxu0 0.0
    %1218 = vmatmul.mubr.f32.gmra.mrb[0].mxu0 %v1103
    %v1219 = vpop.f32.mrb[0].mxu0
    %v1220 = vadd.f32 0.0, %v1219
    %v1221 = vpop.f32.mrb[0].mxu0
    %1222 = vmatprep.mubr.f32.mxu0 0.0
    %1223 = vmatmul.mubr.f32.gmra.mrb[0].mxu0 %v1106
    %v1224 = vpop.f32.mrb[0].mxu0
    %v1225 = vadd.f32 0.0, %v1224
    %v1226 = vpop.f32.mrb[0].mxu0
    %1227 = vdwg.mxu0
    %v1228 = vadd.f32 %v1048, %v1175
    %v1229 = vadd.f32 %v1049, %v1180
    %v1230 = vadd.f32 %v1050, %v1185
    %v1231 = vadd.f32 %v1051, %v1190
    %v1232 = vadd.f32 %v1052, %v1195
    %v1233 = vadd.f32 %v1053, %v1200
    %v1234 = vadd.f32 %v1054, %v1205
    %v1235 = vadd.f32 %v1055, %v1210
    %v1236 = vadd.f32 %v1056, %v1215
    %v1237 = vadd.f32 %v1057, %v1220
    %v1238 = vadd.f32 %v1058, %v1225
    %v1239 = vld [vmem:[#allocation2 + $0x9] sm:$0xff]
    %v1240 = vld [vmem:[#allocation2 + $0x11] sm:$0xff]
    %v1241 = vld [vmem:[#allocation2 + $0x19] sm:$0xff]
    %v1242 = vld [vmem:[#allocation2 + $0x21] sm:$0xff]
    %v1243 = vld [vmem:[#allocation2 + $0x29] sm:$0xff]
    %v1244 = vld [vmem:[#allocation2 + $0x31] sm:$0xff]
    %v1245 = vld [vmem:[#allocation2 + $0x39] sm:$0xff]
    %v1246 = vld [vmem:[#allocation2 + $0x41] sm:$0xff]
    %v1247 = vld [vmem:[#allocation2 + $0x49] sm:$0xff]
    %v1248 = vld [vmem:[#allocation2 + $0x51] sm:$0xff]
    %v1249 = vld [vmem:[#allocation2 + $0x59] sm:$0xff]
    %s1250 = scalar_lea.vmem %s3, 128
    %v1251 = vld [vmem:[%s1250] sm:$0xff]
    %v1252 = vld [vmem:[%s1250 + $0x8] sm:$0xff]
    %v1253 = vld [vmem:[%s1250 + $0x10] sm:$0xff]
    %v1254 = vld [vmem:[%s1250 + $0x18] sm:$0xff]
    %v1256 = vsel %vm527, %v1239, 0
    %v1259 = vsel %vm527, %v1240, 0
    %v1262 = vsel %vm527, %v1241, 0
    %v1265 = vsel %vm527, %v1242, 0
    %v1268 = vsel %vm527, %v1243, 0
    %v1271 = vsel %vm527, %v1244, 0
    %v1274 = vsel %vm527, %v1245, 0
    %v1277 = vsel %vm527, %v1246, 0
    %v1280 = vsel %vm527, %v1247, 0
    %v1283 = vsel %vm527, %v1248, 0
    %v1286 = vsel %vm527, %v1249, 0
    %1288 = vmatprep.subr.mxu0 0.0
    %1289 = vmatpush1.msra.mxu0 %v1251
    %1290 = vmatprep.subr.mxu0 0.0
    %1291 = vmatpush1.msra.mxu0 %v1252
    %1292 = vmatprep.subr.mxu0 0.0
    %1293 = vmatpush1.msra.mxu0 %v1253
    %1294 = vmatprep.subr.mxu0 0.0
    %1295 = vmatpush1.msra.mxu0 %v1254
    %1296 = vmatprep.subr.mxu0 0.0
    %1297 = vmatpush1.msra.mxu0 0.0
    %1298 = vmatprep.subr.mxu0 0.0
    %1299 = vmatpush1.msra.mxu0 0.0
    %1300 = vmatprep.subr.mxu0 0.0
    %1301 = vmatpush1.msra.mxu0 0.0
    %1302 = vmatprep.subr.mxu0 0.0
    %1303 = vmatpush1.msra.mxu0 0.0
    %1304 = vmatprep.subr.mxu0 0.0
    %1305 = vmatpush1.msra.mxu0 0.0
    %1306 = vmatprep.subr.mxu0 0.0
    %1307 = vmatpush1.msra.mxu0 0.0
    %1308 = vmatprep.subr.mxu0 0.0
    %1309 = vmatpush1.msra.mxu0 0.0
    %1310 = vmatprep.subr.mxu0 0.0
    %1311 = vmatpush1.msra.mxu0 0.0
    %1312 = vmatprep.subr.mxu0 0.0
    %1313 = vmatpush1.msra.mxu0 0.0
    %1314 = vmatprep.subr.mxu0 0.0
    %1315 = vmatpush1.msra.mxu0 0.0
    %1316 = vmatprep.subr.mxu0 0.0
    %1317 = vmatpush1.msra.mxu0 0.0
    %1318 = vmatprep.subr.mxu0 0.0
    %1319 = vmatpush1.msra.mxu0 0.0
    %1320 = vmatprep.subr.mxu0 0.0
    %1321 = vmatpush1.msra.mxu0 0.0
    %1322 = vmatprep.subr.mxu0 0.0
    %1323 = vmatpush1.msra.mxu0 0.0
    %1324 = vmatprep.subr.mxu0 0.0
    %1325 = vmatpush1.msra.mxu0 0.0
    %1326 = vmatprep.subr.mxu0 0.0
    %1327 = vmatpush1.msra.mxu0 0.0
    %1328 = vmatprep.subr.mxu0 0.0
    %1329 = vmatpush1.msra.mxu0 0.0
    %1330 = vmatprep.subr.mxu0 0.0
    %1331 = vmatpush1.msra.mxu0 0.0
    %1332 = vmatprep.subr.mxu0 0.0
    %1333 = vmatpush1.msra.mxu0 0.0
    %1334 = vmatprep.subr.mxu0 0.0
    %1335 = vmatpush1.msra.mxu0 0.0
    %1336 = vmatprep.subr.mxu0 0.0
    %1337 = vmatpush1.msra.mxu0 0.0
    %1338 = vmatprep.subr.mxu0 0.0
    %1339 = vmatpush1.msra.mxu0 0.0
    %1340 = vmatprep.subr.mxu0 0.0
    %1341 = vmatpush1.msra.mxu0 0.0
    %1342 = vmatprep.subr.mxu0 0.0
    %1343 = vmatpush1.msra.mxu0 0.0
    %1344 = vmatprep.subr.mxu0 0.0
    %1345 = vmatpush1.msra.mxu0 0.0
    %1346 = vmatprep.subr.mxu0 0.0
    %1347 = vmatpush1.msra.mxu0 0.0
    %1348 = vmatprep.subr.mxu0 0.0
    %1349 = vmatpush1.msra.mxu0 0.0
    %1350 = vmatprep.subr.mxu0 0.0
    %1351 = vmatpush1.msra.mxu0 0.0
    %1352 = vmatprep.mubr.f32.mxu0 0.0
    %1353 = vmatmul.mubr.f32.gmra.mrb[0].mxu0 %v1256
    %v1354 = vpop.f32.mrb[0].mxu0
    %v1355 = vadd.f32 0.0, %v1354
    %v1356 = vpop.f32.mrb[0].mxu0
    %1357 = vmatprep.mubr.f32.mxu0 0.0
    %1358 = vmatmul.mubr.f32.gmra.mrb[0].mxu0 %v1259
    %v1359 = vpop.f32.mrb[0].mxu0
    %v1360 = vadd.f32 0.0, %v1359
    %v1361 = vpop.f32.mrb[0].mxu0
    %1362 = vmatprep.mubr.f32.mxu0 0.0
    %1363 = vmatmul.mubr.f32.gmra.mrb[0].mxu0 %v1262
    %v1364 = vpop.f32.mrb[0].mxu0
    %v1365 = vadd.f32 0.0, %v1364
    %v1366 = vpop.f32.mrb[0].mxu0
    %1367 = vmatprep.mubr.f32.mxu0 0.0
    %1368 = vmatmul.mubr.f32.gmra.mrb[0].mxu0 %v1265
    %v1369 = vpop.f32.mrb[0].mxu0
    %v1370 = vadd.f32 0.0, %v1369
    %v1371 = vpop.f32.mrb[0].mxu0
    %1372 = vmatprep.mubr.f32.mxu0 0.0
    %1373 = vmatmul.mubr.f32.gmra.mrb[0].mxu0 %v1268
    %v1374 = vpop.f32.mrb[0].mxu0
    %v1375 = vadd.f32 0.0, %v1374
    %v1376 = vpop.f32.mrb[0].mxu0
    %1377 = vmatprep.mubr.f32.mxu0 0.0
    %1378 = vmatmul.mubr.f32.gmra.mrb[0].mxu0 %v1271
    %v1379 = vpop.f32.mrb[0].mxu0
    %v1380 = vadd.f32 0.0, %v1379
    %v1381 = vpop.f32.mrb[0].mxu0
    %1382 = vmatprep.mubr.f32.mxu0 0.0
    %1383 = vmatmul.mubr.f32.gmra.mrb[0].mxu0 %v1274
    %v1384 = vpop.f32.mrb[0].mxu0
    %v1385 = vadd.f32 0.0, %v1384
    %v1386 = vpop.f32.mrb[0].mxu0
    %1387 = vmatprep.mubr.f32.mxu0 0.0
    %1388 = vmatmul.mubr.f32.gmra.mrb[0].mxu0 %v1277
    %v1389 = vpop.f32.mrb[0].mxu0
    %v1390 = vadd.f32 0.0, %v1389
    %v1391 = vpop.f32.mrb[0].mxu0
    %1392 = vmatprep.mubr.f32.mxu0 0.0
    %1393 = vmatmul.mubr.f32.gmra.mrb[0].mxu0 %v1280
    %v1394 = vpop.f32.mrb[0].mxu0
    %v1395 = vadd.f32 0.0, %v1394
    %v1396 = vpop.f32.mrb[0].mxu0
    %1397 = vmatprep.mubr.f32.mxu0 0.0
    %1398 = vmatmul.mubr.f32.gmra.mrb[0].mxu0 %v1283
    %v1399 = vpop.f32.mrb[0].mxu0
    %v1400 = vadd.f32 0.0, %v1399
    %v1401 = vpop.f32.mrb[0].mxu0
    %1402 = vmatprep.mubr.f32.mxu0 0.0
    %1403 = vmatmul.mubr.f32.gmra.mrb[0].mxu0 %v1286
    %v1404 = vpop.f32.mrb[0].mxu0
    %v1405 = vadd.f32 0.0, %v1404
    %v1406 = vpop.f32.mrb[0].mxu0
    %1407 = vdwg.mxu0
    %v1408 = vadd.f32 %v1228, %v1355
    %v1409 = vadd.f32 %v1229, %v1360
    %v1410 = vadd.f32 %v1230, %v1365
    %v1411 = vadd.f32 %v1231, %v1370
    %v1412 = vadd.f32 %v1232, %v1375
    %v1413 = vadd.f32 %v1233, %v1380
    %v1414 = vadd.f32 %v1234, %v1385
    %v1415 = vadd.f32 %v1235, %v1390
    %v1416 = vadd.f32 %v1236, %v1395
    %v1417 = vadd.f32 %v1237, %v1400
    %v1418 = vadd.f32 %v1238, %v1405
    %v1419 = vld [vmem:[#allocation2 + $0xa] sm:$0xff]
    %v1420 = vld [vmem:[#allocation2 + $0x12] sm:$0xff]
    %v1421 = vld [vmem:[#allocation2 + $0x1a] sm:$0xff]
    %v1422 = vld [vmem:[#allocation2 + $0x22] sm:$0xff]
    %v1423 = vld [vmem:[#allocation2 + $0x2a] sm:$0xff]
    %v1424 = vld [vmem:[#allocation2 + $0x32] sm:$0xff]
    %v1425 = vld [vmem:[#allocation2 + $0x3a] sm:$0xff]
    %v1426 = vld [vmem:[#allocation2 + $0x42] sm:$0xff]
    %v1427 = vld [vmem:[#allocation2 + $0x4a] sm:$0xff]
    %v1428 = vld [vmem:[#allocation2 + $0x52] sm:$0xff]
    %v1429 = vld [vmem:[#allocation2 + $0x5a] sm:$0xff]
    %s1430 = scalar_lea.vmem %s3, 160
    %v1431 = vld [vmem:[%s1430] sm:$0xff]
    %v1432 = vld [vmem:[%s1430 + $0x8] sm:$0xff]
    %v1433 = vld [vmem:[%s1430 + $0x10] sm:$0xff]
    %v1434 = vld [vmem:[%s1430 + $0x18] sm:$0xff]
    %v1436 = vsel %vm527, %v1419, 0
    %v1439 = vsel %vm527, %v1420, 0
    %v1442 = vsel %vm527, %v1421, 0
    %v1445 = vsel %vm527, %v1422, 0
    %v1448 = vsel %vm527, %v1423, 0
    %v1451 = vsel %vm527, %v1424, 0
    %v1454 = vsel %vm527, %v1425, 0
    %v1457 = vsel %vm527, %v1426, 0
    %v1460 = vsel %vm527, %v1427, 0
    %v1463 = vsel %vm527, %v1428, 0
    %v1466 = vsel %vm527, %v1429, 0
    %1468 = vmatprep.subr.mxu0 0.0
    %1469 = vmatpush1.msra.mxu0 %v1431
    %1470 = vmatprep.subr.mxu0 0.0
    %1471 = vmatpush1.msra.mxu0 %v1432
    %1472 = vmatprep.subr.mxu0 0.0
    %1473 = vmatpush1.msra.mxu0 %v1433
    %1474 = vmatprep.subr.mxu0 0.0
    %1475 = vmatpush1.msra.mxu0 %v1434
    %1476 = vmatprep.subr.mxu0 0.0
    %1477 = vmatpush1.msra.mxu0 0.0
    %1478 = vmatprep.subr.mxu0 0.0
    %1479 = vmatpush1.msra.mxu0 0.0
    %1480 = vmatprep.subr.mxu0 0.0
    %1481 = vmatpush1.msra.mxu0 0.0
    %1482 = vmatprep.subr.mxu0 0.0
    %1483 = vmatpush1.msra.mxu0 0.0
    %1484 = vmatprep.subr.mxu0 0.0
    %1485 = vmatpush1.msra.mxu0 0.0
    %1486 = vmatprep.subr.mxu0 0.0
    %1487 = vmatpush1.msra.mxu0 0.0
    %1488 = vmatprep.subr.mxu0 0.0
    %1489 = vmatpush1.msra.mxu0 0.0
    %1490 = vmatprep.subr.mxu0 0.0
    %1491 = vmatpush1.msra.mxu0 0.0
    %1492 = vmatprep.subr.mxu0 0.0
    %1493 = vmatpush1.msra.mxu0 0.0
    %1494 = vmatprep.subr.mxu0 0.0
    %1495 = vmatpush1.msra.mxu0 0.0
    %1496 = vmatprep.subr.mxu0 0.0
    %1497 = vmatpush1.msra.mxu0 0.0
    %1498 = vmatprep.subr.mxu0 0.0
    %1499 = vmatpush1.msra.mxu0 0.0
    %1500 = vmatprep.subr.mxu0 0.0
    %1501 = vmatpush1.msra.mxu0 0.0
    %1502 = vmatprep.subr.mxu0 0.0
    %1503 = vmatpush1.msra.mxu0 0.0
    %1504 = vmatprep.subr.mxu0 0.0
    %1505 = vmatpush1.msra.mxu0 0.0
    %1506 = vmatprep.subr.mxu0 0.0
    %1507 = vmatpush1.msra.mxu0 0.0
    %1508 = vmatprep.subr.mxu0 0.0
    %1509 = vmatpush1.msra.mxu0 0.0
    %1510 = vmatprep.subr.mxu0 0.0
    %1511 = vmatpush1.msra.mxu0 0.0
    %1512 = vmatprep.subr.mxu0 0.0
    %1513 = vmatpush1.msra.mxu0 0.0
    %1514 = vmatprep.subr.mxu0 0.0
    %1515 = vmatpush1.msra.mxu0 0.0
    %1516 = vmatprep.subr.mxu0 0.0
    %1517 = vmatpush1.msra.mxu0 0.0
    %1518 = vmatprep.subr.mxu0 0.0
    %1519 = vmatpush1.msra.mxu0 0.0
    %1520 = vmatprep.subr.mxu0 0.0
    %1521 = vmatpush1.msra.mxu0 0.0
    %1522 = vmatprep.subr.mxu0 0.0
    %1523 = vmatpush1.msra.mxu0 0.0
    %1524 = vmatprep.subr.mxu0 0.0
    %1525 = vmatpush1.msra.mxu0 0.0
    %1526 = vmatprep.subr.mxu0 0.0
    %1527 = vmatpush1.msra.mxu0 0.0
    %1528 = vmatprep.subr.mxu0 0.0
    %1529 = vmatpush1.msra.mxu0 0.0
    %1530 = vmatprep.subr.mxu0 0.0
    %1531 = vmatpush1.msra.mxu0 0.0
    %1532 = vmatprep.mubr.f32.mxu0 0.0
    %1533 = vmatmul.mubr.f32.gmra.mrb[0].mxu0 %v1436
    %v1534 = vpop.f32.mrb[0].mxu0
    %v1535 = vadd.f32 0.0, %v1534
    %v1536 = vpop.f32.mrb[0].mxu0
    %1537 = vmatprep.mubr.f32.mxu0 0.0
    %1538 = vmatmul.mubr.f32.gmra.mrb[0].mxu0 %v1439
    %v1539 = vpop.f32.mrb[0].mxu0
    %v1540 = vadd.f32 0.0, %v1539
    %v1541 = vpop.f32.mrb[0].mxu0
    %1542 = vmatprep.mubr.f32.mxu0 0.0
    %1543 = vmatmul.mubr.f32.gmra.mrb[0].mxu0 %v1442
    %v1544 = vpop.f32.mrb[0].mxu0
    %v1545 = vadd.f32 0.0, %v1544
    %v1546 = vpop.f32.mrb[0].mxu0
    %1547 = vmatprep.mubr.f32.mxu0 0.0
    %1548 = vmatmul.mubr.f32.gmra.mrb[0].mxu0 %v1445
    %v1549 = vpop.f32.mrb[0].mxu0
    %v1550 = vadd.f32 0.0, %v1549
    %v1551 = vpop.f32.mrb[0].mxu0
    %1552 = vmatprep.mubr.f32.mxu0 0.0
    %1553 = vmatmul.mubr.f32.gmra.mrb[0].mxu0 %v1448
    %v1554 = vpop.f32.mrb[0].mxu0
    %v1555 = vadd.f32 0.0, %v1554
    %v1556 = vpop.f32.mrb[0].mxu0
    %1557 = vmatprep.mubr.f32.mxu0 0.0
    %1558 = vmatmul.mubr.f32.gmra.mrb[0].mxu0 %v1451
    %v1559 = vpop.f32.mrb[0].mxu0
    %v1560 = vadd.f32 0.0, %v1559
    %v1561 = vpop.f32.mrb[0].mxu0
    %1562 = vmatprep.mubr.f32.mxu0 0.0
    %1563 = vmatmul.mubr.f32.gmra.mrb[0].mxu0 %v1454
    %v1564 = vpop.f32.mrb[0].mxu0
    %v1565 = vadd.f32 0.0, %v1564
    %v1566 = vpop.f32.mrb[0].mxu0
    %1567 = vmatprep.mubr.f32.mxu0 0.0
    %1568 = vmatmul.mubr.f32.gmra.mrb[0].mxu0 %v1457
    %v1569 = vpop.f32.mrb[0].mxu0
    %v1570 = vadd.f32 0.0, %v1569
    %v1571 = vpop.f32.mrb[0].mxu0
    %1572 = vmatprep.mubr.f32.mxu0 0.0
    %1573 = vmatmul.mubr.f32.gmra.mrb[0].mxu0 %v1460
    %v1574 = vpop.f32.mrb[0].mxu0
    %v1575 = vadd.f32 0.0, %v1574
    %v1576 = vpop.f32.mrb[0].mxu0
    %1577 = vmatprep.mubr.f32.mxu0 0.0
    %1578 = vmatmul.mubr.f32.gmra.mrb[0].mxu0 %v1463
    %v1579 = vpop.f32.mrb[0].mxu0
    %v1580 = vadd.f32 0.0, %v1579
    %v1581 = vpop.f32.mrb[0].mxu0
    %1582 = vmatprep.mubr.f32.mxu0 0.0
    %1583 = vmatmul.mubr.f32.gmra.mrb[0].mxu0 %v1466
    %v1584 = vpop.f32.mrb[0].mxu0
    %v1585 = vadd.f32 0.0, %v1584
    %v1586 = vpop.f32.mrb[0].mxu0
    %1587 = vdwg.mxu0
    %v1588 = vadd.f32 %v1408, %v1535
    %v1589 = vadd.f32 %v1409, %v1540
    %v1590 = vadd.f32 %v1410, %v1545
    %v1591 = vadd.f32 %v1411, %v1550
    %v1592 = vadd.f32 %v1412, %v1555
    %v1593 = vadd.f32 %v1413, %v1560
    %v1594 = vadd.f32 %v1414, %v1565
    %v1595 = vadd.f32 %v1415, %v1570
    %v1596 = vadd.f32 %v1416, %v1575
    %v1597 = vadd.f32 %v1417, %v1580
    %v1598 = vadd.f32 %v1418, %v1585
    %v1599 = vld [vmem:[#allocation2 + $0x10] sm:$0xff]
    %v1600 = vld [vmem:[#allocation2 + $0x18] sm:$0xff]
    %v1601 = vld [vmem:[#allocation2 + $0x20] sm:$0xff]
    %v1602 = vld [vmem:[#allocation2 + $0x28] sm:$0xff]
    %v1603 = vld [vmem:[#allocation2 + $0x30] sm:$0xff]
    %v1604 = vld [vmem:[#allocation2 + $0x38] sm:$0xff]
    %v1605 = vld [vmem:[#allocation2 + $0x40] sm:$0xff]
    %v1606 = vld [vmem:[#allocation2 + $0x48] sm:$0xff]
    %v1607 = vld [vmem:[#allocation2 + $0x50] sm:$0xff]
    %v1608 = vld [vmem:[#allocation2 + $0x58] sm:$0xff]
    %v1609 = vld [vmem:[#allocation2 + $0x60] sm:$0xff]
    %s1610 = scalar_lea.vmem %s3, 192
    %v1611 = vld [vmem:[%s1610] sm:$0xff]
    %v1612 = vld [vmem:[%s1610 + $0x8] sm:$0xff]
    %v1613 = vld [vmem:[%s1610 + $0x10] sm:$0xff]
    %v1614 = vld [vmem:[%s1610 + $0x18] sm:$0xff]
    %v1616 = vsel %vm527, %v1599, 0
    %v1619 = vsel %vm527, %v1600, 0
    %v1622 = vsel %vm527, %v1601, 0
    %v1625 = vsel %vm527, %v1602, 0
    %v1628 = vsel %vm527, %v1603, 0
    %v1631 = vsel %vm527, %v1604, 0
    %v1634 = vsel %vm527, %v1605, 0
    %v1637 = vsel %vm527, %v1606, 0
    %v1640 = vsel %vm527, %v1607, 0
    %v1643 = vsel %vm527, %v1608, 0
    %v1646 = vsel %vm527, %v1609, 0
    %1648 = vmatprep.subr.mxu0 0.0
    %1649 = vmatpush1.msra.mxu0 %v1611
    %1650 = vmatprep.subr.mxu0 0.0
    %1651 = vmatpush1.msra.mxu0 %v1612
    %1652 = vmatprep.subr.mxu0 0.0
    %1653 = vmatpush1.msra.mxu0 %v1613
    %1654 = vmatprep.subr.mxu0 0.0
    %1655 = vmatpush1.msra.mxu0 %v1614
    %1656 = vmatprep.subr.mxu0 0.0
    %1657 = vmatpush1.msra.mxu0 0.0
    %1658 = vmatprep.subr.mxu0 0.0
    %1659 = vmatpush1.msra.mxu0 0.0
    %1660 = vmatprep.subr.mxu0 0.0
    %1661 = vmatpush1.msra.mxu0 0.0
    %1662 = vmatprep.subr.mxu0 0.0
    %1663 = vmatpush1.msra.mxu0 0.0
    %1664 = vmatprep.subr.mxu0 0.0
    %1665 = vmatpush1.msra.mxu0 0.0
    %1666 = vmatprep.subr.mxu0 0.0
    %1667 = vmatpush1.msra.mxu0 0.0
    %1668 = vmatprep.subr.mxu0 0.0
    %1669 = vmatpush1.msra.mxu0 0.0
    %1670 = vmatprep.subr.mxu0 0.0
    %1671 = vmatpush1.msra.mxu0 0.0
    %1672 = vmatprep.subr.mxu0 0.0
    %1673 = vmatpush1.msra.mxu0 0.0
    %1674 = vmatprep.subr.mxu0 0.0
    %1675 = vmatpush1.msra.mxu0 0.0
    %1676 = vmatprep.subr.mxu0 0.0
    %1677 = vmatpush1.msra.mxu0 0.0
    %1678 = vmatprep.subr.mxu0 0.0
    %1679 = vmatpush1.msra.mxu0 0.0
    %1680 = vmatprep.subr.mxu0 0.0
    %1681 = vmatpush1.msra.mxu0 0.0
    %1682 = vmatprep.subr.mxu0 0.0
    %1683 = vmatpush1.msra.mxu0 0.0
    %1684 = vmatprep.subr.mxu0 0.0
    %1685 = vmatpush1.msra.mxu0 0.0
    %1686 = vmatprep.subr.mxu0 0.0
    %1687 = vmatpush1.msra.mxu0 0.0
    %1688 = vmatprep.subr.mxu0 0.0
    %1689 = vmatpush1.msra.mxu0 0.0
    %1690 = vmatprep.subr.mxu0 0.0
    %1691 = vmatpush1.msra.mxu0 0.0
    %1692 = vmatprep.subr.mxu0 0.0
    %1693 = vmatpush1.msra.mxu0 0.0
    %1694 = vmatprep.subr.mxu0 0.0
    %1695 = vmatpush1.msra.mxu0 0.0
    %1696 = vmatprep.subr.mxu0 0.0
    %1697 = vmatpush1.msra.mxu0 0.0
    %1698 = vmatprep.subr.mxu0 0.0
    %1699 = vmatpush1.msra.mxu0 0.0
    %1700 = vmatprep.subr.mxu0 0.0
    %1701 = vmatpush1.msra.mxu0 0.0
    %1702 = vmatprep.subr.mxu0 0.0
    %1703 = vmatpush1.msra.mxu0 0.0
    %1704 = vmatprep.subr.mxu0 0.0
    %1705 = vmatpush1.msra.mxu0 0.0
    %1706 = vmatprep.subr.mxu0 0.0
    %1707 = vmatpush1.msra.mxu0 0.0
    %1708 = vmatprep.subr.mxu0 0.0
    %1709 = vmatpush1.msra.mxu0 0.0
    %1710 = vmatprep.subr.mxu0 0.0
    %1711 = vmatpush1.msra.mxu0 0.0
    %1712 = vmatprep.mubr.f32.mxu0 0.0
    %1713 = vmatmul.mubr.f32.gmra.mrb[0].mxu0 %v1616
    %v1714 = vpop.f32.mrb[0].mxu0
    %v1715 = vadd.f32 0.0, %v1714
    %v1716 = vpop.f32.mrb[0].mxu0
    %1717 = vmatprep.mubr.f32.mxu0 0.0
    %1718 = vmatmul.mubr.f32.gmra.mrb[0].mxu0 %v1619
    %v1719 = vpop.f32.mrb[0].mxu0
    %v1720 = vadd.f32 0.0, %v1719
    %v1721 = vpop.f32.mrb[0].mxu0
    %1722 = vmatprep.mubr.f32.mxu0 0.0
    %1723 = vmatmul.mubr.f32.gmra.mrb[0].mxu0 %v1622
    %v1724 = vpop.f32.mrb[0].mxu0
    %v1725 = vadd.f32 0.0, %v1724
    %v1726 = vpop.f32.mrb[0].mxu0
    %1727 = vmatprep.mubr.f32.mxu0 0.0
    %1728 = vmatmul.mubr.f32.gmra.mrb[0].mxu0 %v1625
    %v1729 = vpop.f32.mrb[0].mxu0
    %v1730 = vadd.f32 0.0, %v1729
    %v1731 = vpop.f32.mrb[0].mxu0
    %1732 = vmatprep.mubr.f32.mxu0 0.0
    %1733 = vmatmul.mubr.f32.gmra.mrb[0].mxu0 %v1628
    %v1734 = vpop.f32.mrb[0].mxu0
    %v1735 = vadd.f32 0.0, %v1734
    %v1736 = vpop.f32.mrb[0].mxu0
    %1737 = vmatprep.mubr.f32.mxu0 0.0
    %1738 = vmatmul.mubr.f32.gmra.mrb[0].mxu0 %v1631
    %v1739 = vpop.f32.mrb[0].mxu0
    %v1740 = vadd.f32 0.0, %v1739
    %v1741 = vpop.f32.mrb[0].mxu0
    %1742 = vmatprep.mubr.f32.mxu0 0.0
    %1743 = vmatmul.mubr.f32.gmra.mrb[0].mxu0 %v1634
    %v1744 = vpop.f32.mrb[0].mxu0
    %v1745 = vadd.f32 0.0, %v1744
    %v1746 = vpop.f32.mrb[0].mxu0
    %1747 = vmatprep.mubr.f32.mxu0 0.0
    %1748 = vmatmul.mubr.f32.gmra.mrb[0].mxu0 %v1637
    %v1749 = vpop.f32.mrb[0].mxu0
    %v1750 = vadd.f32 0.0, %v1749
    %v1751 = vpop.f32.mrb[0].mxu0
    %1752 = vmatprep.mubr.f32.mxu0 0.0
    %1753 = vmatmul.mubr.f32.gmra.mrb[0].mxu0 %v1640
    %v1754 = vpop.f32.mrb[0].mxu0
    %v1755 = vadd.f32 0.0, %v1754
    %v1756 = vpop.f32.mrb[0].mxu0
    %1757 = vmatprep.mubr.f32.mxu0 0.0
    %1758 = vmatmul.mubr.f32.gmra.mrb[0].mxu0 %v1643
    %v1759 = vpop.f32.mrb[0].mxu0
    %v1760 = vadd.f32 0.0, %v1759
    %v1761 = vpop.f32.mrb[0].mxu0
    %1762 = vmatprep.mubr.f32.mxu0 0.0
    %1763 = vmatmul.mubr.f32.gmra.mrb[0].mxu0 %v1646
    %v1764 = vpop.f32.mrb[0].mxu0
    %v1765 = vadd.f32 0.0, %v1764
    %v1766 = vpop.f32.mrb[0].mxu0
    %1767 = vdwg.mxu0
    %v1768 = vadd.f32 %v1588, %v1715
    %v1769 = vadd.f32 %v1589, %v1720
    %v1770 = vadd.f32 %v1590, %v1725
    %v1771 = vadd.f32 %v1591, %v1730
    %v1772 = vadd.f32 %v1592, %v1735
    %v1773 = vadd.f32 %v1593, %v1740
    %v1774 = vadd.f32 %v1594, %v1745
    %v1775 = vadd.f32 %v1595, %v1750
    %v1776 = vadd.f32 %v1596, %v1755
    %v1777 = vadd.f32 %v1597, %v1760
    %v1778 = vadd.f32 %v1598, %v1765
    %v1779 = vld [vmem:[#allocation2 + $0x11] sm:$0xff]
    %v1780 = vld [vmem:[#allocation2 + $0x19] sm:$0xff]
    %v1781 = vld [vmem:[#allocation2 + $0x21] sm:$0xff]
    %v1782 = vld [vmem:[#allocation2 + $0x29] sm:$0xff]
    %v1783 = vld [vmem:[#allocation2 + $0x31] sm:$0xff]
    %v1784 = vld [vmem:[#allocation2 + $0x39] sm:$0xff]
    %v1785 = vld [vmem:[#allocation2 + $0x41] sm:$0xff]
    %v1786 = vld [vmem:[#allocation2 + $0x49] sm:$0xff]
    %v1787 = vld [vmem:[#allocation2 + $0x51] sm:$0xff]
    %v1788 = vld [vmem:[#allocation2 + $0x59] sm:$0xff]
    %v1789 = vld [vmem:[#allocation2 + $0x61] sm:$0xff]
    %s1790 = scalar_lea.vmem %s3, 224
    %v1791 = vld [vmem:[%s1790] sm:$0xff]
    %v1792 = vld [vmem:[%s1790 + $0x8] sm:$0xff]
    %v1793 = vld [vmem:[%s1790 + $0x10] sm:$0xff]
    %v1794 = vld [vmem:[%s1790 + $0x18] sm:$0xff]
    %v1796 = vsel %vm527, %v1779, 0
    %v1799 = vsel %vm527, %v1780, 0
    %v1802 = vsel %vm527, %v1781, 0
    %v1805 = vsel %vm527, %v1782, 0
    %v1808 = vsel %vm527, %v1783, 0
    %v1811 = vsel %vm527, %v1784, 0
    %v1814 = vsel %vm527, %v1785, 0
    %v1817 = vsel %vm527, %v1786, 0
    %v1820 = vsel %vm527, %v1787, 0
    %v1823 = vsel %vm527, %v1788, 0
    %v1826 = vsel %vm527, %v1789, 0
    %1828 = vmatprep.subr.mxu0 0.0
    %1829 = vmatpush1.msra.mxu0 %v1791
    %1830 = vmatprep.subr.mxu0 0.0
    %1831 = vmatpush1.msra.mxu0 %v1792
    %1832 = vmatprep.subr.mxu0 0.0
    %1833 = vmatpush1.msra.mxu0 %v1793
    %1834 = vmatprep.subr.mxu0 0.0
    %1835 = vmatpush1.msra.mxu0 %v1794
    %1836 = vmatprep.subr.mxu0 0.0
    %1837 = vmatpush1.msra.mxu0 0.0
    %1838 = vmatprep.subr.mxu0 0.0
    %1839 = vmatpush1.msra.mxu0 0.0
    %1840 = vmatprep.subr.mxu0 0.0
    %1841 = vmatpush1.msra.mxu0 0.0
    %1842 = vmatprep.subr.mxu0 0.0
    %1843 = vmatpush1.msra.mxu0 0.0
    %1844 = vmatprep.subr.mxu0 0.0
    %1845 = vmatpush1.msra.mxu0 0.0
    %1846 = vmatprep.subr.mxu0 0.0
    %1847 = vmatpush1.msra.mxu0 0.0
    %1848 = vmatprep.subr.mxu0 0.0
    %1849 = vmatpush1.msra.mxu0 0.0
    %1850 = vmatprep.subr.mxu0 0.0
    %1851 = vmatpush1.msra.mxu0 0.0
    %1852 = vmatprep.subr.mxu0 0.0
    %1853 = vmatpush1.msra.mxu0 0.0
    %1854 = vmatprep.subr.mxu0 0.0
    %1855 = vmatpush1.msra.mxu0 0.0
    %1856 = vmatprep.subr.mxu0 0.0
    %1857 = vmatpush1.msra.mxu0 0.0
    %1858 = vmatprep.subr.mxu0 0.0
    %1859 = vmatpush1.msra.mxu0 0.0
    %1860 = vmatprep.subr.mxu0 0.0
    %1861 = vmatpush1.msra.mxu0 0.0
    %1862 = vmatprep.subr.mxu0 0.0
    %1863 = vmatpush1.msra.mxu0 0.0
    %1864 = vmatprep.subr.mxu0 0.0
    %1865 = vmatpush1.msra.mxu0 0.0
    %1866 = vmatprep.subr.mxu0 0.0
    %1867 = vmatpush1.msra.mxu0 0.0
    %1868 = vmatprep.subr.mxu0 0.0
    %1869 = vmatpush1.msra.mxu0 0.0
    %1870 = vmatprep.subr.mxu0 0.0
    %1871 = vmatpush1.msra.mxu0 0.0
    %1872 = vmatprep.subr.mxu0 0.0
    %1873 = vmatpush1.msra.mxu0 0.0
    %1874 = vmatprep.subr.mxu0 0.0
    %1875 = vmatpush1.msra.mxu0 0.0
    %1876 = vmatprep.subr.mxu0 0.0
    %1877 = vmatpush1.msra.mxu0 0.0
    %1878 = vmatprep.subr.mxu0 0.0
    %1879 = vmatpush1.msra.mxu0 0.0
    %1880 = vmatprep.subr.mxu0 0.0
    %1881 = vmatpush1.msra.mxu0 0.0
    %1882 = vmatprep.subr.mxu0 0.0
    %1883 = vmatpush1.msra.mxu0 0.0
    %1884 = vmatprep.subr.mxu0 0.0
    %1885 = vmatpush1.msra.mxu0 0.0
    %1886 = vmatprep.subr.mxu0 0.0
    %1887 = vmatpush1.msra.mxu0 0.0
    %1888 = vmatprep.subr.mxu0 0.0
    %1889 = vmatpush1.msra.mxu0 0.0
    %1890 = vmatprep.subr.mxu0 0.0
    %1891 = vmatpush1.msra.mxu0 0.0
    %1892 = vmatprep.mubr.f32.mxu0 0.0
    %1893 = vmatmul.mubr.f32.gmra.mrb[0].mxu0 %v1796
    %v1894 = vpop.f32.mrb[0].mxu0
    %v1895 = vadd.f32 0.0, %v1894
    %v1896 = vpop.f32.mrb[0].mxu0
    %1897 = vmatprep.mubr.f32.mxu0 0.0
    %1898 = vmatmul.mubr.f32.gmra.mrb[0].mxu0 %v1799
    %v1899 = vpop.f32.mrb[0].mxu0
    %v1900 = vadd.f32 0.0, %v1899
    %v1901 = vpop.f32.mrb[0].mxu0
    %1902 = vmatprep.mubr.f32.mxu0 0.0
    %1903 = vmatmul.mubr.f32.gmra.mrb[0].mxu0 %v1802
    %v1904 = vpop.f32.mrb[0].mxu0
    %v1905 = vadd.f32 0.0, %v1904
    %v1906 = vpop.f32.mrb[0].mxu0
    %1907 = vmatprep.mubr.f32.mxu0 0.0
    %1908 = vmatmul.mubr.f32.gmra.mrb[0].mxu0 %v1805
    %v1909 = vpop.f32.mrb[0].mxu0
    %v1910 = vadd.f32 0.0, %v1909
    %v1911 = vpop.f32.mrb[0].mxu0
    %1912 = vmatprep.mubr.f32.mxu0 0.0
    %1913 = vmatmul.mubr.f32.gmra.mrb[0].mxu0 %v1808
    %v1914 = vpop.f32.mrb[0].mxu0
    %v1915 = vadd.f32 0.0, %v1914
    %v1916 = vpop.f32.mrb[0].mxu0
    %1917 = vmatprep.mubr.f32.mxu0 0.0
    %1918 = vmatmul.mubr.f32.gmra.mrb[0].mxu0 %v1811
    %v1919 = vpop.f32.mrb[0].mxu0
    %v1920 = vadd.f32 0.0, %v1919
    %v1921 = vpop.f32.mrb[0].mxu0
    %1922 = vmatprep.mubr.f32.mxu0 0.0
    %1923 = vmatmul.mubr.f32.gmra.mrb[0].mxu0 %v1814
    %v1924 = vpop.f32.mrb[0].mxu0
    %v1925 = vadd.f32 0.0, %v1924
    %v1926 = vpop.f32.mrb[0].mxu0
    %1927 = vmatprep.mubr.f32.mxu0 0.0
    %1928 = vmatmul.mubr.f32.gmra.mrb[0].mxu0 %v1817
    %v1929 = vpop.f32.mrb[0].mxu0
    %v1930 = vadd.f32 0.0, %v1929
    %v1931 = vpop.f32.mrb[0].mxu0
    %1932 = vmatprep.mubr.f32.mxu0 0.0
    %1933 = vmatmul.mubr.f32.gmra.mrb[0].mxu0 %v1820
    %v1934 = vpop.f32.mrb[0].mxu0
    %v1935 = vadd.f32 0.0, %v1934
    %v1936 = vpop.f32.mrb[0].mxu0
    %1937 = vmatprep.mubr.f32.mxu0 0.0
    %1938 = vmatmul.mubr.f32.gmra.mrb[0].mxu0 %v1823
    %v1939 = vpop.f32.mrb[0].mxu0
    %v1940 = vadd.f32 0.0, %v1939
    %v1941 = vpop.f32.mrb[0].mxu0
    %1942 = vmatprep.mubr.f32.mxu0 0.0
    %1943 = vmatmul.mubr.f32.gmra.mrb[0].mxu0 %v1826
    %v1944 = vpop.f32.mrb[0].mxu0
    %v1945 = vadd.f32 0.0, %v1944
    %v1946 = vpop.f32.mrb[0].mxu0
    %1947 = vdwg.mxu0
    %v1948 = vadd.f32 %v1768, %v1895
    %v1949 = vadd.f32 %v1769, %v1900
    %v1950 = vadd.f32 %v1770, %v1905
    %v1951 = vadd.f32 %v1771, %v1910
    %v1952 = vadd.f32 %v1772, %v1915
    %v1953 = vadd.f32 %v1773, %v1920
    %v1954 = vadd.f32 %v1774, %v1925
    %v1955 = vadd.f32 %v1775, %v1930
    %v1956 = vadd.f32 %v1776, %v1935
    %v1957 = vadd.f32 %v1777, %v1940
    %v1958 = vadd.f32 %v1778, %v1945
    %v1959 = vld [vmem:[#allocation2 + $0x12] sm:$0xff]
    %v1960 = vld [vmem:[#allocation2 + $0x1a] sm:$0xff]
    %v1961 = vld [vmem:[#allocation2 + $0x22] sm:$0xff]
    %v1962 = vld [vmem:[#allocation2 + $0x2a] sm:$0xff]
    %v1963 = vld [vmem:[#allocation2 + $0x32] sm:$0xff]
    %v1964 = vld [vmem:[#allocation2 + $0x3a] sm:$0xff]
    %v1965 = vld [vmem:[#allocation2 + $0x42] sm:$0xff]
    %v1966 = vld [vmem:[#allocation2 + $0x4a] sm:$0xff]
    %v1967 = vld [vmem:[#allocation2 + $0x52] sm:$0xff]
    %v1968 = vld [vmem:[#allocation2 + $0x5a] sm:$0xff]
    %v1969 = vld [vmem:[#allocation2 + $0x62] sm:$0xff]
    %s1970 = scalar_lea.vmem %s3, 256
    %v1971 = vld [vmem:[%s1970] sm:$0xff]
    %v1972 = vld [vmem:[%s1970 + $0x8] sm:$0xff]
    %v1973 = vld [vmem:[%s1970 + $0x10] sm:$0xff]
    %v1974 = vld [vmem:[%s1970 + $0x18] sm:$0xff]
    %v1976 = vsel %vm527, %v1959, 0
    %v1979 = vsel %vm527, %v1960, 0
    %v1982 = vsel %vm527, %v1961, 0
    %v1985 = vsel %vm527, %v1962, 0
    %v1988 = vsel %vm527, %v1963, 0
    %v1991 = vsel %vm527, %v1964, 0
    %v1994 = vsel %vm527, %v1965, 0
    %v1997 = vsel %vm527, %v1966, 0
    %v2000 = vsel %vm527, %v1967, 0
    %v2003 = vsel %vm527, %v1968, 0
    %v2006 = vsel %vm527, %v1969, 0
    %2008 = vmatprep.subr.mxu0 0.0
    %2009 = vmatpush1.msra.mxu0 %v1971
    %2010 = vmatprep.subr.mxu0 0.0
    %2011 = vmatpush1.msra.mxu0 %v1972
    %2012 = vmatprep.subr.mxu0 0.0
    %2013 = vmatpush1.msra.mxu0 %v1973
    %2014 = vmatprep.subr.mxu0 0.0
    %2015 = vmatpush1.msra.mxu0 %v1974
    %2016 = vmatprep.subr.mxu0 0.0
    %2017 = vmatpush1.msra.mxu0 0.0
    %2018 = vmatprep.subr.mxu0 0.0
    %2019 = vmatpush1.msra.mxu0 0.0
    %2020 = vmatprep.subr.mxu0 0.0
    %2021 = vmatpush1.msra.mxu0 0.0
    %2022 = vmatprep.subr.mxu0 0.0
    %2023 = vmatpush1.msra.mxu0 0.0
    %2024 = vmatprep.subr.mxu0 0.0
    %2025 = vmatpush1.msra.mxu0 0.0
    %2026 = vmatprep.subr.mxu0 0.0
    %2027 = vmatpush1.msra.mxu0 0.0
    %2028 = vmatprep.subr.mxu0 0.0
    %2029 = vmatpush1.msra.mxu0 0.0
    %2030 = vmatprep.subr.mxu0 0.0
    %2031 = vmatpush1.msra.mxu0 0.0
    %2032 = vmatprep.subr.mxu0 0.0
    %2033 = vmatpush1.msra.mxu0 0.0
    %2034 = vmatprep.subr.mxu0 0.0
    %2035 = vmatpush1.msra.mxu0 0.0
    %2036 = vmatprep.subr.mxu0 0.0
    %2037 = vmatpush1.msra.mxu0 0.0
    %2038 = vmatprep.subr.mxu0 0.0
    %2039 = vmatpush1.msra.mxu0 0.0
    %2040 = vmatprep.subr.mxu0 0.0
    %2041 = vmatpush1.msra.mxu0 0.0
    %2042 = vmatprep.subr.mxu0 0.0
    %2043 = vmatpush1.msra.mxu0 0.0
    %2044 = vmatprep.subr.mxu0 0.0
    %2045 = vmatpush1.msra.mxu0 0.0
    %2046 = vmatprep.subr.mxu0 0.0
    %2047 = vmatpush1.msra.mxu0 0.0
    %2048 = vmatprep.subr.mxu0 0.0
    %2049 = vmatpush1.msra.mxu0 0.0
    %2050 = vmatprep.subr.mxu0 0.0
    %2051 = vmatpush1.msra.mxu0 0.0
    %2052 = vmatprep.subr.mxu0 0.0
    %2053 = vmatpush1.msra.mxu0 0.0
    %2054 = vmatprep.subr.mxu0 0.0
    %2055 = vmatpush1.msra.mxu0 0.0
    %2056 = vmatprep.subr.mxu0 0.0
    %2057 = vmatpush1.msra.mxu0 0.0
    %2058 = vmatprep.subr.mxu0 0.0
    %2059 = vmatpush1.msra.mxu0 0.0
    %2060 = vmatprep.subr.mxu0 0.0
    %2061 = vmatpush1.msra.mxu0 0.0
    %2062 = vmatprep.subr.mxu0 0.0
    %2063 = vmatpush1.msra.mxu0 0.0
    %2064 = vmatprep.subr.mxu0 0.0
    %2065 = vmatpush1.msra.mxu0 0.0
    %2066 = vmatprep.subr.mxu0 0.0
    %2067 = vmatpush1.msra.mxu0 0.0
    %2068 = vmatprep.subr.mxu0 0.0
    %2069 = vmatpush1.msra.mxu0 0.0
    %2070 = vmatprep.subr.mxu0 0.0
    %2071 = vmatpush1.msra.mxu0 0.0
    %2072 = vmatprep.mubr.f32.mxu0 0.0
    %2073 = vmatmul.mubr.f32.gmra.mrb[0].mxu0 %v1976
    %v2074 = vpop.f32.mrb[0].mxu0
    %v2075 = vadd.f32 0.0, %v2074
    %v2076 = vpop.f32.mrb[0].mxu0
    %2077 = vmatprep.mubr.f32.mxu0 0.0
    %2078 = vmatmul.mubr.f32.gmra.mrb[0].mxu0 %v1979
    %v2079 = vpop.f32.mrb[0].mxu0
    %v2080 = vadd.f32 0.0, %v2079
    %v2081 = vpop.f32.mrb[0].mxu0
    %2082 = vmatprep.mubr.f32.mxu0 0.0
    %2083 = vmatmul.mubr.f32.gmra.mrb[0].mxu0 %v1982
    %v2084 = vpop.f32.mrb[0].mxu0
    %v2085 = vadd.f32 0.0, %v2084
    %v2086 = vpop.f32.mrb[0].mxu0
    %2087 = vmatprep.mubr.f32.mxu0 0.0
    %2088 = vmatmul.mubr.f32.gmra.mrb[0].mxu0 %v1985
    %v2089 = vpop.f32.mrb[0].mxu0
    %v2090 = vadd.f32 0.0, %v2089
    %v2091 = vpop.f32.mrb[0].mxu0
    %2092 = vmatprep.mubr.f32.mxu0 0.0
    %2093 = vmatmul.mubr.f32.gmra.mrb[0].mxu0 %v1988
    %v2094 = vpop.f32.mrb[0].mxu0
    %v2095 = vadd.f32 0.0, %v2094
    %v2096 = vpop.f32.mrb[0].mxu0
    %2097 = vmatprep.mubr.f32.mxu0 0.0
    %2098 = vmatmul.mubr.f32.gmra.mrb[0].mxu0 %v1991
    %v2099 = vpop.f32.mrb[0].mxu0
    %v2100 = vadd.f32 0.0, %v2099
    %v2101 = vpop.f32.mrb[0].mxu0
    %2102 = vmatprep.mubr.f32.mxu0 0.0
    %2103 = vmatmul.mubr.f32.gmra.mrb[0].mxu0 %v1994
    %v2104 = vpop.f32.mrb[0].mxu0
    %v2105 = vadd.f32 0.0, %v2104
    %v2106 = vpop.f32.mrb[0].mxu0
    %2107 = vmatprep.mubr.f32.mxu0 0.0
    %2108 = vmatmul.mubr.f32.gmra.mrb[0].mxu0 %v1997
    %v2109 = vpop.f32.mrb[0].mxu0
    %v2110 = vadd.f32 0.0, %v2109
    %v2111 = vpop.f32.mrb[0].mxu0
    %2112 = vmatprep.mubr.f32.mxu0 0.0
    %2113 = vmatmul.mubr.f32.gmra.mrb[0].mxu0 %v2000
    %v2114 = vpop.f32.mrb[0].mxu0
    %v2115 = vadd.f32 0.0, %v2114
    %v2116 = vpop.f32.mrb[0].mxu0
    %2117 = vmatprep.mubr.f32.mxu0 0.0
    %2118 = vmatmul.mubr.f32.gmra.mrb[0].mxu0 %v2003
    %v2119 = vpop.f32.mrb[0].mxu0
    %v2120 = vadd.f32 0.0, %v2119
    %v2121 = vpop.f32.mrb[0].mxu0
    %2122 = vmatprep.mubr.f32.mxu0 0.0
    %2123 = vmatmul.mubr.f32.gmra.mrb[0].mxu0 %v2006
    %v2124 = vpop.f32.mrb[0].mxu0
    %v2125 = vadd.f32 0.0, %v2124
    %v2126 = vpop.f32.mrb[0].mxu0
    %2127 = vdwg.mxu0
    %v2128 = vadd.f32 %v1948, %v2075
    %v2129 = vadd.f32 %v1949, %v2080
    %v2130 = vadd.f32 %v1950, %v2085
    %v2131 = vadd.f32 %v1951, %v2090
    %v2132 = vadd.f32 %v1952, %v2095
    %v2133 = vadd.f32 %v1953, %v2100
    %v2134 = vadd.f32 %v1954, %v2105
    %v2135 = vadd.f32 %v1955, %v2110
    %v2136 = vadd.f32 %v1956, %v2115
    %v2137 = vadd.f32 %v1957, %v2120
    %v2138 = vadd.f32 %v1958, %v2125
    %v2139 = vld [vmem:[%s4] sm:$0x1]
    %v2141 = vlaneseq
    %v2142 = vshrl.u32 %v2141, 7
    %v2143 = vsub.s32 0, %v2142
    %v2144 = vrot.slane %v2139, %v2143
    %v2146 = vadd.f32 %v2128, %v2144
    %v2147 = vadd.f32 %v2129, %v2144
    %v2148 = vadd.f32 %v2130, %v2144
    %v2149 = vadd.f32 %v2131, %v2144
    %v2150 = vadd.f32 %v2132, %v2144
    %v2151 = vadd.f32 %v2133, %v2144
    %v2152 = vadd.f32 %v2134, %v2144
    %v2153 = vadd.f32 %v2135, %v2144
    %v2154 = vadd.f32 %v2136, %v2144
    %v2155 = vadd.f32 %v2137, %v2144
    %v2156 = vadd.f32 %v2138, %v2144
    %v2157 = vmax.f32 %v2146, 0.0
    %v2158 = vmax.f32 %v2147, 0.0
    %v2159 = vmax.f32 %v2148, 0.0
    %v2160 = vmax.f32 %v2149, 0.0
    %v2161 = vmax.f32 %v2150, 0.0
    %v2162 = vmax.f32 %v2151, 0.0
    %v2163 = vmax.f32 %v2152, 0.0
    %v2164 = vmax.f32 %v2153, 0.0
    %v2165 = vmax.f32 %v2154, 0.0
    %v2166 = vmax.f32 %v2155, 0.0
    %v2167 = vmax.f32 %v2156, 0.0
    %2168 = vst [vmem:[#allocation3] sm:$0xff] %v2157
    %2169 = vst [vmem:[#allocation3 + $0x8] sm:$0xff] %v2158
    %2170 = vst [vmem:[#allocation3 + $0x10] sm:$0xff] %v2159
    %2171 = vst [vmem:[#allocation3 + $0x18] sm:$0xff] %v2160
    %2172 = vst [vmem:[#allocation3 + $0x20] sm:$0xff] %v2161
    %2173 = vst [vmem:[#allocation3 + $0x28] sm:$0xff] %v2162
    %2174 = vst [vmem:[#allocation3 + $0x30] sm:$0xff] %v2163
    %2175 = vst [vmem:[#allocation3 + $0x38] sm:$0xff] %v2164
    %2176 = vst [vmem:[#allocation3 + $0x40] sm:$0xff] %v2165
    %2177 = vst [vmem:[#allocation3 + $0x48] sm:$0xff] %v2166
    %2178 = vst [vmem:[#allocation3 + $0x50] sm:$0xff] %v2167
    %v2179 = vld [vmem:[#allocation3] sm:$0xf]
    %v2180 = vld [vmem:[#allocation3 + $0x8] sm:$0xf]
    %v2181 = vmax.f32 %v2179, %v2180
    %v2183 = vrot.slane %v2181, 1
    %v2185 = vmax.f32 %v2181, %v2183
    %2186 = vst [vmem:[#allocation4] sm:$0x1] %v2185
    %v2189 = vunpack.c.l.s4 1983009808
    %v2190 = vunpack.c.0.s8 %v2189
    %v2191 = vlaneseq
    %v2192 = vshrl.u32 %v2191, 7
    %v2193 = vsub.s32 %v2190, %v2192
    %v2194 = vrot.slane %v2185, %v2193
    %v2195 = vcombine.high %v2194, %v2194
    %2197 = vst [vmem:[#allocation4 + $0x2] sm:$0x1] %v2195
    %v2198 = vld [vmem:[#allocation3 + $0x10] sm:$0xf]
    %v2199 = vld [vmem:[#allocation3 + $0x18] sm:$0xf]
    %v2200 = vmax.f32 %v2198, %v2199
    %v2202 = vrot.slane %v2200, 1
    %v2204 = vmax.f32 %v2200, %v2202
    %2205 = vst [vmem:[#allocation4 + $0x4] sm:$0x1] %v2204
    %v2208 = vunpack.c.l.s4 1983009808
    %v2209 = vunpack.c.0.s8 %v2208
    %v2210 = vlaneseq
    %v2211 = vshrl.u32 %v2210, 7
    %v2212 = vsub.s32 %v2209, %v2211
    %v2213 = vrot.slane %v2204, %v2212
    %v2214 = vcombine.high %v2213, %v2213
    %2216 = vst [vmem:[#allocation4 + $0x6] sm:$0x1] %v2214
    %v2217 = vld [vmem:[#allocation3 + $0x38] sm:$0xf]
    %v2218 = vld [vmem:[#allocation3 + $0x40] sm:$0xf]
    %v2219 = vmax.f32 %v2217, %v2218
    %v2221 = vrot.slane %v2219, 1
    %v2223 = vmax.f32 %v2219, %v2221
    %2224 = vst [vmem:[#allocation4 + $0x1] sm:$0x1] %v2223
    %v2227 = vunpack.c.l.s4 1983009808
    %v2228 = vunpack.c.0.s8 %v2227
    %v2229 = vlaneseq
    %v2230 = vshrl.u32 %v2229, 7
    %v2231 = vsub.s32 %v2228, %v2230
    %v2232 = vrot.slane %v2223, %v2231
    %v2233 = vcombine.high %v2232, %v2232
    %2235 = vst [vmem:[#allocation4 + $0x3] sm:$0x1] %v2233
    %v2236 = vld [vmem:[#allocation3 + $0x48] sm:$0xf]
    %v2237 = vld [vmem:[#allocation3 + $0x50] sm:$0xf]
    %v2238 = vmax.f32 %v2236, %v2237
    %v2240 = vrot.slane %v2238, 1
    %v2242 = vmax.f32 %v2238, %v2240
    %2243 = vst [vmem:[#allocation4 + $0x5] sm:$0x1] %v2242
    %v2246 = vunpack.c.l.s4 1983009808
    %v2247 = vunpack.c.0.s8 %v2246
    %v2248 = vlaneseq
    %v2249 = vshrl.u32 %v2248, 7
    %v2250 = vsub.s32 %v2247, %v2249
    %v2251 = vrot.slane %v2242, %v2250
    %v2252 = vcombine.high %v2251, %v2251
    %2254 = vst [vmem:[#allocation4 + $0x7] sm:$0x1] %v2252
    %v2255 = vld [vmem:[#allocation4] sm:$0xff]
    %v2256 = vld [vmem:[%s5] sm:$0xff]
    %v2257 = vld [vmem:[%s5 + $0x8] sm:$0xff]
    %v2258 = vld [vmem:[%s5 + $0x10] sm:$0xff]
    %v2259 = vld [vmem:[%s5 + $0x18] sm:$0xff]
    %v2260 = vld [vmem:[%s5 + $0x20] sm:$0xff]
    %v2261 = vld [vmem:[%s5 + $0x28] sm:$0xff]
    %v2262 = vld [vmem:[%s5 + $0x30] sm:$0xff]
    %v2263 = vld [vmem:[%s5 + $0x38] sm:$0xff]
    %v2264 = vld [vmem:[%s5 + $0x40] sm:$0xff]
    %v2265 = vld [vmem:[%s5 + $0x48] sm:$0xff]
    %v2266 = vld [vmem:[%s5 + $0x50] sm:$0xff]
    %v2267 = vld [vmem:[%s5 + $0x58] sm:$0xff]
    %v2268 = vld [vmem:[%s5 + $0x60] sm:$0xff]
    %v2269 = vld [vmem:[%s5 + $0x68] sm:$0xff]
    %v2270 = vld [vmem:[%s5 + $0x70] sm:$0xff]
    %v2271 = vld [vmem:[%s5 + $0x78] sm:$0xff]
    %v2272 = vld [vmem:[%s5 + $0x80] sm:$0xff]
    %v2273 = vld [vmem:[%s5 + $0x88] sm:$0xff]
    %v2274 = vld [vmem:[%s5 + $0x90] sm:$0xff]
    %v2275 = vld [vmem:[%s5 + $0x98] sm:$0xff]
    %v2276 = vld [vmem:[%s5 + $0xa0] sm:$0xff]
    %v2277 = vld [vmem:[%s5 + $0xa8] sm:$0xff]
    %v2278 = vld [vmem:[%s5 + $0xb0] sm:$0xff]
    %v2279 = vld [vmem:[%s5 + $0xb8] sm:$0xff]
    %v2280 = vld [vmem:[%s5 + $0xc0] sm:$0xff]
    %v2281 = vld [vmem:[%s5 + $0xc8] sm:$0xff]
    %v2282 = vld [vmem:[%s5 + $0xd0] sm:$0xff]
    %v2283 = vld [vmem:[%s5 + $0xd8] sm:$0xff]
    %v2284 = vld [vmem:[%s5 + $0xe0] sm:$0xff]
    %v2285 = vld [vmem:[%s5 + $0xe8] sm:$0xff]
    %v2286 = vld [vmem:[%s5 + $0xf0] sm:$0xff]
    %v2287 = vld [vmem:[%s5 + $0xf8] sm:$0xff]
    %v2288 = vld [vmem:[%s5 + $0x100] sm:$0xff]
    %v2289 = vld [vmem:[%s5 + $0x108] sm:$0xff]
    %v2290 = vld [vmem:[%s5 + $0x110] sm:$0xff]
    %v2291 = vld [vmem:[%s5 + $0x118] sm:$0xff]
    %v2292 = vld [vmem:[%s5 + $0x120] sm:$0xff]
    %v2293 = vld [vmem:[%s5 + $0x128] sm:$0xff]
    %v2294 = vld [vmem:[%s5 + $0x130] sm:$0xff]
    %v2295 = vld [vmem:[%s5 + $0x138] sm:$0xff]
    %v2296 = vld [vmem:[%s5 + $0x140] sm:$0xff]
    %v2297 = vld [vmem:[%s5 + $0x148] sm:$0xff]
    %v2298 = vld [vmem:[%s5 + $0x150] sm:$0xff]
    %v2299 = vld [vmem:[%s5 + $0x158] sm:$0xff]
    %v2300 = vld [vmem:[%s5 + $0x160] sm:$0xff]
    %v2301 = vld [vmem:[%s5 + $0x168] sm:$0xff]
    %v2302 = vld [vmem:[%s5 + $0x170] sm:$0xff]
    %v2303 = vld [vmem:[%s5 + $0x178] sm:$0xff]
    %v2304 = vld [vmem:[%s5 + $0x180] sm:$0xff]
    %v2305 = vld [vmem:[%s5 + $0x188] sm:$0xff]
    %v2306 = vld [vmem:[%s5 + $0x190] sm:$0xff]
    %v2307 = vld [vmem:[%s5 + $0x198] sm:$0xff]
    %v2308 = vld [vmem:[%s5 + $0x1a0] sm:$0xff]
    %v2309 = vld [vmem:[%s5 + $0x1a8] sm:$0xff]
    %v2310 = vld [vmem:[%s5 + $0x1b0] sm:$0xff]
    %v2311 = vld [vmem:[%s5 + $0x1b8] sm:$0xff]
    %v2312 = vld [vmem:[%s5 + $0x1c0] sm:$0xff]
    %v2313 = vld [vmem:[%s5 + $0x1c8] sm:$0xff]
    %v2314 = vld [vmem:[%s5 + $0x1d0] sm:$0xff]
    %v2315 = vld [vmem:[%s5 + $0x1d8] sm:$0xff]
    %v2316 = vld [vmem:[%s5 + $0x1e0] sm:$0xff]
    %v2317 = vld [vmem:[%s5 + $0x1e8] sm:$0xff]
    %v2318 = vld [vmem:[%s5 + $0x1f0] sm:$0xff]
    %v2319 = vld [vmem:[%s5 + $0x1f8] sm:$0xff]
    %v2320 = vld [vmem:[%s5 + $0x200] sm:$0xff]
    %v2321 = vld [vmem:[%s5 + $0x208] sm:$0xff]
    %v2322 = vld [vmem:[%s5 + $0x210] sm:$0xff]
    %v2323 = vld [vmem:[%s5 + $0x218] sm:$0xff]
    %v2324 = vld [vmem:[%s5 + $0x220] sm:$0xff]
    %v2325 = vld [vmem:[%s5 + $0x228] sm:$0xff]
    %v2326 = vld [vmem:[%s5 + $0x230] sm:$0xff]
    %v2327 = vld [vmem:[%s5 + $0x238] sm:$0xff]
    %v2328 = vld [vmem:[%s5 + $0x240] sm:$0xff]
    %v2329 = vld [vmem:[%s5 + $0x248] sm:$0xff]
    %v2330 = vld [vmem:[%s5 + $0x250] sm:$0xff]
    %v2331 = vld [vmem:[%s5 + $0x258] sm:$0xff]
    %v2332 = vld [vmem:[%s5 + $0x260] sm:$0xff]
    %v2333 = vld [vmem:[%s5 + $0x268] sm:$0xff]
    %v2334 = vld [vmem:[%s5 + $0x270] sm:$0xff]
    %v2335 = vld [vmem:[%s5 + $0x278] sm:$0xff]
    %v2336 = vld [vmem:[%s5 + $0x280] sm:$0xff]
    %v2337 = vld [vmem:[%s5 + $0x288] sm:$0xff]
    %v2338 = vld [vmem:[%s5 + $0x290] sm:$0xff]
    %v2339 = vld [vmem:[%s5 + $0x298] sm:$0xff]
    %v2340 = vld [vmem:[%s5 + $0x2a0] sm:$0xff]
    %v2341 = vld [vmem:[%s5 + $0x2a8] sm:$0xff]
    %v2342 = vld [vmem:[%s5 + $0x2b0] sm:$0xff]
    %v2343 = vld [vmem:[%s5 + $0x2b8] sm:$0xff]
    %v2344 = vld [vmem:[%s5 + $0x2c0] sm:$0xff]
    %v2345 = vld [vmem:[%s5 + $0x2c8] sm:$0xff]
    %v2346 = vld [vmem:[%s5 + $0x2d0] sm:$0xff]
    %v2347 = vld [vmem:[%s5 + $0x2d8] sm:$0xff]
    %v2348 = vld [vmem:[%s5 + $0x2e0] sm:$0xff]
    %v2349 = vld [vmem:[%s5 + $0x2e8] sm:$0xff]
    %v2350 = vld [vmem:[%s5 + $0x2f0] sm:$0xff]
    %v2351 = vld [vmem:[%s5 + $0x2f8] sm:$0xff]
    %v2352 = vld [vmem:[%s5 + $0x300] sm:$0xff]
    %v2353 = vld [vmem:[%s5 + $0x308] sm:$0xff]
    %v2354 = vld [vmem:[%s5 + $0x310] sm:$0xff]
    %v2355 = vld [vmem:[%s5 + $0x318] sm:$0xff]
    %v2356 = vld [vmem:[%s5 + $0x320] sm:$0xff]
    %v2357 = vld [vmem:[%s5 + $0x328] sm:$0xff]
    %v2358 = vld [vmem:[%s5 + $0x330] sm:$0xff]
    %v2359 = vld [vmem:[%s5 + $0x338] sm:$0xff]
    %v2360 = vld [vmem:[%s5 + $0x340] sm:$0xff]
    %v2361 = vld [vmem:[%s5 + $0x348] sm:$0xff]
    %v2362 = vld [vmem:[%s5 + $0x350] sm:$0xff]
    %v2363 = vld [vmem:[%s5 + $0x358] sm:$0xff]
    %v2364 = vld [vmem:[%s5 + $0x360] sm:$0xff]
    %v2365 = vld [vmem:[%s5 + $0x368] sm:$0xff]
    %v2366 = vld [vmem:[%s5 + $0x370] sm:$0xff]
    %v2367 = vld [vmem:[%s5 + $0x378] sm:$0xff]
    %v2368 = vld [vmem:[%s5 + $0x380] sm:$0xff]
    %v2369 = vld [vmem:[%s5 + $0x388] sm:$0xff]
    %v2370 = vld [vmem:[%s5 + $0x390] sm:$0xff]
    %v2371 = vld [vmem:[%s5 + $0x398] sm:$0xff]
    %v2372 = vld [vmem:[%s5 + $0x3a0] sm:$0xff]
    %v2373 = vld [vmem:[%s5 + $0x3a8] sm:$0xff]
    %v2374 = vld [vmem:[%s5 + $0x3b0] sm:$0xff]
    %v2375 = vld [vmem:[%s5 + $0x3b8] sm:$0xff]
    %v2376 = vld [vmem:[%s5 + $0x3c0] sm:$0xff]
    %v2377 = vld [vmem:[%s5 + $0x3c8] sm:$0xff]
    %v2378 = vld [vmem:[%s5 + $0x3d0] sm:$0xff]
    %v2379 = vld [vmem:[%s5 + $0x3d8] sm:$0xff]
    %v2380 = vld [vmem:[%s5 + $0x3e0] sm:$0xff]
    %v2381 = vld [vmem:[%s5 + $0x3e8] sm:$0xff]
    %v2382 = vld [vmem:[%s5 + $0x3f0] sm:$0xff]
    %v2383 = vld [vmem:[%s5 + $0x3f8] sm:$0xff]
    %v2384 = vld [vmem:[%s6] sm:$0x3]
    %v2386 = vlaneseq
    %v2387 = vshrl.u32 %v2386, 7
    %v2388 = vsub.s32 0, %v2387
    %v2389 = vrot.slane %v2384, %v2388
    %v2390 = vlaneseq
    %v2391 = vshrl.u32 %v2390, 7
    %v2392 = vsub.s32 1, %v2391
    %v2393 = vrot.slane %v2384, %v2392
    %v2397 = vcombine.high %v2255, %v2255
    %v2399 = vunpack.c.l.s4 1983009808
    %v2400 = vunpack.c.0.s8 %v2399
    %v2401 = vlaneseq
    %v2402 = vshrl.u32 %v2401, 7
    %v2403 = vsub.s32 %v2400, %v2402
    %v2404 = vrot.slane %v2255, %v2403
    %v2406 = vunpack.c.l.s4 1983009808
    %v2407 = vunpack.c.0.s8 %v2406
    %v2408 = vlaneseq
    %v2409 = vshrl.u32 %v2408, 7
    %v2410 = vsub.s32 %v2407, %v2409
    %v2411 = vrot.slane %v2397, %v2410
    %v2412 = vcombine.high %v2404, %v2404
    %v2413 = vcombine.high %v2411, %v2411
    %2418 = vmatprep.subr.mxu0 %v2257
    %2419 = vmatpush1.msra.mxu0 %v2256
    %2420 = vmatprep.subr.mxu0 %v2259
    %2421 = vmatpush1.msra.mxu0 %v2258
    %2422 = vmatprep.subr.mxu0 %v2261
    %2423 = vmatpush1.msra.mxu0 %v2260
    %2424 = vmatprep.subr.mxu0 %v2263
    %2425 = vmatpush1.msra.mxu0 %v2262
    %2426 = vmatprep.subr.mxu0 %v2265
    %2427 = vmatpush1.msra.mxu0 %v2264
    %2428 = vmatprep.subr.mxu0 %v2267
    %2429 = vmatpush1.msra.mxu0 %v2266
    %2430 = vmatprep.subr.mxu0 %v2269
    %2431 = vmatpush1.msra.mxu0 %v2268
    %2432 = vmatprep.subr.mxu0 %v2271
    %2433 = vmatpush1.msra.mxu0 %v2270
    %2434 = vmatprep.subr.mxu0 %v2273
    %2435 = vmatpush1.msra.mxu0 %v2272
    %2436 = vmatprep.subr.mxu0 %v2275
    %2437 = vmatpush1.msra.mxu0 %v2274
    %2438 = vmatprep.subr.mxu0 %v2277
    %2439 = vmatpush1.msra.mxu0 %v2276
    %2440 = vmatprep.subr.mxu0 %v2279
    %2441 = vmatpush1.msra.mxu0 %v2278
    %2442 = vmatprep.subr.mxu0 %v2281
    %2443 = vmatpush1.msra.mxu0 %v2280
    %2444 = vmatprep.subr.mxu0 %v2283
    %2445 = vmatpush1.msra.mxu0 %v2282
    %2446 = vmatprep.subr.mxu0 %v2285
    %2447 = vmatpush1.msra.mxu0 %v2284
    %2448 = vmatprep.subr.mxu0 %v2287
    %2449 = vmatpush1.msra.mxu0 %v2286
    %2450 = vmatprep.subr.mxu0 %v2289
    %2451 = vmatpush1.msra.mxu0 %v2288
    %2452 = vmatprep.subr.mxu0 %v2291
    %2453 = vmatpush1.msra.mxu0 %v2290
    %2454 = vmatprep.subr.mxu0 %v2293
    %2455 = vmatpush1.msra.mxu0 %v2292
    %2456 = vmatprep.subr.mxu0 %v2295
    %2457 = vmatpush1.msra.mxu0 %v2294
    %2458 = vmatprep.subr.mxu0 %v2297
    %2459 = vmatpush1.msra.mxu0 %v2296
    %2460 = vmatprep.subr.mxu0 %v2299
    %2461 = vmatpush1.msra.mxu0 %v2298
    %2462 = vmatprep.subr.mxu0 %v2301
    %2463 = vmatpush1.msra.mxu0 %v2300
    %2464 = vmatprep.subr.mxu0 %v2303
    %2465 = vmatpush1.msra.mxu0 %v2302
    %2466 = vmatprep.subr.mxu0 %v2305
    %2467 = vmatpush1.msra.mxu0 %v2304
    %2468 = vmatprep.subr.mxu0 %v2307
    %2469 = vmatpush1.msra.mxu0 %v2306
    %2470 = vmatprep.subr.mxu0 %v2309
    %2471 = vmatpush1.msra.mxu0 %v2308
    %2472 = vmatprep.subr.mxu0 %v2311
    %2473 = vmatpush1.msra.mxu0 %v2310
    %2474 = vmatprep.subr.mxu0 %v2313
    %2475 = vmatpush1.msra.mxu0 %v2312
    %2476 = vmatprep.subr.mxu0 %v2315
    %2477 = vmatpush1.msra.mxu0 %v2314
    %2478 = vmatprep.subr.mxu0 %v2317
    %2479 = vmatpush1.msra.mxu0 %v2316
    %2480 = vmatprep.subr.mxu0 %v2319
    %2481 = vmatpush1.msra.mxu0 %v2318
    %2482 = vmatprep.mubr.f32.mxu0 %v2412
    %2483 = vmatmul.mubr.f32.gmra.mrb[0].mxu0 %v2404
    %v2484 = vpop.f32.mrb[0].mxu0
    %v2485 = vadd.f32 %v2389, %v2484
    %v2486 = vpop.f32.mrb[0].mxu0
    %v2487 = vadd.f32 %v2393, %v2486
    %2488 = vdwg.mxu0
    %2489 = vmatprep.subr.mxu0 %v2321
    %2490 = vmatpush1.msra.mxu0 %v2320
    %2491 = vmatprep.subr.mxu0 %v2323
    %2492 = vmatpush1.msra.mxu0 %v2322
    %2493 = vmatprep.subr.mxu0 %v2325
    %2494 = vmatpush1.msra.mxu0 %v2324
    %2495 = vmatprep.subr.mxu0 %v2327
    %2496 = vmatpush1.msra.mxu0 %v2326
    %2497 = vmatprep.subr.mxu0 %v2329
    %2498 = vmatpush1.msra.mxu0 %v2328
    %2499 = vmatprep.subr.mxu0 %v2331
    %2500 = vmatpush1.msra.mxu0 %v2330
    %2501 = vmatprep.subr.mxu0 %v2333
    %2502 = vmatpush1.msra.mxu0 %v2332
    %2503 = vmatprep.subr.mxu0 %v2335
    %2504 = vmatpush1.msra.mxu0 %v2334
    %2505 = vmatprep.subr.mxu0 %v2337
    %2506 = vmatpush1.msra.mxu0 %v2336
    %2507 = vmatprep.subr.mxu0 %v2339
    %2508 = vmatpush1.msra.mxu0 %v2338
    %2509 = vmatprep.subr.mxu0 %v2341
    %2510 = vmatpush1.msra.mxu0 %v2340
    %2511 = vmatprep.subr.mxu0 %v2343
    %2512 = vmatpush1.msra.mxu0 %v2342
    %2513 = vmatprep.subr.mxu0 %v2345
    %2514 = vmatpush1.msra.mxu0 %v2344
    %2515 = vmatprep.subr.mxu0 %v2347
    %2516 = vmatpush1.msra.mxu0 %v2346
    %2517 = vmatprep.subr.mxu0 %v2349
    %2518 = vmatpush1.msra.mxu0 %v2348
    %2519 = vmatprep.subr.mxu0 %v2351
    %2520 = vmatpush1.msra.mxu0 %v2350
    %2521 = vmatprep.subr.mxu0 %v2353
    %2522 = vmatpush1.msra.mxu0 %v2352
    %2523 = vmatprep.subr.mxu0 %v2355
    %2524 = vmatpush1.msra.mxu0 %v2354
    %2525 = vmatprep.subr.mxu0 %v2357
    %2526 = vmatpush1.msra.mxu0 %v2356
    %2527 = vmatprep.subr.mxu0 %v2359
    %2528 = vmatpush1.msra.mxu0 %v2358
    %2529 = vmatprep.subr.mxu0 %v2361
    %2530 = vmatpush1.msra.mxu0 %v2360
    %2531 = vmatprep.subr.mxu0 %v2363
    %2532 = vmatpush1.msra.mxu0 %v2362
    %2533 = vmatprep.subr.mxu0 %v2365
    %2534 = vmatpush1.msra.mxu0 %v2364
    %2535 = vmatprep.subr.mxu0 %v2367
    %2536 = vmatpush1.msra.mxu0 %v2366
    %2537 = vmatprep.subr.mxu0 %v2369
    %2538 = vmatpush1.msra.mxu0 %v2368
    %2539 = vmatprep.subr.mxu0 %v2371
    %2540 = vmatpush1.msra.mxu0 %v2370
    %2541 = vmatprep.subr.mxu0 %v2373
    %2542 = vmatpush1.msra.mxu0 %v2372
    %2543 = vmatprep.subr.mxu0 %v2375
    %2544 = vmatpush1.msra.mxu0 %v2374
    %2545 = vmatprep.subr.mxu0 %v2377
    %2546 = vmatpush1.msra.mxu0 %v2376
    %2547 = vmatprep.subr.mxu0 %v2379
    %2548 = vmatpush1.msra.mxu0 %v2378
    %2549 = vmatprep.subr.mxu0 %v2381
    %2550 = vmatpush1.msra.mxu0 %v2380
    %2551 = vmatprep.subr.mxu0 %v2383
    %2552 = vmatpush1.msra.mxu0 %v2382
    %2553 = vmatprep.mubr.f32.mxu0 %v2413
    %2554 = vmatmul.mubr.f32.gmra.mrb[0].mxu0 %v2411
    %v2555 = vpop.f32.mrb[0].mxu0
    %v2556 = vadd.f32 %v2485, %v2555
    %v2557 = vpop.f32.mrb[0].mxu0
    %v2558 = vadd.f32 %v2487, %v2557
    %2559 = vdwg.mxu0
    %v2560 = vmax.f32 %v2556, 0.0
    %v2561 = vmax.f32 %v2558, 0.0
    %v2562 = vld [vmem:[%s7] sm:$0xff]
    %v2563 = vld [vmem:[%s7 + $0x8] sm:$0xff]
    %v2564 = vld [vmem:[%s7 + $0x10] sm:$0xff]
    %v2565 = vld [vmem:[%s7 + $0x18] sm:$0xff]
    %v2566 = vld [vmem:[%s7 + $0x20] sm:$0xff]
    %v2567 = vld [vmem:[%s7 + $0x28] sm:$0xff]
    %v2568 = vld [vmem:[%s7 + $0x30] sm:$0xff]
    %v2569 = vld [vmem:[%s7 + $0x38] sm:$0xff]
    %v2570 = vld [vmem:[%s7 + $0x40] sm:$0xff]
    %v2571 = vld [vmem:[%s7 + $0x48] sm:$0xff]
    %v2572 = vld [vmem:[%s7 + $0x50] sm:$0xff]
    %v2573 = vld [vmem:[%s7 + $0x58] sm:$0xff]
    %v2574 = vld [vmem:[%s7 + $0x60] sm:$0xff]
    %v2575 = vld [vmem:[%s7 + $0x68] sm:$0xff]
    %v2576 = vld [vmem:[%s7 + $0x70] sm:$0xff]
    %v2577 = vld [vmem:[%s7 + $0x78] sm:$0xff]
    %v2578 = vld [vmem:[%s7 + $0x80] sm:$0xff]
    %v2579 = vld [vmem:[%s7 + $0x88] sm:$0xff]
    %v2580 = vld [vmem:[%s7 + $0x90] sm:$0xff]
    %v2581 = vld [vmem:[%s7 + $0x98] sm:$0xff]
    %v2582 = vld [vmem:[%s7 + $0xa0] sm:$0xff]
    %v2583 = vld [vmem:[%s7 + $0xa8] sm:$0xff]
    %v2584 = vld [vmem:[%s7 + $0xb0] sm:$0xff]
    %v2585 = vld [vmem:[%s7 + $0xb8] sm:$0xff]
    %v2586 = vld [vmem:[%s7 + $0xc0] sm:$0xff]
    %v2587 = vld [vmem:[%s7 + $0xc8] sm:$0xff]
    %v2588 = vld [vmem:[%s7 + $0xd0] sm:$0xff]
    %v2589 = vld [vmem:[%s7 + $0xd8] sm:$0xff]
    %v2590 = vld [vmem:[%s7 + $0xe0] sm:$0xff]
    %v2591 = vld [vmem:[%s7 + $0xe8] sm:$0xff]
    %v2592 = vld [vmem:[%s7 + $0xf0] sm:$0xff]
    %v2593 = vld [vmem:[%s7 + $0xf8] sm:$0xff]
    %v2594 = vld [vmem:[%s8] sm:$0x1]
    %v2596 = vlaneseq
    %v2597 = vshrl.u32 %v2596, 7
    %v2598 = vsub.s32 0, %v2597
    %v2599 = vrot.slane %v2594, %v2598
    %2601 = vmatprep.subr.mxu0 0.0
    %2602 = vmatpush1.msra.mxu0 %v2562
    %2603 = vmatprep.subr.mxu0 0.0
    %2604 = vmatpush1.msra.mxu0 %v2563
    %2605 = vmatprep.subr.mxu0 0.0
    %2606 = vmatpush1.msra.mxu0 %v2564
    %2607 = vmatprep.subr.mxu0 0.0
    %2608 = vmatpush1.msra.mxu0 %v2565
    %2609 = vmatprep.subr.mxu0 0.0
    %2610 = vmatpush1.msra.mxu0 %v2566
    %2611 = vmatprep.subr.mxu0 0.0
    %2612 = vmatpush1.msra.mxu0 %v2567
    %2613 = vmatprep.subr.mxu0 0.0
    %2614 = vmatpush1.msra.mxu0 %v2568
    %2615 = vmatprep.subr.mxu0 0.0
    %2616 = vmatpush1.msra.mxu0 %v2569
    %2617 = vmatprep.subr.mxu0 0.0
    %2618 = vmatpush1.msra.mxu0 %v2570
    %2619 = vmatprep.subr.mxu0 0.0
    %2620 = vmatpush1.msra.mxu0 %v2571
    %2621 = vmatprep.subr.mxu0 0.0
    %2622 = vmatpush1.msra.mxu0 %v2572
    %2623 = vmatprep.subr.mxu0 0.0
    %2624 = vmatpush1.msra.mxu0 %v2573
    %2625 = vmatprep.subr.mxu0 0.0
    %2626 = vmatpush1.msra.mxu0 %v2574
    %2627 = vmatprep.subr.mxu0 0.0
    %2628 = vmatpush1.msra.mxu0 %v2575
    %2629 = vmatprep.subr.mxu0 0.0
    %2630 = vmatpush1.msra.mxu0 %v2576
    %2631 = vmatprep.subr.mxu0 0.0
    %2632 = vmatpush1.msra.mxu0 %v2577
    %2633 = vmatprep.subr.mxu0 0.0
    %2634 = vmatpush1.msra.mxu0 %v2578
    %2635 = vmatprep.subr.mxu0 0.0
    %2636 = vmatpush1.msra.mxu0 %v2579
    %2637 = vmatprep.subr.mxu0 0.0
    %2638 = vmatpush1.msra.mxu0 %v2580
    %2639 = vmatprep.subr.mxu0 0.0
    %2640 = vmatpush1.msra.mxu0 %v2581
    %2641 = vmatprep.subr.mxu0 0.0
    %2642 = vmatpush1.msra.mxu0 %v2582
    %2643 = vmatprep.subr.mxu0 0.0
    %2644 = vmatpush1.msra.mxu0 %v2583
    %2645 = vmatprep.subr.mxu0 0.0
    %2646 = vmatpush1.msra.mxu0 %v2584
    %2647 = vmatprep.subr.mxu0 0.0
    %2648 = vmatpush1.msra.mxu0 %v2585
    %2649 = vmatprep.subr.mxu0 0.0
    %2650 = vmatpush1.msra.mxu0 %v2586
    %2651 = vmatprep.subr.mxu0 0.0
    %2652 = vmatpush1.msra.mxu0 %v2587
    %2653 = vmatprep.subr.mxu0 0.0
    %2654 = vmatpush1.msra.mxu0 %v2588
    %2655 = vmatprep.subr.mxu0 0.0
    %2656 = vmatpush1.msra.mxu0 %v2589
    %2657 = vmatprep.subr.mxu0 0.0
    %2658 = vmatpush1.msra.mxu0 %v2590
    %2659 = vmatprep.subr.mxu0 0.0
    %2660 = vmatpush1.msra.mxu0 %v2591
    %2661 = vmatprep.subr.mxu0 0.0
    %2662 = vmatpush1.msra.mxu0 %v2592
    %2663 = vmatprep.subr.mxu0 0.0
    %2664 = vmatpush1.msra.mxu0 %v2593
    %2665 = vmatprep.mubr.f32.mxu0 %v2561
    %2666 = vmatmul.mubr.f32.gmra.mrb[0].mxu0 %v2560
    %v2667 = vpop.f32.mrb[0].mxu0
    %v2668 = vadd.f32 %v2599, %v2667
    %v2669 = vpop.f32.mrb[0].mxu0
    %2670 = vdwg.mxu0
    %2671 = vst [vmem:[#allocation5] sm:$0x3] %v2668
    // Predicated region
    $region38: #{agent_nn_forward.1} parent=1 // pred_check
      _
    $region39: #{agent_nn_forward.1} parent=1 // pred_check_branch
      %2673 = sbr.rel (0) target = $region41
    $region40: #{agent_nn_forward.1} parent=1 // pred_region
      %s2675 = ssub.s32 32, 32
      %2676 = vsyncadd [#allocation6], %s2675
      %s2678 = sshll.u32 [#allocation5], 4
      %s2679 = int_to_ptr.vmem [resolvable:$true] %s2678
      %2681 = dma.vmem_to_hbm [thread:$0]  %s2679, 32, %s9, [#allocation6]
    $region41: #{agent_nn_forward.1} parent=1 // pred_fallthru
      _
    // Predicated region
    $region42: #{agent_nn_forward.1} parent=1 // pred_check
      _
    $region43: #{agent_nn_forward.1} parent=1 // pred_check_branch
      %2683 = sbr.rel (0) target = $region45
    $region44: #{agent_nn_forward.1} parent=1 // pred_region
      %2684 = dma.done [#allocation6], 32
    $region45: #{agent_nn_forward.1} parent=1 // pred_fallthru
      _
    %2685 = vsyncpa [#allocation6], 1

</llo_original>
